<compile_context>
chip_gen: v6e
topology: v6e:2x2x1
jax: 0.10.0
libtpu: 0.0.40
codegen_flags: <defaults>
</compile_context>

<pallas_src>
import jax
import jax.numpy as jnp
from jax.experimental import pallas as pl
from jax.experimental.pallas import tpu as pltpu


# ---------------------------------------------------------------------------
# Fused kernel: conv1 -> pool1 -> conv2 -> pool2 -> fc1 -> fc2 -> fc3
# (one batch element per grid step)
# ---------------------------------------------------------------------------
def _lenet_kernel(x_ref, w1_ref, b1_ref, w2_ref, b2_ref,
                  wf1_ref, bf1_ref, wf2_ref, bf2_ref, wf3_ref, bf3_ref,
                  out_ref, x1s_ref, x2s_ref, flat_ref):
    f32 = jnp.float32

    # ---- conv1: stack 25 shifted views (im2col in VMEM), one MXU matmul ----
    # x_ref[0] is (8, 1280): rows 0..2 = input channels, cols = 32*32 flat + pad
    for ki in range(5):
        for kj in range(5):
            k = ki * 5 + kj
            s = ki * 32 + kj
            x1s_ref[k * 8:(k + 1) * 8, :] = x_ref[0, :, s:s + 1024]
    a1 = jnp.dot(w1_ref[...], x1s_ref[...], preferred_element_type=f32)  # (8,1024)
    a1 = jnp.maximum(a1 + b1_ref[...], 0.0)                              # bias+ReLU

    # ---- maxpool1 (2x2) via shift-and-max on the stride-32 flat grid ----
    h1 = jnp.maximum(a1[:, 0:944], a1[:, 1:945])          # cols j, j+1
    p1 = jnp.maximum(h1[:, 0:912], h1[:, 32:944])         # rows i, i+1 -> (8, 912)

    # ---- conv2 on the dilation-2 grid (pool1 output left un-compacted) ----
    for ki in range(5):
        for kj in range(5):
            k = ki * 5 + kj
            s = 2 * (ki * 32 + kj)
            x2s_ref[k * 8:(k + 1) * 8, :] = p1[:, s:s + 640]
    a2 = jnp.dot(w2_ref[...], x2s_ref[...], preferred_element_type=f32)  # (16,640)
    a2 = jnp.maximum(a2 + b2_ref[...], 0.0)

    # ---- maxpool2 (2x2) on the dilation-2 grid ----
    h2 = jnp.maximum(a2[:, 0:600], a2[:, 2:602])
    p2 = jnp.maximum(h2[:, 0:536], h2[:, 64:600])         # (16, 536), valid @ 4*(ih*32+iw)

    # ---- flatten 16x5x5 -> 400 (PyTorch order handled in fc1 weight prep) ----
    for ih in range(5):
        for iw in range(5):
            k2 = ih * 5 + iw
            s = 4 * (ih * 32 + iw)
            flat_ref[k2 * 16:(k2 + 1) * 16, :] = p2[:, s:s + 1]

    # ---- fc1 -> fc2 -> fc3 (zero-padded weights, column form) ----
    y = jnp.dot(wf1_ref[...], flat_ref[...], preferred_element_type=f32) + bf1_ref[...]
    y = jnp.maximum(y, 0.0)                                              # (128, 1)
    y = jnp.dot(wf2_ref[...], y, preferred_element_type=f32) + bf2_ref[...]
    y = jnp.maximum(y, 0.0)                                              # (96, 1)
    y = jnp.dot(wf3_ref[...], y, preferred_element_type=f32) + bf3_ref[...]  # (16, 1)

    # lane-dense (16, 128) output block; wrapper keeps [:10, 0]
    out_ref[0] = jnp.broadcast_to(y, (16, 128))


# ---------------------------------------------------------------------------
# One-time parameter prep (outside the hot path): pad / permute to MXU-friendly
# layouts so the kernel never transposes or re-packs weights.
# ---------------------------------------------------------------------------
def prepare_params(p):
    f32 = jnp.float32
    # conv1 (6,3,5,5) -> (8, 200) with column index (ki*5+kj)*8 + ci
    w1 = jnp.transpose(p["conv1_w"].astype(f32), (2, 3, 1, 0))     # (5,5,3,6) [ki,kj,ci,co]
    w1 = jnp.pad(w1, ((0, 0), (0, 0), (0, 5), (0, 2)))             # (5,5,8,8)
    w1 = jnp.transpose(w1, (3, 0, 1, 2)).reshape(8, 200)           # [co, ki,kj,ci]
    b1 = jnp.pad(p["conv1_b"].astype(f32), (0, 2)).reshape(8, 1)
    # conv2 (16,6,5,5) -> (16, 200)
    w2 = jnp.transpose(p["conv2_w"].astype(f32), (2, 3, 1, 0))     # (5,5,6,16)
    w2 = jnp.pad(w2, ((0, 0), (0, 0), (0, 2), (0, 0)))             # (5,5,8,16)
    w2 = jnp.transpose(w2, (3, 0, 1, 2)).reshape(16, 200)
    b2 = p["conv2_b"].astype(f32).reshape(16, 1)
    # fc1 (120, 400): PyTorch column index c*25 + k2  ->  kernel index k2*16 + c
    wf1 = p["fc1_w"].astype(f32).reshape(120, 16, 25)              # [j, c, k2]
    wf1 = jnp.transpose(wf1, (0, 2, 1)).reshape(120, 400)          # [j, k2*16 + c]
    wf1 = jnp.pad(wf1, ((0, 8), (0, 0)))                           # (128, 400)
    bf1 = jnp.pad(p["fc1_b"].astype(f32), (0, 8)).reshape(128, 1)
    # fc2 (84,120) -> (96,128), fc3 (10,84) -> (16,96)
    wf2 = jnp.pad(p["fc2_w"].astype(f32), ((0, 12), (0, 8)))
    bf2 = jnp.pad(p["fc2_b"].astype(f32), (0, 12)).reshape(96, 1)
    wf3 = jnp.pad(p["fc3_w"].astype(f32), ((0, 6), (0, 12)))
    bf3 = jnp.pad(p["fc3_b"].astype(f32), (0, 6)).reshape(16, 1)
    return dict(w1=w1, b1=b1, w2=w2, b2=b2, wf1=wf1, bf1=bf1,
                wf2=wf2, bf2=bf2, wf3=wf3, bf3=bf3)


def _prep_input(x):
    # (B,3,32,32) NCHW -> (B, 8, 1280): channels padded to 8 sublanes,
    # 32x32 spatial flattened on lanes (stride 32) + zero tail for the
    # in-kernel shifted reads.
    B = x.shape[0]
    xf = x.astype(jnp.float32).reshape(B, 3, 32 * 32)
    return jnp.pad(xf, ((0, 0), (0, 5), (0, 256)))


# ---------------------------------------------------------------------------
# Forward wrapper
# ---------------------------------------------------------------------------
def lenet_forward(x, wp):
    B = x.shape[0]
    assert x.shape[1:] == (3, 32, 32), x.shape   # 400-dim flatten => 3x32x32 input
    x_flat = _prep_input(x)

    flops = 2 * B * (8 * 200 * 1024 + 16 * 200 * 640 + 128 * 400 + 96 * 128 + 16 * 96)
    bytes_accessed = 4 * (B * 8 * 1280 + B * 16 * 128 + 8 * 200 + 16 * 200
                          + 128 * 400 + 96 * 128 + 16 * 96 + 128 + 96 + 16 + 8 + 16)

    out = pl.pallas_call(
        _lenet_kernel,
        out_shape=jax.ShapeDtypeStruct((B, 16, 128), jnp.float32),
        grid=(B,),
        in_specs=[
            pl.BlockSpec((1, 8, 1280), lambda b: (b, 0, 0)),   # input image
            pl.BlockSpec((8, 200), lambda b: (0, 0)),          # conv1 weights
            pl.BlockSpec((8, 1), lambda b: (0, 0)),            # conv1 bias
            pl.BlockSpec((16, 200), lambda b: (0, 0)),         # conv2 weights
            pl.BlockSpec((16, 1), lambda b: (0, 0)),           # conv2 bias
            pl.BlockSpec((128, 400), lambda b: (0, 0)),        # fc1 weights
            pl.BlockSpec((128, 1), lambda b: (0, 0)),          # fc1 bias
            pl.BlockSpec((96, 128), lambda b: (0, 0)),         # fc2 weights
            pl.BlockSpec((96, 1), lambda b: (0, 0)),           # fc2 bias
            pl.BlockSpec((16, 96), lambda b: (0, 0)),          # fc3 weights
            pl.BlockSpec((16, 1), lambda b: (0, 0)),           # fc3 bias
        ],
        out_specs=pl.BlockSpec((1, 16, 128), lambda b: (b, 0, 0)),
        scratch_shapes=[
            pltpu.VMEM((200, 1024), jnp.float32),   # conv1 stacked shifted views
            pltpu.VMEM((200, 640), jnp.float32),    # conv2 stacked shifted views
            pltpu.VMEM((400, 1), jnp.float32),      # flattened fc1 input
        ],
        compiler_params=pltpu.CompilerParams(
            dimension_semantics=("parallel",),       # v7x: one image per TensorCore
            vmem_limit_bytes=32 * 1024 * 1024,
        ),
        cost_estimate=pl.CostEstimate(flops=flops, transcendentals=0,
                                      bytes_accessed=bytes_accessed),
    )(x_flat, wp["w1"], wp["b1"], wp["w2"], wp["b2"],
      wp["wf1"], wp["bf1"], wp["wf2"], wp["bf2"], wp["wf3"], wp["bf3"])
    return out[:, :10, 0]


# ---------------------------------------------------------------------------
# Pure-JAX reference (for a numerical sanity check)
# ---------------------------------------------------------------------------
def lenet_reference(x, params):
    f32 = jnp.float32
    hp = jax.lax.Precision.HIGHEST
    y = jax.lax.conv_general_dilated(
        x.astype(f32), params["conv1_w"].astype(f32), (1, 1), "VALID",
        dimension_numbers=("NCHW", "OIHW", "NCHW"), precision=hp)
    y = jax.nn.relu(y + params["conv1_b"].reshape(1, 6, 1, 1))
    y = jax.lax.reduce_window(y, -jnp.inf, jax.lax.max, (1, 1, 2, 2), (1, 1, 2, 2), "VALID")
    y = jax.lax.conv_general_dilated(
        y, params["conv2_w"].astype(f32), (1, 1), "VALID",
        dimension_numbers=("NCHW", "OIHW", "NCHW"), precision=hp)
    y = jax.nn.relu(y + params["conv2_b"].reshape(1, 16, 1, 1))
    y = jax.lax.reduce_window(y, -jnp.inf, jax.lax.max, (1, 1, 2, 2), (1, 1, 2, 2), "VALID")
    y = y.reshape(y.shape[0], 400)
    y = jax.nn.relu(jnp.dot(y, params["fc1_w"].T, precision=hp) + params["fc1_b"])
    y = jax.nn.relu(jnp.dot(y, params["fc2_w"].T, precision=hp) + params["fc2_b"])
    return jnp.dot(y, params["fc3_w"].T, precision=hp) + params["fc3_b"]


# ---------------------------------------------------------------------------
if __name__ == "__main__":
    key = jax.random.PRNGKey(0)
    keys = jax.random.split(key, 11)

    def init(k, shape, scale=0.05):
        return scale * jax.random.normal(k, shape, dtype=jnp.float32)

    params = {
        "conv1_w": init(keys[0], (6, 3, 5, 5)),
        "conv1_b": init(keys[1], (6,)),
        "conv2_w": init(keys[2], (16, 6, 5, 5)),
        "conv2_b": init(keys[3], (16,)),
        "fc1_w": init(keys[4], (120, 400)),   # PyTorch Linear: (out, in)
        "fc1_b": init(keys[5], (120,)),
        "fc2_w": init(keys[6], (84, 120)),
        "fc2_b": init(keys[7], (84,)),
        "fc3_w": init(keys[8], (10, 84)),
        "fc3_b": init(keys[9], (10,)),
    }

    # LeNet's 400-dim flatten implies 3x32x32 inputs; batch=2 keeps it small.
    x = jax.random.normal(keys[10], (2, 3, 32, 32), dtype=jnp.float32)

    prepped = prepare_params(params)          # one-time weight prep, outside jit
    fwd = jax.jit(lenet_forward)
    out = jax.block_until_ready(fwd(x, prepped))
    assert out.shape == (2, 10), out.shape

    ref = jax.block_until_ready(lenet_reference(x, params))
    max_err = float(jnp.max(jnp.abs(out - ref)))
    assert jnp.allclose(out, ref, rtol=1e-2, atol=1e-2), max_err

    print("KERNEL_OK")
</pallas_src>

<mosaic_0001>
module attributes {stable_mosaic.version = 11 : i64} {
  func.func @_lenet_kernel(%arg0: i32, %arg1: memref<1x8x1280xf32, #tpu.memory_space<vmem>>, %arg2: memref<8x200xf32, #tpu.memory_space<vmem>>, %arg3: memref<8x1xf32, #tpu.memory_space<vmem>>, %arg4: memref<16x200xf32, #tpu.memory_space<vmem>>, %arg5: memref<16x1xf32, #tpu.memory_space<vmem>>, %arg6: memref<128x400xf32, #tpu.memory_space<vmem>>, %arg7: memref<128x1xf32, #tpu.memory_space<vmem>>, %arg8: memref<96x128xf32, #tpu.memory_space<vmem>>, %arg9: memref<96x1xf32, #tpu.memory_space<vmem>>, %arg10: memref<16x96xf32, #tpu.memory_space<vmem>>, %arg11: memref<16x1xf32, #tpu.memory_space<vmem>>, %arg12: memref<1x16x128xf32, #tpu.memory_space<vmem>>, %arg13: memref<200x1024xf32, #tpu.memory_space<vmem>>, %arg14: memref<200x640xf32, #tpu.memory_space<vmem>>, %arg15: memref<400x1xf32, #tpu.memory_space<vmem>>) attributes {dimension_semantics = [#tpu.dimension_semantics<parallel>], iteration_bounds = array<i64: 2>, scalar_prefetch = 0 : i64, scratch_operands = 3 : i64, tpu.core_type = #tpu.core_type<tc>, window_params = [{transform_indices = @transform_0, window_bounds = array<i64: 1, 8, 1280>}, {pipeline_mode = #tpu.pipeline_mode<synchronous>, transform_indices = @transform_1, window_bounds = array<i64: 8, 200>}, {pipeline_mode = #tpu.pipeline_mode<synchronous>, transform_indices = @transform_2, window_bounds = array<i64: 8, 1>}, {pipeline_mode = #tpu.pipeline_mode<synchronous>, transform_indices = @transform_3, window_bounds = array<i64: 16, 200>}, {pipeline_mode = #tpu.pipeline_mode<synchronous>, transform_indices = @transform_4, window_bounds = array<i64: 16, 1>}, {pipeline_mode = #tpu.pipeline_mode<synchronous>, transform_indices = @transform_5, window_bounds = array<i64: 128, 400>}, {pipeline_mode = #tpu.pipeline_mode<synchronous>, transform_indices = @transform_6, window_bounds = array<i64: 128, 1>}, {pipeline_mode = #tpu.pipeline_mode<synchronous>, transform_indices = @transform_7, window_bounds = array<i64: 96, 128>}, {pipeline_mode = #tpu.pipeline_mode<synchronous>, transform_indices = @transform_8, window_bounds = array<i64: 96, 1>}, {pipeline_mode = #tpu.pipeline_mode<synchronous>, transform_indices = @transform_9, window_bounds = array<i64: 16, 96>}, {pipeline_mode = #tpu.pipeline_mode<synchronous>, transform_indices = @transform_10, window_bounds = array<i64: 16, 1>}, {transform_indices = @transform_11, window_bounds = array<i64: 1, 16, 128>}]} {
    %c0 = arith.constant 0 : index
    %c0_0 = arith.constant 0 : index
    %c0_1 = arith.constant 0 : index
    %0 = vector.load %arg1[%c0, %c0_0, %c0_1] : memref<1x8x1280xf32, #tpu.memory_space<vmem>>, vector<1x8x1024xf32>
    %1 = vector.shape_cast %0 : vector<1x8x1024xf32> to vector<8x1024xf32>
    %c0_2 = arith.constant 0 : index
    %c0_3 = arith.constant 0 : index
    %2 = vector.load %arg13[%c0_2, %c0_3] : memref<200x1024xf32, #tpu.memory_space<vmem>>, vector<8x1024xf32>
    tpu.vector_store %arg13[%c0_2, %c0_3], %1 {strides = array<i32>} : memref<200x1024xf32, #tpu.memory_space<vmem>>, vector<8x1024xf32>,
    %c0_4 = arith.constant 0 : index
    %c0_5 = arith.constant 0 : index
    %c1 = arith.constant 1 : index
    %3 = vector.load %arg1[%c0_4, %c0_5, %c1] : memref<1x8x1280xf32, #tpu.memory_space<vmem>>, vector<1x8x1024xf32>
    %4 = vector.shape_cast %3 : vector<1x8x1024xf32> to vector<8x1024xf32>
    %c8 = arith.constant 8 : index
    %c0_6 = arith.constant 0 : index
    %5 = vector.load %arg13[%c8, %c0_6] : memref<200x1024xf32, #tpu.memory_space<vmem>>, vector<8x1024xf32>
    tpu.vector_store %arg13[%c8, %c0_6], %4 {strides = array<i32>} : memref<200x1024xf32, #tpu.memory_space<vmem>>, vector<8x1024xf32>,
    %c0_7 = arith.constant 0 : index
    %c0_8 = arith.constant 0 : index
    %c2 = arith.constant 2 : index
    %6 = vector.load %arg1[%c0_7, %c0_8, %c2] : memref<1x8x1280xf32, #tpu.memory_space<vmem>>, vector<1x8x1024xf32>
    %7 = vector.shape_cast %6 : vector<1x8x1024xf32> to vector<8x1024xf32>
    %c16 = arith.constant 16 : index
    %c0_9 = arith.constant 0 : index
    %8 = vector.load %arg13[%c16, %c0_9] : memref<200x1024xf32, #tpu.memory_space<vmem>>, vector<8x1024xf32>
    tpu.vector_store %arg13[%c16, %c0_9], %7 {strides = array<i32>} : memref<200x1024xf32, #tpu.memory_space<vmem>>, vector<8x1024xf32>,
    %c0_10 = arith.constant 0 : index
    %c0_11 = arith.constant 0 : index
    %c3 = arith.constant 3 : index
    %9 = vector.load %arg1[%c0_10, %c0_11, %c3] : memref<1x8x1280xf32, #tpu.memory_space<vmem>>, vector<1x8x1024xf32>
    %10 = vector.shape_cast %9 : vector<1x8x1024xf32> to vector<8x1024xf32>
    %c24 = arith.constant 24 : index
    %c0_12 = arith.constant 0 : index
    %11 = vector.load %arg13[%c24, %c0_12] : memref<200x1024xf32, #tpu.memory_space<vmem>>, vector<8x1024xf32>
    tpu.vector_store %arg13[%c24, %c0_12], %10 {strides = array<i32>} : memref<200x1024xf32, #tpu.memory_space<vmem>>, vector<8x1024xf32>,
    %c0_13 = arith.constant 0 : index
    %c0_14 = arith.constant 0 : index
    %c4 = arith.constant 4 : index
    %12 = vector.load %arg1[%c0_13, %c0_14, %c4] : memref<1x8x1280xf32, #tpu.memory_space<vmem>>, vector<1x8x1024xf32>
    %13 = vector.shape_cast %12 : vector<1x8x1024xf32> to vector<8x1024xf32>
    %c32 = arith.constant 32 : index
    %c0_15 = arith.constant 0 : index
    %14 = vector.load %arg13[%c32, %c0_15] : memref<200x1024xf32, #tpu.memory_space<vmem>>, vector<8x1024xf32>
    tpu.vector_store %arg13[%c32, %c0_15], %13 {strides = array<i32>} : memref<200x1024xf32, #tpu.memory_space<vmem>>, vector<8x1024xf32>,
    %c0_16 = arith.constant 0 : index
    %c0_17 = arith.constant 0 : index
    %c32_18 = arith.constant 32 : index
    %15 = vector.load %arg1[%c0_16, %c0_17, %c32_18] : memref<1x8x1280xf32, #tpu.memory_space<vmem>>, vector<1x8x1024xf32>
    %16 = vector.shape_cast %15 : vector<1x8x1024xf32> to vector<8x1024xf32>
    %c40 = arith.constant 40 : index
    %c0_19 = arith.constant 0 : index
    %17 = vector.load %arg13[%c40, %c0_19] : memref<200x1024xf32, #tpu.memory_space<vmem>>, vector<8x1024xf32>
    tpu.vector_store %arg13[%c40, %c0_19], %16 {strides = array<i32>} : memref<200x1024xf32, #tpu.memory_space<vmem>>, vector<8x1024xf32>,
    %c0_20 = arith.constant 0 : index
    %c0_21 = arith.constant 0 : index
    %c33 = arith.constant 33 : index
    %18 = vector.load %arg1[%c0_20, %c0_21, %c33] : memref<1x8x1280xf32, #tpu.memory_space<vmem>>, vector<1x8x1024xf32>
    %19 = vector.shape_cast %18 : vector<1x8x1024xf32> to vector<8x1024xf32>
    %c48 = arith.constant 48 : index
    %c0_22 = arith.constant 0 : index
    %20 = vector.load %arg13[%c48, %c0_22] : memref<200x1024xf32, #tpu.memory_space<vmem>>, vector<8x1024xf32>
    tpu.vector_store %arg13[%c48, %c0_22], %19 {strides = array<i32>} : memref<200x1024xf32, #tpu.memory_space<vmem>>, vector<8x1024xf32>,
    %c0_23 = arith.constant 0 : index
    %c0_24 = arith.constant 0 : index
    %c34 = arith.constant 34 : index
    %21 = vector.load %arg1[%c0_23, %c0_24, %c34] : memref<1x8x1280xf32, #tpu.memory_space<vmem>>, vector<1x8x1024xf32>
    %22 = vector.shape_cast %21 : vector<1x8x1024xf32> to vector<8x1024xf32>
    %c56 = arith.constant 56 : index
    %c0_25 = arith.constant 0 : index
    %23 = vector.load %arg13[%c56, %c0_25] : memref<200x1024xf32, #tpu.memory_space<vmem>>, vector<8x1024xf32>
    tpu.vector_store %arg13[%c56, %c0_25], %22 {strides = array<i32>} : memref<200x1024xf32, #tpu.memory_space<vmem>>, vector<8x1024xf32>,
    %c0_26 = arith.constant 0 : index
    %c0_27 = arith.constant 0 : index
    %c35 = arith.constant 35 : index
    %24 = vector.load %arg1[%c0_26, %c0_27, %c35] : memref<1x8x1280xf32, #tpu.memory_space<vmem>>, vector<1x8x1024xf32>
    %25 = vector.shape_cast %24 : vector<1x8x1024xf32> to vector<8x1024xf32>
    %c64 = arith.constant 64 : index
    %c0_28 = arith.constant 0 : index
    %26 = vector.load %arg13[%c64, %c0_28] : memref<200x1024xf32, #tpu.memory_space<vmem>>, vector<8x1024xf32>
    tpu.vector_store %arg13[%c64, %c0_28], %25 {strides = array<i32>} : memref<200x1024xf32, #tpu.memory_space<vmem>>, vector<8x1024xf32>,
    %c0_29 = arith.constant 0 : index
    %c0_30 = arith.constant 0 : index
    %c36 = arith.constant 36 : index
    %27 = vector.load %arg1[%c0_29, %c0_30, %c36] : memref<1x8x1280xf32, #tpu.memory_space<vmem>>, vector<1x8x1024xf32>
    %28 = vector.shape_cast %27 : vector<1x8x1024xf32> to vector<8x1024xf32>
    %c72 = arith.constant 72 : index
    %c0_31 = arith.constant 0 : index
    %29 = vector.load %arg13[%c72, %c0_31] : memref<200x1024xf32, #tpu.memory_space<vmem>>, vector<8x1024xf32>
    tpu.vector_store %arg13[%c72, %c0_31], %28 {strides = array<i32>} : memref<200x1024xf32, #tpu.memory_space<vmem>>, vector<8x1024xf32>,
    %c0_32 = arith.constant 0 : index
    %c0_33 = arith.constant 0 : index
    %c64_34 = arith.constant 64 : index
    %30 = vector.load %arg1[%c0_32, %c0_33, %c64_34] : memref<1x8x1280xf32, #tpu.memory_space<vmem>>, vector<1x8x1024xf32>
    %31 = vector.shape_cast %30 : vector<1x8x1024xf32> to vector<8x1024xf32>
    %c80 = arith.constant 80 : index
    %c0_35 = arith.constant 0 : index
    %32 = vector.load %arg13[%c80, %c0_35] : memref<200x1024xf32, #tpu.memory_space<vmem>>, vector<8x1024xf32>
    tpu.vector_store %arg13[%c80, %c0_35], %31 {strides = array<i32>} : memref<200x1024xf32, #tpu.memory_space<vmem>>, vector<8x1024xf32>,
    %c0_36 = arith.constant 0 : index
    %c0_37 = arith.constant 0 : index
    %c65 = arith.constant 65 : index
    %33 = vector.load %arg1[%c0_36, %c0_37, %c65] : memref<1x8x1280xf32, #tpu.memory_space<vmem>>, vector<1x8x1024xf32>
    %34 = vector.shape_cast %33 : vector<1x8x1024xf32> to vector<8x1024xf32>
    %c88 = arith.constant 88 : index
    %c0_38 = arith.constant 0 : index
    %35 = vector.load %arg13[%c88, %c0_38] : memref<200x1024xf32, #tpu.memory_space<vmem>>, vector<8x1024xf32>
    tpu.vector_store %arg13[%c88, %c0_38], %34 {strides = array<i32>} : memref<200x1024xf32, #tpu.memory_space<vmem>>, vector<8x1024xf32>,
    %c0_39 = arith.constant 0 : index
    %c0_40 = arith.constant 0 : index
    %c66 = arith.constant 66 : index
    %36 = vector.load %arg1[%c0_39, %c0_40, %c66] : memref<1x8x1280xf32, #tpu.memory_space<vmem>>, vector<1x8x1024xf32>
    %37 = vector.shape_cast %36 : vector<1x8x1024xf32> to vector<8x1024xf32>
    %c96 = arith.constant 96 : index
    %c0_41 = arith.constant 0 : index
    %38 = vector.load %arg13[%c96, %c0_41] : memref<200x1024xf32, #tpu.memory_space<vmem>>, vector<8x1024xf32>
    tpu.vector_store %arg13[%c96, %c0_41], %37 {strides = array<i32>} : memref<200x1024xf32, #tpu.memory_space<vmem>>, vector<8x1024xf32>,
    %c0_42 = arith.constant 0 : index
    %c0_43 = arith.constant 0 : index
    %c67 = arith.constant 67 : index
    %39 = vector.load %arg1[%c0_42, %c0_43, %c67] : memref<1x8x1280xf32, #tpu.memory_space<vmem>>, vector<1x8x1024xf32>
    %40 = vector.shape_cast %39 : vector<1x8x1024xf32> to vector<8x1024xf32>
    %c104 = arith.constant 104 : index
    %c0_44 = arith.constant 0 : index
    %41 = vector.load %arg13[%c104, %c0_44] : memref<200x1024xf32, #tpu.memory_space<vmem>>, vector<8x1024xf32>
    tpu.vector_store %arg13[%c104, %c0_44], %40 {strides = array<i32>} : memref<200x1024xf32, #tpu.memory_space<vmem>>, vector<8x1024xf32>,
    %c0_45 = arith.constant 0 : index
    %c0_46 = arith.constant 0 : index
    %c68 = arith.constant 68 : index
    %42 = vector.load %arg1[%c0_45, %c0_46, %c68] : memref<1x8x1280xf32, #tpu.memory_space<vmem>>, vector<1x8x1024xf32>
    %43 = vector.shape_cast %42 : vector<1x8x1024xf32> to vector<8x1024xf32>
    %c112 = arith.constant 112 : index
    %c0_47 = arith.constant 0 : index
    %44 = vector.load %arg13[%c112, %c0_47] : memref<200x1024xf32, #tpu.memory_space<vmem>>, vector<8x1024xf32>
    tpu.vector_store %arg13[%c112, %c0_47], %43 {strides = array<i32>} : memref<200x1024xf32, #tpu.memory_space<vmem>>, vector<8x1024xf32>,
    %c0_48 = arith.constant 0 : index
    %c0_49 = arith.constant 0 : index
    %c96_50 = arith.constant 96 : index
    %45 = vector.load %arg1[%c0_48, %c0_49, %c96_50] : memref<1x8x1280xf32, #tpu.memory_space<vmem>>, vector<1x8x1024xf32>
    %46 = vector.shape_cast %45 : vector<1x8x1024xf32> to vector<8x1024xf32>
    %c120 = arith.constant 120 : index
    %c0_51 = arith.constant 0 : index
    %47 = vector.load %arg13[%c120, %c0_51] : memref<200x1024xf32, #tpu.memory_space<vmem>>, vector<8x1024xf32>
    tpu.vector_store %arg13[%c120, %c0_51], %46 {strides = array<i32>} : memref<200x1024xf32, #tpu.memory_space<vmem>>, vector<8x1024xf32>,
    %c0_52 = arith.constant 0 : index
    %c0_53 = arith.constant 0 : index
    %c97 = arith.constant 97 : index
    %48 = vector.load %arg1[%c0_52, %c0_53, %c97] : memref<1x8x1280xf32, #tpu.memory_space<vmem>>, vector<1x8x1024xf32>
    %49 = vector.shape_cast %48 : vector<1x8x1024xf32> to vector<8x1024xf32>
    %c128 = arith.constant 128 : index
    %c0_54 = arith.constant 0 : index
    %50 = vector.load %arg13[%c128, %c0_54] : memref<200x1024xf32, #tpu.memory_space<vmem>>, vector<8x1024xf32>
    tpu.vector_store %arg13[%c128, %c0_54], %49 {strides = array<i32>} : memref<200x1024xf32, #tpu.memory_space<vmem>>, vector<8x1024xf32>,
    %c0_55 = arith.constant 0 : index
    %c0_56 = arith.constant 0 : index
    %c98 = arith.constant 98 : index
    %51 = vector.load %arg1[%c0_55, %c0_56, %c98] : memref<1x8x1280xf32, #tpu.memory_space<vmem>>, vector<1x8x1024xf32>
    %52 = vector.shape_cast %51 : vector<1x8x1024xf32> to vector<8x1024xf32>
    %c136 = arith.constant 136 : index
    %c0_57 = arith.constant 0 : index
    %53 = vector.load %arg13[%c136, %c0_57] : memref<200x1024xf32, #tpu.memory_space<vmem>>, vector<8x1024xf32>
    tpu.vector_store %arg13[%c136, %c0_57], %52 {strides = array<i32>} : memref<200x1024xf32, #tpu.memory_space<vmem>>, vector<8x1024xf32>,
    %c0_58 = arith.constant 0 : index
    %c0_59 = arith.constant 0 : index
    %c99 = arith.constant 99 : index
    %54 = vector.load %arg1[%c0_58, %c0_59, %c99] : memref<1x8x1280xf32, #tpu.memory_space<vmem>>, vector<1x8x1024xf32>
    %55 = vector.shape_cast %54 : vector<1x8x1024xf32> to vector<8x1024xf32>
    %c144 = arith.constant 144 : index
    %c0_60 = arith.constant 0 : index
    %56 = vector.load %arg13[%c144, %c0_60] : memref<200x1024xf32, #tpu.memory_space<vmem>>, vector<8x1024xf32>
    tpu.vector_store %arg13[%c144, %c0_60], %55 {strides = array<i32>} : memref<200x1024xf32, #tpu.memory_space<vmem>>, vector<8x1024xf32>,
    %c0_61 = arith.constant 0 : index
    %c0_62 = arith.constant 0 : index
    %c100 = arith.constant 100 : index
    %57 = vector.load %arg1[%c0_61, %c0_62, %c100] : memref<1x8x1280xf32, #tpu.memory_space<vmem>>, vector<1x8x1024xf32>
    %58 = vector.shape_cast %57 : vector<1x8x1024xf32> to vector<8x1024xf32>
    %c152 = arith.constant 152 : index
    %c0_63 = arith.constant 0 : index
    %59 = vector.load %arg13[%c152, %c0_63] : memref<200x1024xf32, #tpu.memory_space<vmem>>, vector<8x1024xf32>
    tpu.vector_store %arg13[%c152, %c0_63], %58 {strides = array<i32>} : memref<200x1024xf32, #tpu.memory_space<vmem>>, vector<8x1024xf32>,
    %c0_64 = arith.constant 0 : index
    %c0_65 = arith.constant 0 : index
    %c128_66 = arith.constant 128 : index
    %60 = vector.load %arg1[%c0_64, %c0_65, %c128_66] : memref<1x8x1280xf32, #tpu.memory_space<vmem>>, vector<1x8x1024xf32>
    %61 = vector.shape_cast %60 : vector<1x8x1024xf32> to vector<8x1024xf32>
    %c160 = arith.constant 160 : index
    %c0_67 = arith.constant 0 : index
    %62 = vector.load %arg13[%c160, %c0_67] : memref<200x1024xf32, #tpu.memory_space<vmem>>, vector<8x1024xf32>
    tpu.vector_store %arg13[%c160, %c0_67], %61 {strides = array<i32>} : memref<200x1024xf32, #tpu.memory_space<vmem>>, vector<8x1024xf32>,
    %c0_68 = arith.constant 0 : index
    %c0_69 = arith.constant 0 : index
    %c129 = arith.constant 129 : index
    %63 = vector.load %arg1[%c0_68, %c0_69, %c129] : memref<1x8x1280xf32, #tpu.memory_space<vmem>>, vector<1x8x1024xf32>
    %64 = vector.shape_cast %63 : vector<1x8x1024xf32> to vector<8x1024xf32>
    %c168 = arith.constant 168 : index
    %c0_70 = arith.constant 0 : index
    %65 = vector.load %arg13[%c168, %c0_70] : memref<200x1024xf32, #tpu.memory_space<vmem>>, vector<8x1024xf32>
    tpu.vector_store %arg13[%c168, %c0_70], %64 {strides = array<i32>} : memref<200x1024xf32, #tpu.memory_space<vmem>>, vector<8x1024xf32>,
    %c0_71 = arith.constant 0 : index
    %c0_72 = arith.constant 0 : index
    %c130 = arith.constant 130 : index
    %66 = vector.load %arg1[%c0_71, %c0_72, %c130] : memref<1x8x1280xf32, #tpu.memory_space<vmem>>, vector<1x8x1024xf32>
    %67 = vector.shape_cast %66 : vector<1x8x1024xf32> to vector<8x1024xf32>
    %c176 = arith.constant 176 : index
    %c0_73 = arith.constant 0 : index
    %68 = vector.load %arg13[%c176, %c0_73] : memref<200x1024xf32, #tpu.memory_space<vmem>>, vector<8x1024xf32>
    tpu.vector_store %arg13[%c176, %c0_73], %67 {strides = array<i32>} : memref<200x1024xf32, #tpu.memory_space<vmem>>, vector<8x1024xf32>,
    %c0_74 = arith.constant 0 : index
    %c0_75 = arith.constant 0 : index
    %c131 = arith.constant 131 : index
    %69 = vector.load %arg1[%c0_74, %c0_75, %c131] : memref<1x8x1280xf32, #tpu.memory_space<vmem>>, vector<1x8x1024xf32>
    %70 = vector.shape_cast %69 : vector<1x8x1024xf32> to vector<8x1024xf32>
    %c184 = arith.constant 184 : index
    %c0_76 = arith.constant 0 : index
    %71 = vector.load %arg13[%c184, %c0_76] : memref<200x1024xf32, #tpu.memory_space<vmem>>, vector<8x1024xf32>
    tpu.vector_store %arg13[%c184, %c0_76], %70 {strides = array<i32>} : memref<200x1024xf32, #tpu.memory_space<vmem>>, vector<8x1024xf32>,
    %c0_77 = arith.constant 0 : index
    %c0_78 = arith.constant 0 : index
    %c132 = arith.constant 132 : index
    %72 = vector.load %arg1[%c0_77, %c0_78, %c132] : memref<1x8x1280xf32, #tpu.memory_space<vmem>>, vector<1x8x1024xf32>
    %73 = vector.shape_cast %72 : vector<1x8x1024xf32> to vector<8x1024xf32>
    %c192 = arith.constant 192 : index
    %c0_79 = arith.constant 0 : index
    %74 = vector.load %arg13[%c192, %c0_79] : memref<200x1024xf32, #tpu.memory_space<vmem>>, vector<8x1024xf32>
    tpu.vector_store %arg13[%c192, %c0_79], %73 {strides = array<i32>} : memref<200x1024xf32, #tpu.memory_space<vmem>>, vector<8x1024xf32>,
    %c0_80 = arith.constant 0 : index
    %c0_81 = arith.constant 0 : index
    %75 = vector.load %arg2[%c0_80, %c0_81] : memref<8x200xf32, #tpu.memory_space<vmem>>, vector<8x200xf32>
    %c0_82 = arith.constant 0 : index
    %c0_83 = arith.constant 0 : index
    %76 = vector.load %arg13[%c0_82, %c0_83] : memref<200x1024xf32, #tpu.memory_space<vmem>>, vector<200x1024xf32>
    %cst = arith.constant dense<0.000000e+00> : vector<8x1024xf32>
    %77 = tpu.matmul %75, %76, %cst {dimension_numbers = #tpu.dot_dimension_numbers<[1], [0], [0], [1], [0, 0, 1, 1], [], []>} : vector<8x200xf32>, vector<200x1024xf32>, vector<8x1024xf32> -> vector<8x1024xf32>
    %c0_84 = arith.constant 0 : index
    %c0_85 = arith.constant 0 : index
    %78 = vector.load %arg3[%c0_84, %c0_85] : memref<8x1xf32, #tpu.memory_space<vmem>>, vector<8x1xf32>
    %79 = vector.broadcast %78 : vector<8x1xf32> to vector<8x1024xf32>
    %80 = arith.addf %77, %79 : vector<8x1024xf32>
    %cst_86 = arith.constant 0.000000e+00 : f32
    %81 = vector.broadcast %cst_86 : f32 to vector<8x1024xf32>
    %82 = arith.maximumf %80, %81 : vector<8x1024xf32>
    %83 = vector.extract_strided_slice %82 {offsets = [0, 0], sizes = [8, 944], strides = [1, 1]} : vector<8x1024xf32> to vector<8x944xf32>
    %84 = vector.extract_strided_slice %82 {offsets = [0, 1], sizes = [8, 944], strides = [1, 1]} : vector<8x1024xf32> to vector<8x944xf32>
    %85 = arith.maximumf %83, %84 : vector<8x944xf32>
    %86 = vector.extract_strided_slice %85 {offsets = [0, 0], sizes = [8, 912], strides = [1, 1]} : vector<8x944xf32> to vector<8x912xf32>
    %87 = vector.extract_strided_slice %85 {offsets = [0, 32], sizes = [8, 912], strides = [1, 1]} : vector<8x944xf32> to vector<8x912xf32>
    %88 = arith.maximumf %86, %87 : vector<8x912xf32>
    %89 = vector.extract_strided_slice %88 {offsets = [0, 0], sizes = [8, 640], strides = [1, 1]} : vector<8x912xf32> to vector<8x640xf32>
    %c0_87 = arith.constant 0 : index
    %c0_88 = arith.constant 0 : index
    %90 = vector.load %arg14[%c0_87, %c0_88] : memref<200x640xf32, #tpu.memory_space<vmem>>, vector<8x640xf32>
    tpu.vector_store %arg14[%c0_87, %c0_88], %89 {strides = array<i32>} : memref<200x640xf32, #tpu.memory_space<vmem>>, vector<8x640xf32>,
    %91 = vector.extract_strided_slice %88 {offsets = [0, 2], sizes = [8, 640], strides = [1, 1]} : vector<8x912xf32> to vector<8x640xf32>
    %c8_89 = arith.constant 8 : index
    %c0_90 = arith.constant 0 : index
    %92 = vector.load %arg14[%c8_89, %c0_90] : memref<200x640xf32, #tpu.memory_space<vmem>>, vector<8x640xf32>
    tpu.vector_store %arg14[%c8_89, %c0_90], %91 {strides = array<i32>} : memref<200x640xf32, #tpu.memory_space<vmem>>, vector<8x640xf32>,
    %93 = vector.extract_strided_slice %88 {offsets = [0, 4], sizes = [8, 640], strides = [1, 1]} : vector<8x912xf32> to vector<8x640xf32>
    %c16_91 = arith.constant 16 : index
    %c0_92 = arith.constant 0 : index
    %94 = vector.load %arg14[%c16_91, %c0_92] : memref<200x640xf32, #tpu.memory_space<vmem>>, vector<8x640xf32>
    tpu.vector_store %arg14[%c16_91, %c0_92], %93 {strides = array<i32>} : memref<200x640xf32, #tpu.memory_space<vmem>>, vector<8x640xf32>,
    %95 = vector.extract_strided_slice %88 {offsets = [0, 6], sizes = [8, 640], strides = [1, 1]} : vector<8x912xf32> to vector<8x640xf32>
    %c24_93 = arith.constant 24 : index
    %c0_94 = arith.constant 0 : index
    %96 = vector.load %arg14[%c24_93, %c0_94] : memref<200x640xf32, #tpu.memory_space<vmem>>, vector<8x640xf32>
    tpu.vector_store %arg14[%c24_93, %c0_94], %95 {strides = array<i32>} : memref<200x640xf32, #tpu.memory_space<vmem>>, vector<8x640xf32>,
    %97 = vector.extract_strided_slice %88 {offsets = [0, 8], sizes = [8, 640], strides = [1, 1]} : vector<8x912xf32> to vector<8x640xf32>
    %c32_95 = arith.constant 32 : index
    %c0_96 = arith.constant 0 : index
    %98 = vector.load %arg14[%c32_95, %c0_96] : memref<200x640xf32, #tpu.memory_space<vmem>>, vector<8x640xf32>
    tpu.vector_store %arg14[%c32_95, %c0_96], %97 {strides = array<i32>} : memref<200x640xf32, #tpu.memory_space<vmem>>, vector<8x640xf32>,
    %99 = vector.extract_strided_slice %88 {offsets = [0, 64], sizes = [8, 640], strides = [1, 1]} : vector<8x912xf32> to vector<8x640xf32>
    %c40_97 = arith.constant 40 : index
    %c0_98 = arith.constant 0 : index
    %100 = vector.load %arg14[%c40_97, %c0_98] : memref<200x640xf32, #tpu.memory_space<vmem>>, vector<8x640xf32>
    tpu.vector_store %arg14[%c40_97, %c0_98], %99 {strides = array<i32>} : memref<200x640xf32, #tpu.memory_space<vmem>>, vector<8x640xf32>,
    %101 = vector.extract_strided_slice %88 {offsets = [0, 66], sizes = [8, 640], strides = [1, 1]} : vector<8x912xf32> to vector<8x640xf32>
    %c48_99 = arith.constant 48 : index
    %c0_100 = arith.constant 0 : index
    %102 = vector.load %arg14[%c48_99, %c0_100] : memref<200x640xf32, #tpu.memory_space<vmem>>, vector<8x640xf32>
    tpu.vector_store %arg14[%c48_99, %c0_100], %101 {strides = array<i32>} : memref<200x640xf32, #tpu.memory_space<vmem>>, vector<8x640xf32>,
    %103 = vector.extract_strided_slice %88 {offsets = [0, 68], sizes = [8, 640], strides = [1, 1]} : vector<8x912xf32> to vector<8x640xf32>
    %c56_101 = arith.constant 56 : index
    %c0_102 = arith.constant 0 : index
    %104 = vector.load %arg14[%c56_101, %c0_102] : memref<200x640xf32, #tpu.memory_space<vmem>>, vector<8x640xf32>
    tpu.vector_store %arg14[%c56_101, %c0_102], %103 {strides = array<i32>} : memref<200x640xf32, #tpu.memory_space<vmem>>, vector<8x640xf32>,
    %105 = vector.extract_strided_slice %88 {offsets = [0, 70], sizes = [8, 640], strides = [1, 1]} : vector<8x912xf32> to vector<8x640xf32>
    %c64_103 = arith.constant 64 : index
    %c0_104 = arith.constant 0 : index
    %106 = vector.load %arg14[%c64_103, %c0_104] : memref<200x640xf32, #tpu.memory_space<vmem>>, vector<8x640xf32>
    tpu.vector_store %arg14[%c64_103, %c0_104], %105 {strides = array<i32>} : memref<200x640xf32, #tpu.memory_space<vmem>>, vector<8x640xf32>,
    %107 = vector.extract_strided_slice %88 {offsets = [0, 72], sizes = [8, 640], strides = [1, 1]} : vector<8x912xf32> to vector<8x640xf32>
    %c72_105 = arith.constant 72 : index
    %c0_106 = arith.constant 0 : index
    %108 = vector.load %arg14[%c72_105, %c0_106] : memref<200x640xf32, #tpu.memory_space<vmem>>, vector<8x640xf32>
    tpu.vector_store %arg14[%c72_105, %c0_106], %107 {strides = array<i32>} : memref<200x640xf32, #tpu.memory_space<vmem>>, vector<8x640xf32>,
    %109 = vector.extract_strided_slice %88 {offsets = [0, 128], sizes = [8, 640], strides = [1, 1]} : vector<8x912xf32> to vector<8x640xf32>
    %c80_107 = arith.constant 80 : index
    %c0_108 = arith.constant 0 : index
    %110 = vector.load %arg14[%c80_107, %c0_108] : memref<200x640xf32, #tpu.memory_space<vmem>>, vector<8x640xf32>
    tpu.vector_store %arg14[%c80_107, %c0_108], %109 {strides = array<i32>} : memref<200x640xf32, #tpu.memory_space<vmem>>, vector<8x640xf32>,
    %111 = vector.extract_strided_slice %88 {offsets = [0, 130], sizes = [8, 640], strides = [1, 1]} : vector<8x912xf32> to vector<8x640xf32>
    %c88_109 = arith.constant 88 : index
    %c0_110 = arith.constant 0 : index
    %112 = vector.load %arg14[%c88_109, %c0_110] : memref<200x640xf32, #tpu.memory_space<vmem>>, vector<8x640xf32>
    tpu.vector_store %arg14[%c88_109, %c0_110], %111 {strides = array<i32>} : memref<200x640xf32, #tpu.memory_space<vmem>>, vector<8x640xf32>,
    %113 = vector.extract_strided_slice %88 {offsets = [0, 132], sizes = [8, 640], strides = [1, 1]} : vector<8x912xf32> to vector<8x640xf32>
    %c96_111 = arith.constant 96 : index
    %c0_112 = arith.constant 0 : index
    %114 = vector.load %arg14[%c96_111, %c0_112] : memref<200x640xf32, #tpu.memory_space<vmem>>, vector<8x640xf32>
    tpu.vector_store %arg14[%c96_111, %c0_112], %113 {strides = array<i32>} : memref<200x640xf32, #tpu.memory_space<vmem>>, vector<8x640xf32>,
    %115 = vector.extract_strided_slice %88 {offsets = [0, 134], sizes = [8, 640], strides = [1, 1]} : vector<8x912xf32> to vector<8x640xf32>
    %c104_113 = arith.constant 104 : index
    %c0_114 = arith.constant 0 : index
    %116 = vector.load %arg14[%c104_113, %c0_114] : memref<200x640xf32, #tpu.memory_space<vmem>>, vector<8x640xf32>
    tpu.vector_store %arg14[%c104_113, %c0_114], %115 {strides = array<i32>} : memref<200x640xf32, #tpu.memory_space<vmem>>, vector<8x640xf32>,
    %117 = vector.extract_strided_slice %88 {offsets = [0, 136], sizes = [8, 640], strides = [1, 1]} : vector<8x912xf32> to vector<8x640xf32>
    %c112_115 = arith.constant 112 : index
    %c0_116 = arith.constant 0 : index
    %118 = vector.load %arg14[%c112_115, %c0_116] : memref<200x640xf32, #tpu.memory_space<vmem>>, vector<8x640xf32>
    tpu.vector_store %arg14[%c112_115, %c0_116], %117 {strides = array<i32>} : memref<200x640xf32, #tpu.memory_space<vmem>>, vector<8x640xf32>,
    %119 = vector.extract_strided_slice %88 {offsets = [0, 192], sizes = [8, 640], strides = [1, 1]} : vector<8x912xf32> to vector<8x640xf32>
    %c120_117 = arith.constant 120 : index
    %c0_118 = arith.constant 0 : index
    %120 = vector.load %arg14[%c120_117, %c0_118] : memref<200x640xf32, #tpu.memory_space<vmem>>, vector<8x640xf32>
    tpu.vector_store %arg14[%c120_117, %c0_118], %119 {strides = array<i32>} : memref<200x640xf32, #tpu.memory_space<vmem>>, vector<8x640xf32>,
    %121 = vector.extract_strided_slice %88 {offsets = [0, 194], sizes = [8, 640], strides = [1, 1]} : vector<8x912xf32> to vector<8x640xf32>
    %c128_119 = arith.constant 128 : index
    %c0_120 = arith.constant 0 : index
    %122 = vector.load %arg14[%c128_119, %c0_120] : memref<200x640xf32, #tpu.memory_space<vmem>>, vector<8x640xf32>
    tpu.vector_store %arg14[%c128_119, %c0_120], %121 {strides = array<i32>} : memref<200x640xf32, #tpu.memory_space<vmem>>, vector<8x640xf32>,
    %123 = vector.extract_strided_slice %88 {offsets = [0, 196], sizes = [8, 640], strides = [1, 1]} : vector<8x912xf32> to vector<8x640xf32>
    %c136_121 = arith.constant 136 : index
    %c0_122 = arith.constant 0 : index
    %124 = vector.load %arg14[%c136_121, %c0_122] : memref<200x640xf32, #tpu.memory_space<vmem>>, vector<8x640xf32>
    tpu.vector_store %arg14[%c136_121, %c0_122], %123 {strides = array<i32>} : memref<200x640xf32, #tpu.memory_space<vmem>>, vector<8x640xf32>,
    %125 = vector.extract_strided_slice %88 {offsets = [0, 198], sizes = [8, 640], strides = [1, 1]} : vector<8x912xf32> to vector<8x640xf32>
    %c144_123 = arith.constant 144 : index
    %c0_124 = arith.constant 0 : index
    %126 = vector.load %arg14[%c144_123, %c0_124] : memref<200x640xf32, #tpu.memory_space<vmem>>, vector<8x640xf32>
    tpu.vector_store %arg14[%c144_123, %c0_124], %125 {strides = array<i32>} : memref<200x640xf32, #tpu.memory_space<vmem>>, vector<8x640xf32>,
    %127 = vector.extract_strided_slice %88 {offsets = [0, 200], sizes = [8, 640], strides = [1, 1]} : vector<8x912xf32> to vector<8x640xf32>
    %c152_125 = arith.constant 152 : index
    %c0_126 = arith.constant 0 : index
    %128 = vector.load %arg14[%c152_125, %c0_126] : memref<200x640xf32, #tpu.memory_space<vmem>>, vector<8x640xf32>
    tpu.vector_store %arg14[%c152_125, %c0_126], %127 {strides = array<i32>} : memref<200x640xf32, #tpu.memory_space<vmem>>, vector<8x640xf32>,
    %129 = vector.extract_strided_slice %88 {offsets = [0, 256], sizes = [8, 640], strides = [1, 1]} : vector<8x912xf32> to vector<8x640xf32>
    %c160_127 = arith.constant 160 : index
    %c0_128 = arith.constant 0 : index
    %130 = vector.load %arg14[%c160_127, %c0_128] : memref<200x640xf32, #tpu.memory_space<vmem>>, vector<8x640xf32>
    tpu.vector_store %arg14[%c160_127, %c0_128], %129 {strides = array<i32>} : memref<200x640xf32, #tpu.memory_space<vmem>>, vector<8x640xf32>,
    %131 = vector.extract_strided_slice %88 {offsets = [0, 258], sizes = [8, 640], strides = [1, 1]} : vector<8x912xf32> to vector<8x640xf32>
    %c168_129 = arith.constant 168 : index
    %c0_130 = arith.constant 0 : index
    %132 = vector.load %arg14[%c168_129, %c0_130] : memref<200x640xf32, #tpu.memory_space<vmem>>, vector<8x640xf32>
    tpu.vector_store %arg14[%c168_129, %c0_130], %131 {strides = array<i32>} : memref<200x640xf32, #tpu.memory_space<vmem>>, vector<8x640xf32>,
    %133 = vector.extract_strided_slice %88 {offsets = [0, 260], sizes = [8, 640], strides = [1, 1]} : vector<8x912xf32> to vector<8x640xf32>
    %c176_131 = arith.constant 176 : index
    %c0_132 = arith.constant 0 : index
    %134 = vector.load %arg14[%c176_131, %c0_132] : memref<200x640xf32, #tpu.memory_space<vmem>>, vector<8x640xf32>
    tpu.vector_store %arg14[%c176_131, %c0_132], %133 {strides = array<i32>} : memref<200x640xf32, #tpu.memory_space<vmem>>, vector<8x640xf32>,
    %135 = vector.extract_strided_slice %88 {offsets = [0, 262], sizes = [8, 640], strides = [1, 1]} : vector<8x912xf32> to vector<8x640xf32>
    %c184_133 = arith.constant 184 : index
    %c0_134 = arith.constant 0 : index
    %136 = vector.load %arg14[%c184_133, %c0_134] : memref<200x640xf32, #tpu.memory_space<vmem>>, vector<8x640xf32>
    tpu.vector_store %arg14[%c184_133, %c0_134], %135 {strides = array<i32>} : memref<200x640xf32, #tpu.memory_space<vmem>>, vector<8x640xf32>,
    %137 = vector.extract_strided_slice %88 {offsets = [0, 264], sizes = [8, 640], strides = [1, 1]} : vector<8x912xf32> to vector<8x640xf32>
    %c192_135 = arith.constant 192 : index
    %c0_136 = arith.constant 0 : index
    %138 = vector.load %arg14[%c192_135, %c0_136] : memref<200x640xf32, #tpu.memory_space<vmem>>, vector<8x640xf32>
    tpu.vector_store %arg14[%c192_135, %c0_136], %137 {strides = array<i32>} : memref<200x640xf32, #tpu.memory_space<vmem>>, vector<8x640xf32>,
    %c0_137 = arith.constant 0 : index
    %c0_138 = arith.constant 0 : index
    %139 = vector.load %arg4[%c0_137, %c0_138] : memref<16x200xf32, #tpu.memory_space<vmem>>, vector<16x200xf32>
    %c0_139 = arith.constant 0 : index
    %c0_140 = arith.constant 0 : index
    %140 = vector.load %arg14[%c0_139, %c0_140] : memref<200x640xf32, #tpu.memory_space<vmem>>, vector<200x640xf32>
    %cst_141 = arith.constant dense<0.000000e+00> : vector<16x640xf32>
    %141 = tpu.matmul %139, %140, %cst_141 {dimension_numbers = #tpu.dot_dimension_numbers<[1], [0], [0], [1], [0, 0, 1, 1], [], []>} : vector<16x200xf32>, vector<200x640xf32>, vector<16x640xf32> -> vector<16x640xf32>
    %c0_142 = arith.constant 0 : index
    %c0_143 = arith.constant 0 : index
    %142 = vector.load %arg5[%c0_142, %c0_143] : memref<16x1xf32, #tpu.memory_space<vmem>>, vector<16x1xf32>
    %143 = vector.broadcast %142 : vector<16x1xf32> to vector<16x640xf32>
    %144 = arith.addf %141, %143 : vector<16x640xf32>
    %cst_144 = arith.constant 0.000000e+00 : f32
    %145 = vector.broadcast %cst_144 : f32 to vector<16x640xf32>
    %146 = arith.maximumf %144, %145 : vector<16x640xf32>
    %147 = vector.extract_strided_slice %146 {offsets = [0, 0], sizes = [16, 600], strides = [1, 1]} : vector<16x640xf32> to vector<16x600xf32>
    %148 = vector.extract_strided_slice %146 {offsets = [0, 2], sizes = [16, 600], strides = [1, 1]} : vector<16x640xf32> to vector<16x600xf32>
    %149 = arith.maximumf %147, %148 : vector<16x600xf32>
    %150 = vector.extract_strided_slice %149 {offsets = [0, 0], sizes = [16, 536], strides = [1, 1]} : vector<16x600xf32> to vector<16x536xf32>
    %151 = vector.extract_strided_slice %149 {offsets = [0, 64], sizes = [16, 536], strides = [1, 1]} : vector<16x600xf32> to vector<16x536xf32>
    %152 = arith.maximumf %150, %151 : vector<16x536xf32>
    %153 = vector.extract_strided_slice %152 {offsets = [0, 0], sizes = [16, 1], strides = [1, 1]} : vector<16x536xf32> to vector<16x1xf32>
    %c0_145 = arith.constant 0 : index
    %c0_146 = arith.constant 0 : index
    %154 = vector.load %arg15[%c0_145, %c0_146] : memref<400x1xf32, #tpu.memory_space<vmem>>, vector<16x1xf32>
    tpu.vector_store %arg15[%c0_145, %c0_146], %153 {strides = array<i32>} : memref<400x1xf32, #tpu.memory_space<vmem>>, vector<16x1xf32>,
    %155 = vector.extract_strided_slice %152 {offsets = [0, 4], sizes = [16, 1], strides = [1, 1]} : vector<16x536xf32> to vector<16x1xf32>
    %c16_147 = arith.constant 16 : index
    %c0_148 = arith.constant 0 : index
    %156 = vector.load %arg15[%c16_147, %c0_148] : memref<400x1xf32, #tpu.memory_space<vmem>>, vector<16x1xf32>
    tpu.vector_store %arg15[%c16_147, %c0_148], %155 {strides = array<i32>} : memref<400x1xf32, #tpu.memory_space<vmem>>, vector<16x1xf32>,
    %157 = vector.extract_strided_slice %152 {offsets = [0, 8], sizes = [16, 1], strides = [1, 1]} : vector<16x536xf32> to vector<16x1xf32>
    %c32_149 = arith.constant 32 : index
    %c0_150 = arith.constant 0 : index
    %158 = vector.load %arg15[%c32_149, %c0_150] : memref<400x1xf32, #tpu.memory_space<vmem>>, vector<16x1xf32>
    tpu.vector_store %arg15[%c32_149, %c0_150], %157 {strides = array<i32>} : memref<400x1xf32, #tpu.memory_space<vmem>>, vector<16x1xf32>,
    %159 = vector.extract_strided_slice %152 {offsets = [0, 12], sizes = [16, 1], strides = [1, 1]} : vector<16x536xf32> to vector<16x1xf32>
    %c48_151 = arith.constant 48 : index
    %c0_152 = arith.constant 0 : index
    %160 = vector.load %arg15[%c48_151, %c0_152] : memref<400x1xf32, #tpu.memory_space<vmem>>, vector<16x1xf32>
    tpu.vector_store %arg15[%c48_151, %c0_152], %159 {strides = array<i32>} : memref<400x1xf32, #tpu.memory_space<vmem>>, vector<16x1xf32>,
    %161 = vector.extract_strided_slice %152 {offsets = [0, 16], sizes = [16, 1], strides = [1, 1]} : vector<16x536xf32> to vector<16x1xf32>
    %c64_153 = arith.constant 64 : index
    %c0_154 = arith.constant 0 : index
    %162 = vector.load %arg15[%c64_153, %c0_154] : memref<400x1xf32, #tpu.memory_space<vmem>>, vector<16x1xf32>
    tpu.vector_store %arg15[%c64_153, %c0_154], %161 {strides = array<i32>} : memref<400x1xf32, #tpu.memory_space<vmem>>, vector<16x1xf32>,
    %163 = vector.extract_strided_slice %152 {offsets = [0, 128], sizes = [16, 1], strides = [1, 1]} : vector<16x536xf32> to vector<16x1xf32>
    %c80_155 = arith.constant 80 : index
    %c0_156 = arith.constant 0 : index
    %164 = vector.load %arg15[%c80_155, %c0_156] : memref<400x1xf32, #tpu.memory_space<vmem>>, vector<16x1xf32>
    tpu.vector_store %arg15[%c80_155, %c0_156], %163 {strides = array<i32>} : memref<400x1xf32, #tpu.memory_space<vmem>>, vector<16x1xf32>,
    %165 = vector.extract_strided_slice %152 {offsets = [0, 132], sizes = [16, 1], strides = [1, 1]} : vector<16x536xf32> to vector<16x1xf32>
    %c96_157 = arith.constant 96 : index
    %c0_158 = arith.constant 0 : index
    %166 = vector.load %arg15[%c96_157, %c0_158] : memref<400x1xf32, #tpu.memory_space<vmem>>, vector<16x1xf32>
    tpu.vector_store %arg15[%c96_157, %c0_158], %165 {strides = array<i32>} : memref<400x1xf32, #tpu.memory_space<vmem>>, vector<16x1xf32>,
    %167 = vector.extract_strided_slice %152 {offsets = [0, 136], sizes = [16, 1], strides = [1, 1]} : vector<16x536xf32> to vector<16x1xf32>
    %c112_159 = arith.constant 112 : index
    %c0_160 = arith.constant 0 : index
    %168 = vector.load %arg15[%c112_159, %c0_160] : memref<400x1xf32, #tpu.memory_space<vmem>>, vector<16x1xf32>
    tpu.vector_store %arg15[%c112_159, %c0_160], %167 {strides = array<i32>} : memref<400x1xf32, #tpu.memory_space<vmem>>, vector<16x1xf32>,
    %169 = vector.extract_strided_slice %152 {offsets = [0, 140], sizes = [16, 1], strides = [1, 1]} : vector<16x536xf32> to vector<16x1xf32>
    %c128_161 = arith.constant 128 : index
    %c0_162 = arith.constant 0 : index
    %170 = vector.load %arg15[%c128_161, %c0_162] : memref<400x1xf32, #tpu.memory_space<vmem>>, vector<16x1xf32>
    tpu.vector_store %arg15[%c128_161, %c0_162], %169 {strides = array<i32>} : memref<400x1xf32, #tpu.memory_space<vmem>>, vector<16x1xf32>,
    %171 = vector.extract_strided_slice %152 {offsets = [0, 144], sizes = [16, 1], strides = [1, 1]} : vector<16x536xf32> to vector<16x1xf32>
    %c144_163 = arith.constant 144 : index
    %c0_164 = arith.constant 0 : index
    %172 = vector.load %arg15[%c144_163, %c0_164] : memref<400x1xf32, #tpu.memory_space<vmem>>, vector<16x1xf32>
    tpu.vector_store %arg15[%c144_163, %c0_164], %171 {strides = array<i32>} : memref<400x1xf32, #tpu.memory_space<vmem>>, vector<16x1xf32>,
    %173 = vector.extract_strided_slice %152 {offsets = [0, 256], sizes = [16, 1], strides = [1, 1]} : vector<16x536xf32> to vector<16x1xf32>
    %c160_165 = arith.constant 160 : index
    %c0_166 = arith.constant 0 : index
    %174 = vector.load %arg15[%c160_165, %c0_166] : memref<400x1xf32, #tpu.memory_space<vmem>>, vector<16x1xf32>
    tpu.vector_store %arg15[%c160_165, %c0_166], %173 {strides = array<i32>} : memref<400x1xf32, #tpu.memory_space<vmem>>, vector<16x1xf32>,
    %175 = vector.extract_strided_slice %152 {offsets = [0, 260], sizes = [16, 1], strides = [1, 1]} : vector<16x536xf32> to vector<16x1xf32>
    %c176_167 = arith.constant 176 : index
    %c0_168 = arith.constant 0 : index
    %176 = vector.load %arg15[%c176_167, %c0_168] : memref<400x1xf32, #tpu.memory_space<vmem>>, vector<16x1xf32>
    tpu.vector_store %arg15[%c176_167, %c0_168], %175 {strides = array<i32>} : memref<400x1xf32, #tpu.memory_space<vmem>>, vector<16x1xf32>,
    %177 = vector.extract_strided_slice %152 {offsets = [0, 264], sizes = [16, 1], strides = [1, 1]} : vector<16x536xf32> to vector<16x1xf32>
    %c192_169 = arith.constant 192 : index
    %c0_170 = arith.constant 0 : index
    %178 = vector.load %arg15[%c192_169, %c0_170] : memref<400x1xf32, #tpu.memory_space<vmem>>, vector<16x1xf32>
    tpu.vector_store %arg15[%c192_169, %c0_170], %177 {strides = array<i32>} : memref<400x1xf32, #tpu.memory_space<vmem>>, vector<16x1xf32>,
    %179 = vector.extract_strided_slice %152 {offsets = [0, 268], sizes = [16, 1], strides = [1, 1]} : vector<16x536xf32> to vector<16x1xf32>
    %c208 = arith.constant 208 : index
    %c0_171 = arith.constant 0 : index
    %180 = vector.load %arg15[%c208, %c0_171] : memref<400x1xf32, #tpu.memory_space<vmem>>, vector<16x1xf32>
    tpu.vector_store %arg15[%c208, %c0_171], %179 {strides = array<i32>} : memref<400x1xf32, #tpu.memory_space<vmem>>, vector<16x1xf32>,
    %181 = vector.extract_strided_slice %152 {offsets = [0, 272], sizes = [16, 1], strides = [1, 1]} : vector<16x536xf32> to vector<16x1xf32>
    %c224 = arith.constant 224 : index
    %c0_172 = arith.constant 0 : index
    %182 = vector.load %arg15[%c224, %c0_172] : memref<400x1xf32, #tpu.memory_space<vmem>>, vector<16x1xf32>
    tpu.vector_store %arg15[%c224, %c0_172], %181 {strides = array<i32>} : memref<400x1xf32, #tpu.memory_space<vmem>>, vector<16x1xf32>,
    %183 = vector.extract_strided_slice %152 {offsets = [0, 384], sizes = [16, 1], strides = [1, 1]} : vector<16x536xf32> to vector<16x1xf32>
    %c240 = arith.constant 240 : index
    %c0_173 = arith.constant 0 : index
    %184 = vector.load %arg15[%c240, %c0_173] : memref<400x1xf32, #tpu.memory_space<vmem>>, vector<16x1xf32>
    tpu.vector_store %arg15[%c240, %c0_173], %183 {strides = array<i32>} : memref<400x1xf32, #tpu.memory_space<vmem>>, vector<16x1xf32>,
    %185 = vector.extract_strided_slice %152 {offsets = [0, 388], sizes = [16, 1], strides = [1, 1]} : vector<16x536xf32> to vector<16x1xf32>
    %c256 = arith.constant 256 : index
    %c0_174 = arith.constant 0 : index
    %186 = vector.load %arg15[%c256, %c0_174] : memref<400x1xf32, #tpu.memory_space<vmem>>, vector<16x1xf32>
    tpu.vector_store %arg15[%c256, %c0_174], %185 {strides = array<i32>} : memref<400x1xf32, #tpu.memory_space<vmem>>, vector<16x1xf32>,
    %187 = vector.extract_strided_slice %152 {offsets = [0, 392], sizes = [16, 1], strides = [1, 1]} : vector<16x536xf32> to vector<16x1xf32>
    %c272 = arith.constant 272 : index
    %c0_175 = arith.constant 0 : index
    %188 = vector.load %arg15[%c272, %c0_175] : memref<400x1xf32, #tpu.memory_space<vmem>>, vector<16x1xf32>
    tpu.vector_store %arg15[%c272, %c0_175], %187 {strides = array<i32>} : memref<400x1xf32, #tpu.memory_space<vmem>>, vector<16x1xf32>,
    %189 = vector.extract_strided_slice %152 {offsets = [0, 396], sizes = [16, 1], strides = [1, 1]} : vector<16x536xf32> to vector<16x1xf32>
    %c288 = arith.constant 288 : index
    %c0_176 = arith.constant 0 : index
    %190 = vector.load %arg15[%c288, %c0_176] : memref<400x1xf32, #tpu.memory_space<vmem>>, vector<16x1xf32>
    tpu.vector_store %arg15[%c288, %c0_176], %189 {strides = array<i32>} : memref<400x1xf32, #tpu.memory_space<vmem>>, vector<16x1xf32>,
    %191 = vector.extract_strided_slice %152 {offsets = [0, 400], sizes = [16, 1], strides = [1, 1]} : vector<16x536xf32> to vector<16x1xf32>
    %c304 = arith.constant 304 : index
    %c0_177 = arith.constant 0 : index
    %192 = vector.load %arg15[%c304, %c0_177] : memref<400x1xf32, #tpu.memory_space<vmem>>, vector<16x1xf32>
    tpu.vector_store %arg15[%c304, %c0_177], %191 {strides = array<i32>} : memref<400x1xf32, #tpu.memory_space<vmem>>, vector<16x1xf32>,
    %193 = vector.extract_strided_slice %152 {offsets = [0, 512], sizes = [16, 1], strides = [1, 1]} : vector<16x536xf32> to vector<16x1xf32>
    %c320 = arith.constant 320 : index
    %c0_178 = arith.constant 0 : index
    %194 = vector.load %arg15[%c320, %c0_178] : memref<400x1xf32, #tpu.memory_space<vmem>>, vector<16x1xf32>
    tpu.vector_store %arg15[%c320, %c0_178], %193 {strides = array<i32>} : memref<400x1xf32, #tpu.memory_space<vmem>>, vector<16x1xf32>,
    %195 = vector.extract_strided_slice %152 {offsets = [0, 516], sizes = [16, 1], strides = [1, 1]} : vector<16x536xf32> to vector<16x1xf32>
    %c336 = arith.constant 336 : index
    %c0_179 = arith.constant 0 : index
    %196 = vector.load %arg15[%c336, %c0_179] : memref<400x1xf32, #tpu.memory_space<vmem>>, vector<16x1xf32>
    tpu.vector_store %arg15[%c336, %c0_179], %195 {strides = array<i32>} : memref<400x1xf32, #tpu.memory_space<vmem>>, vector<16x1xf32>,
    %197 = vector.extract_strided_slice %152 {offsets = [0, 520], sizes = [16, 1], strides = [1, 1]} : vector<16x536xf32> to vector<16x1xf32>
    %c352 = arith.constant 352 : index
    %c0_180 = arith.constant 0 : index
    %198 = vector.load %arg15[%c352, %c0_180] : memref<400x1xf32, #tpu.memory_space<vmem>>, vector<16x1xf32>
    tpu.vector_store %arg15[%c352, %c0_180], %197 {strides = array<i32>} : memref<400x1xf32, #tpu.memory_space<vmem>>, vector<16x1xf32>,
    %199 = vector.extract_strided_slice %152 {offsets = [0, 524], sizes = [16, 1], strides = [1, 1]} : vector<16x536xf32> to vector<16x1xf32>
    %c368 = arith.constant 368 : index
    %c0_181 = arith.constant 0 : index
    %200 = vector.load %arg15[%c368, %c0_181] : memref<400x1xf32, #tpu.memory_space<vmem>>, vector<16x1xf32>
    tpu.vector_store %arg15[%c368, %c0_181], %199 {strides = array<i32>} : memref<400x1xf32, #tpu.memory_space<vmem>>, vector<16x1xf32>,
    %201 = vector.extract_strided_slice %152 {offsets = [0, 528], sizes = [16, 1], strides = [1, 1]} : vector<16x536xf32> to vector<16x1xf32>
    %c384 = arith.constant 384 : index
    %c0_182 = arith.constant 0 : index
    %202 = vector.load %arg15[%c384, %c0_182] : memref<400x1xf32, #tpu.memory_space<vmem>>, vector<16x1xf32>
    tpu.vector_store %arg15[%c384, %c0_182], %201 {strides = array<i32>} : memref<400x1xf32, #tpu.memory_space<vmem>>, vector<16x1xf32>,
    %c0_183 = arith.constant 0 : index
    %c0_184 = arith.constant 0 : index
    %203 = vector.load %arg6[%c0_183, %c0_184] : memref<128x400xf32, #tpu.memory_space<vmem>>, vector<128x400xf32>
    %c0_185 = arith.constant 0 : index
    %c0_186 = arith.constant 0 : index
    %204 = vector.load %arg15[%c0_185, %c0_186] : memref<400x1xf32, #tpu.memory_space<vmem>>, vector<400x1xf32>
    %cst_187 = arith.constant dense<0.000000e+00> : vector<128x1xf32>
    %205 = tpu.matmul %203, %204, %cst_187 {dimension_numbers = #tpu.dot_dimension_numbers<[1], [0], [0], [1], [0, 0, 1, 1], [], []>} : vector<128x400xf32>, vector<400x1xf32>, vector<128x1xf32> -> vector<128x1xf32>
    %c0_188 = arith.constant 0 : index
    %c0_189 = arith.constant 0 : index
    %206 = vector.load %arg7[%c0_188, %c0_189] : memref<128x1xf32, #tpu.memory_space<vmem>>, vector<128x1xf32>
    %207 = arith.addf %205, %206 : vector<128x1xf32>
    %cst_190 = arith.constant 0.000000e+00 : f32
    %208 = vector.broadcast %cst_190 : f32 to vector<128x1xf32>
    %209 = arith.maximumf %207, %208 : vector<128x1xf32>
    %c0_191 = arith.constant 0 : index
    %c0_192 = arith.constant 0 : index
    %210 = vector.load %arg8[%c0_191, %c0_192] : memref<96x128xf32, #tpu.memory_space<vmem>>, vector<96x128xf32>
    %cst_193 = arith.constant dense<0.000000e+00> : vector<96x1xf32>
    %211 = tpu.matmul %210, %209, %cst_193 {dimension_numbers = #tpu.dot_dimension_numbers<[1], [0], [0], [1], [0, 0, 1, 1], [], []>} : vector<96x128xf32>, vector<128x1xf32>, vector<96x1xf32> -> vector<96x1xf32>
    %c0_194 = arith.constant 0 : index
    %c0_195 = arith.constant 0 : index
    %212 = vector.load %arg9[%c0_194, %c0_195] : memref<96x1xf32, #tpu.memory_space<vmem>>, vector<96x1xf32>
    %213 = arith.addf %211, %212 : vector<96x1xf32>
    %cst_196 = arith.constant 0.000000e+00 : f32
    %214 = vector.broadcast %cst_196 : f32 to vector<96x1xf32>
    %215 = arith.maximumf %213, %214 : vector<96x1xf32>
    %c0_197 = arith.constant 0 : index
    %c0_198 = arith.constant 0 : index
    %216 = vector.load %arg10[%c0_197, %c0_198] : memref<16x96xf32, #tpu.memory_space<vmem>>, vector<16x96xf32>
    %cst_199 = arith.constant dense<0.000000e+00> : vector<16x1xf32>
    %217 = tpu.matmul %216, %215, %cst_199 {dimension_numbers = #tpu.dot_dimension_numbers<[1], [0], [0], [1], [0, 0, 1, 1], [], []>} : vector<16x96xf32>, vector<96x1xf32>, vector<16x1xf32> -> vector<16x1xf32>
    %c0_200 = arith.constant 0 : index
    %c0_201 = arith.constant 0 : index
    %218 = vector.load %arg11[%c0_200, %c0_201] : memref<16x1xf32, #tpu.memory_space<vmem>>, vector<16x1xf32>
    %219 = arith.addf %217, %218 : vector<16x1xf32>
    %220 = vector.shape_cast %219 : vector<16x1xf32> to vector<16x1xf32>
    %221 = vector.broadcast %220 : vector<16x1xf32> to vector<16x128xf32>
    %c0_202 = arith.constant 0 : index
    %c0_203 = arith.constant 0 : index
    %c0_204 = arith.constant 0 : index
    %222 = vector.load %arg12[%c0_202, %c0_203, %c0_204] : memref<1x16x128xf32, #tpu.memory_space<vmem>>, vector<1x16x128xf32>
    %223 = vector.shape_cast %222 : vector<1x16x128xf32> to vector<16x128xf32>
    %224 = vector.shape_cast %221 : vector<16x128xf32> to vector<1x16x128xf32>
    tpu.vector_store %arg12[%c0_202, %c0_203, %c0_204], %224 {strides = array<i32>} : memref<1x16x128xf32, #tpu.memory_space<vmem>>, vector<1x16x128xf32>,
    return
  }
  func.func @transform_0(%arg0: i32) -> (i32, i32, i32) {
    %c0_i32 = arith.constant 0 : i32
    %c0_i32_0 = arith.constant 0 : i32
    %c0_i32_1 = arith.constant 0 : i32
    return %arg0, %c0_i32, %c0_i32_0 : i32, i32, i32
  }
  func.func @transform_1(%arg0: i32) -> (i32, i32) {
    %c0_i32 = arith.constant 0 : i32
    %c0_i32_0 = arith.constant 0 : i32
    %c0_i32_1 = arith.constant 0 : i32
    return %c0_i32, %c0_i32_0 : i32, i32
  }
  func.func @transform_2(%arg0: i32) -> (i32, i32) {
    %c0_i32 = arith.constant 0 : i32
    %c0_i32_0 = arith.constant 0 : i32
    %c0_i32_1 = arith.constant 0 : i32
    return %c0_i32, %c0_i32_0 : i32, i32
  }
  func.func @transform_3(%arg0: i32) -> (i32, i32) {
    %c0_i32 = arith.constant 0 : i32
    %c0_i32_0 = arith.constant 0 : i32
    %c0_i32_1 = arith.constant 0 : i32
    return %c0_i32, %c0_i32_0 : i32, i32
  }
  func.func @transform_4(%arg0: i32) -> (i32, i32) {
    %c0_i32 = arith.constant 0 : i32
    %c0_i32_0 = arith.constant 0 : i32
    %c0_i32_1 = arith.constant 0 : i32
    return %c0_i32, %c0_i32_0 : i32, i32
  }
  func.func @transform_5(%arg0: i32) -> (i32, i32) {
    %c0_i32 = arith.constant 0 : i32
    %c0_i32_0 = arith.constant 0 : i32
    %c0_i32_1 = arith.constant 0 : i32
    return %c0_i32, %c0_i32_0 : i32, i32
  }
  func.func @transform_6(%arg0: i32) -> (i32, i32) {
    %c0_i32 = arith.constant 0 : i32
    %c0_i32_0 = arith.constant 0 : i32
    %c0_i32_1 = arith.constant 0 : i32
    return %c0_i32, %c0_i32_0 : i32, i32
  }
  func.func @transform_7(%arg0: i32) -> (i32, i32) {
    %c0_i32 = arith.constant 0 : i32
    %c0_i32_0 = arith.constant 0 : i32
    %c0_i32_1 = arith.constant 0 : i32
    return %c0_i32, %c0_i32_0 : i32, i32
  }
  func.func @transform_8(%arg0: i32) -> (i32, i32) {
    %c0_i32 = arith.constant 0 : i32
    %c0_i32_0 = arith.constant 0 : i32
    %c0_i32_1 = arith.constant 0 : i32
    return %c0_i32, %c0_i32_0 : i32, i32
  }
  func.func @transform_9(%arg0: i32) -> (i32, i32) {
    %c0_i32 = arith.constant 0 : i32
    %c0_i32_0 = arith.constant 0 : i32
    %c0_i32_1 = arith.constant 0 : i32
    return %c0_i32, %c0_i32_0 : i32, i32
  }
  func.func @transform_10(%arg0: i32) -> (i32, i32) {
    %c0_i32 = arith.constant 0 : i32
    %c0_i32_0 = arith.constant 0 : i32
    %c0_i32_1 = arith.constant 0 : i32
    return %c0_i32, %c0_i32_0 : i32, i32
  }
  func.func @transform_11(%arg0: i32) -> (i32, i32, i32) {
    %c0_i32 = arith.constant 0 : i32
    %c0_i32_0 = arith.constant 0 : i32
    %c0_i32_1 = arith.constant 0 : i32
    return %arg0, %c0_i32, %c0_i32_0 : i32, i32, i32
  }
}

</mosaic_0001>

<llo_original>
// kernel: lenet_forward.1
$region0: #{lenet_forward.1}
  #allocation0 [shape = 'u32[]', space=smem, size = 0x4, offset = 0x4, fixed_abs, tag = 'smem constant byte address 0x4 - core index']
  #allocation1 [shape = 'u32[144,128]{1,0:T(1,128)}', space=vmem, size = 0x12000, scoped, tag = 'internal scratch']
  #allocation2 [shape = 'f32[200,1024]{1,0:T(8,128)}', space=vmem, size = 0xc8000, scoped, tag = 'scratch operand']
  #allocation3 [shape = 'f32[200,640]{1,0:T(8,128)}', space=vmem, size = 0x7d000, scoped, tag = 'scratch operand']
  #allocation4 [shape = 'f32[400,1]{1,0:T(8,128)}', space=vmem, size = 0x32000, scoped, tag = 'scratch operand']
  %s0 = inlined_call_operand.vmem [shape: f32[2,8,1280], index: 0, kind: input, shape index: {}]
  %s1 = inlined_call_operand.vmem [shape: f32[8,200], index: 1, kind: input, shape index: {}]
  %s2 = inlined_call_operand.vmem [shape: f32[8,1], index: 2, kind: input, shape index: {}]
  %s3 = inlined_call_operand.vmem [shape: f32[16,200], index: 3, kind: input, shape index: {}]
  %s4 = inlined_call_operand.vmem [shape: f32[16,1], index: 4, kind: input, shape index: {}]
  %s5 = inlined_call_operand.vmem [shape: f32[128,400], index: 5, kind: input, shape index: {}]
  %s6 = inlined_call_operand.vmem [shape: f32[128,1], index: 6, kind: input, shape index: {}]
  %s7 = inlined_call_operand.vmem [shape: f32[96,128], index: 7, kind: input, shape index: {}]
  %s8 = inlined_call_operand.vmem [shape: f32[96,1], index: 8, kind: input, shape index: {}]
  %s9 = inlined_call_operand.vmem [shape: f32[16,96], index: 9, kind: input, shape index: {}]
  %s10 = inlined_call_operand.vmem [shape: f32[16,1], index: 10, kind: input, shape index: {}]
  %s11 = inlined_call_operand.vmem [shape: f32[2,16,128], index: 11, kind: output, shape index: {}]
  %s12 = sld [smem:[#allocation0]]
  $region77: #{lenet_forward.1} parent=0
    _
  %s14 = ssub.s32 1, %s12
  %s15 = scalar_select 0, %s14, %s12
  loop: start=0, step=1, limit=4
  $region2: #{lenet_forward.1} parent=0 // loop_pre_header
    _
  $region3: #{lenet_forward.1} parent=0 // loop_header
    %s17 = sphi 0, %s21
    %p18 = scmp.ge.s32.totalorder %s17, 4
    %s27 = sphi 0, %s29
    %s30 = sphi 0, %s27
    %s31 = sphi 0, %s30
    %s47 = sphi 0, %s31
    %s51 = sphi 0, %s51
    %s53 = sphi 0, %s51
    %s54 = sphi 0, %s53
    %s68 = sphi 0, %s54
    %s72 = sphi 0, %s72
    %s74 = sphi 0, %s72
    %s75 = sphi 0, %s74
    %s89 = sphi 0, %s75
    %s93 = sphi 0, %s93
    %s95 = sphi 0, %s93
    %s96 = sphi 0, %s95
    %s110 = sphi 0, %s96
    %s114 = sphi 0, %s114
    %s116 = sphi 0, %s114
    %s117 = sphi 0, %s116
    %s131 = sphi 0, %s117
    %s135 = sphi 0, %s135
    %s137 = sphi 0, %s135
    %s138 = sphi 0, %s137
    %s152 = sphi 0, %s138
    %s156 = sphi 0, %s156
    %s158 = sphi 0, %s156
    %s159 = sphi 0, %s158
    %s173 = sphi 0, %s159
    %s177 = sphi 0, %s177
    %s179 = sphi 0, %s177
    %s180 = sphi 0, %s179
    %s194 = sphi 0, %s180
    %s198 = sphi 0, %s198
    %s200 = sphi 0, %s198
    %s201 = sphi 0, %s200
    %s215 = sphi 0, %s201
    %s219 = sphi 0, %s219
    %s221 = sphi 0, %s219
    %s222 = sphi 0, %s221
    %s236 = sphi 0, %s222
    %s240 = sphi 0, %s240
    %s242 = sphi 0, %s240
    %s243 = sphi 0, %s242
    %s257 = sphi 0, %s243
    %s263 = sphi 0, %s265
    %s266 = sphi 0, %s263
    %s267 = sphi 0, %s266
    %s283 = sphi 0, %s267
  $region4: #{lenet_forward.1} parent=0 // loop_header_branch
    %20 = sbr.rel (%p18) target = $region8
  $region5: #{lenet_forward.1} parent=0 // loop_body
    %s22 = ssub.s32 %s17, 1
    %s23 = ssub.s32 %s17, 2
    %s24 = sadd.s32 %s17, 1
    %s25 = ssub.s32 %s17, %s24
    %p26 = scmp.eq.s32.totalorder %s25, 0
    %s28 = sadd.s32 %s27, 1
    %s29 = scalar_select %p26, %s27, %s28
    %p32 = pneg %p26
    %p33 = scmp.eq.s32.totalorder %s17, 1
    %p34 = por %p32, %p33
    %p35 = scmp.ne.s32.totalorder %s27, %s30
    %p36 = scmp.eq.s32.totalorder %s17, 0
    %p37 = por %p35, %p36
    %p38 = scmp.ne.s32.totalorder %s27, %s30
    %p39 = scmp.eq.s32.totalorder %s22, 1
    %p40 = por %p38, %p39
    %p41 = scmp.ne.s32.totalorder %s30, %s31
    %p42 = scmp.eq.s32.totalorder %s22, 0
    %p43 = por %p41, %p42
    %p44 = scmp.ne.s32.totalorder %s30, %s31
    %p45 = scmp.eq.s32.totalorder %s23, 1
    %p46 = por %p44, %p45
    %p48 = scmp.ne.s32.totalorder %s31, %s47
    %p49 = scmp.eq.s32.totalorder %s23, 0
    %p50 = por %p48, %p49
    %s52 = sadd.s32 %s51, 1
    %p55 = scmp.eq.s32.totalorder %s17, 1
    %p56 = scmp.ne.s32.totalorder %s51, %s53
    %p57 = scmp.eq.s32.totalorder %s17, 0
    %p58 = por %p56, %p57
    %p59 = scmp.ne.s32.totalorder %s51, %s53
    %p60 = scmp.eq.s32.totalorder %s22, 1
    %p61 = por %p59, %p60
    %p62 = scmp.ne.s32.totalorder %s53, %s54
    %p63 = scmp.eq.s32.totalorder %s22, 0
    %p64 = por %p62, %p63
    %p65 = scmp.ne.s32.totalorder %s53, %s54
    %p66 = scmp.eq.s32.totalorder %s23, 1
    %p67 = por %p65, %p66
    %p69 = scmp.ne.s32.totalorder %s54, %s68
    %p70 = scmp.eq.s32.totalorder %s23, 0
    %p71 = por %p69, %p70
    %s73 = sadd.s32 %s72, 1
    %p76 = scmp.eq.s32.totalorder %s17, 1
    %p77 = scmp.ne.s32.totalorder %s72, %s74
    %p78 = scmp.eq.s32.totalorder %s17, 0
    %p79 = por %p77, %p78
    %p80 = scmp.ne.s32.totalorder %s72, %s74
    %p81 = scmp.eq.s32.totalorder %s22, 1
    %p82 = por %p80, %p81
    %p83 = scmp.ne.s32.totalorder %s74, %s75
    %p84 = scmp.eq.s32.totalorder %s22, 0
    %p85 = por %p83, %p84
    %p86 = scmp.ne.s32.totalorder %s74, %s75
    %p87 = scmp.eq.s32.totalorder %s23, 1
    %p88 = por %p86, %p87
    %p90 = scmp.ne.s32.totalorder %s75, %s89
    %p91 = scmp.eq.s32.totalorder %s23, 0
    %p92 = por %p90, %p91
    %s94 = sadd.s32 %s93, 1
    %p97 = scmp.eq.s32.totalorder %s17, 1
    %p98 = scmp.ne.s32.totalorder %s93, %s95
    %p99 = scmp.eq.s32.totalorder %s17, 0
    %p100 = por %p98, %p99
    %p101 = scmp.ne.s32.totalorder %s93, %s95
    %p102 = scmp.eq.s32.totalorder %s22, 1
    %p103 = por %p101, %p102
    %p104 = scmp.ne.s32.totalorder %s95, %s96
    %p105 = scmp.eq.s32.totalorder %s22, 0
    %p106 = por %p104, %p105
    %p107 = scmp.ne.s32.totalorder %s95, %s96
    %p108 = scmp.eq.s32.totalorder %s23, 1
    %p109 = por %p107, %p108
    %p111 = scmp.ne.s32.totalorder %s96, %s110
    %p112 = scmp.eq.s32.totalorder %s23, 0
    %p113 = por %p111, %p112
    %s115 = sadd.s32 %s114, 1
    %p118 = scmp.eq.s32.totalorder %s17, 1
    %p119 = scmp.ne.s32.totalorder %s114, %s116
    %p120 = scmp.eq.s32.totalorder %s17, 0
    %p121 = por %p119, %p120
    %p122 = scmp.ne.s32.totalorder %s114, %s116
    %p123 = scmp.eq.s32.totalorder %s22, 1
    %p124 = por %p122, %p123
    %p125 = scmp.ne.s32.totalorder %s116, %s117
    %p126 = scmp.eq.s32.totalorder %s22, 0
    %p127 = por %p125, %p126
    %p128 = scmp.ne.s32.totalorder %s116, %s117
    %p129 = scmp.eq.s32.totalorder %s23, 1
    %p130 = por %p128, %p129
    %p132 = scmp.ne.s32.totalorder %s117, %s131
    %p133 = scmp.eq.s32.totalorder %s23, 0
    %p134 = por %p132, %p133
    %s136 = sadd.s32 %s135, 1
    %p139 = scmp.eq.s32.totalorder %s17, 1
    %p140 = scmp.ne.s32.totalorder %s135, %s137
    %p141 = scmp.eq.s32.totalorder %s17, 0
    %p142 = por %p140, %p141
    %p143 = scmp.ne.s32.totalorder %s135, %s137
    %p144 = scmp.eq.s32.totalorder %s22, 1
    %p145 = por %p143, %p144
    %p146 = scmp.ne.s32.totalorder %s137, %s138
    %p147 = scmp.eq.s32.totalorder %s22, 0
    %p148 = por %p146, %p147
    %p149 = scmp.ne.s32.totalorder %s137, %s138
    %p150 = scmp.eq.s32.totalorder %s23, 1
    %p151 = por %p149, %p150
    %p153 = scmp.ne.s32.totalorder %s138, %s152
    %p154 = scmp.eq.s32.totalorder %s23, 0
    %p155 = por %p153, %p154
    %s157 = sadd.s32 %s156, 1
    %p160 = scmp.eq.s32.totalorder %s17, 1
    %p161 = scmp.ne.s32.totalorder %s156, %s158
    %p162 = scmp.eq.s32.totalorder %s17, 0
    %p163 = por %p161, %p162
    %p164 = scmp.ne.s32.totalorder %s156, %s158
    %p165 = scmp.eq.s32.totalorder %s22, 1
    %p166 = por %p164, %p165
    %p167 = scmp.ne.s32.totalorder %s158, %s159
    %p168 = scmp.eq.s32.totalorder %s22, 0
    %p169 = por %p167, %p168
    %p170 = scmp.ne.s32.totalorder %s158, %s159
    %p171 = scmp.eq.s32.totalorder %s23, 1
    %p172 = por %p170, %p171
    %p174 = scmp.ne.s32.totalorder %s159, %s173
    %p175 = scmp.eq.s32.totalorder %s23, 0
    %p176 = por %p174, %p175
    %s178 = sadd.s32 %s177, 1
    %p181 = scmp.eq.s32.totalorder %s17, 1
    %p182 = scmp.ne.s32.totalorder %s177, %s179
    %p183 = scmp.eq.s32.totalorder %s17, 0
    %p184 = por %p182, %p183
    %p185 = scmp.ne.s32.totalorder %s177, %s179
    %p186 = scmp.eq.s32.totalorder %s22, 1
    %p187 = por %p185, %p186
    %p188 = scmp.ne.s32.totalorder %s179, %s180
    %p189 = scmp.eq.s32.totalorder %s22, 0
    %p190 = por %p188, %p189
    %p191 = scmp.ne.s32.totalorder %s179, %s180
    %p192 = scmp.eq.s32.totalorder %s23, 1
    %p193 = por %p191, %p192
    %p195 = scmp.ne.s32.totalorder %s180, %s194
    %p196 = scmp.eq.s32.totalorder %s23, 0
    %p197 = por %p195, %p196
    %s199 = sadd.s32 %s198, 1
    %p202 = scmp.eq.s32.totalorder %s17, 1
    %p203 = scmp.ne.s32.totalorder %s198, %s200
    %p204 = scmp.eq.s32.totalorder %s17, 0
    %p205 = por %p203, %p204
    %p206 = scmp.ne.s32.totalorder %s198, %s200
    %p207 = scmp.eq.s32.totalorder %s22, 1
    %p208 = por %p206, %p207
    %p209 = scmp.ne.s32.totalorder %s200, %s201
    %p210 = scmp.eq.s32.totalorder %s22, 0
    %p211 = por %p209, %p210
    %p212 = scmp.ne.s32.totalorder %s200, %s201
    %p213 = scmp.eq.s32.totalorder %s23, 1
    %p214 = por %p212, %p213
    %p216 = scmp.ne.s32.totalorder %s201, %s215
    %p217 = scmp.eq.s32.totalorder %s23, 0
    %p218 = por %p216, %p217
    %s220 = sadd.s32 %s219, 1
    %p223 = scmp.eq.s32.totalorder %s17, 1
    %p224 = scmp.ne.s32.totalorder %s219, %s221
    %p225 = scmp.eq.s32.totalorder %s17, 0
    %p226 = por %p224, %p225
    %p227 = scmp.ne.s32.totalorder %s219, %s221
    %p228 = scmp.eq.s32.totalorder %s22, 1
    %p229 = por %p227, %p228
    %p230 = scmp.ne.s32.totalorder %s221, %s222
    %p231 = scmp.eq.s32.totalorder %s22, 0
    %p232 = por %p230, %p231
    %p233 = scmp.ne.s32.totalorder %s221, %s222
    %p234 = scmp.eq.s32.totalorder %s23, 1
    %p235 = por %p233, %p234
    %p237 = scmp.ne.s32.totalorder %s222, %s236
    %p238 = scmp.eq.s32.totalorder %s23, 0
    %p239 = por %p237, %p238
    %s241 = sadd.s32 %s240, 1
    %p244 = scmp.eq.s32.totalorder %s17, 1
    %p245 = scmp.ne.s32.totalorder %s240, %s242
    %p246 = scmp.eq.s32.totalorder %s17, 0
    %p247 = por %p245, %p246
    %p248 = scmp.ne.s32.totalorder %s240, %s242
    %p249 = scmp.eq.s32.totalorder %s22, 1
    %p250 = por %p248, %p249
    %p251 = scmp.ne.s32.totalorder %s242, %s243
    %p252 = scmp.eq.s32.totalorder %s22, 0
    %p253 = por %p251, %p252
    %p254 = scmp.ne.s32.totalorder %s242, %s243
    %p255 = scmp.eq.s32.totalorder %s23, 1
    %p256 = por %p254, %p255
    %p258 = scmp.ne.s32.totalorder %s243, %s257
    %p259 = scmp.eq.s32.totalorder %s23, 0
    %p260 = por %p258, %p259
    %s261 = ssub.s32 %s17, %s24
    %p262 = scmp.eq.s32.totalorder %s261, 0
    %s264 = sadd.s32 %s263, 1
    %s265 = scalar_select %p262, %s263, %s264
    %p268 = pneg %p262
    %p269 = scmp.eq.s32.totalorder %s17, 1
    %p270 = por %p268, %p269
    %p271 = scmp.ne.s32.totalorder %s263, %s266
    %p272 = scmp.eq.s32.totalorder %s17, 0
    %p273 = por %p271, %p272
    %p274 = scmp.ne.s32.totalorder %s263, %s266
    %p275 = scmp.eq.s32.totalorder %s22, 1
    %p276 = por %p274, %p275
    %p277 = scmp.ne.s32.totalorder %s266, %s267
    %p278 = scmp.eq.s32.totalorder %s22, 0
    %p279 = por %p277, %p278
    %p280 = scmp.ne.s32.totalorder %s266, %s267
    %p281 = scmp.eq.s32.totalorder %s23, 1
    %p282 = por %p280, %p281
    %p284 = scmp.ne.s32.totalorder %s267, %s283
    %p285 = scmp.eq.s32.totalorder %s23, 0
    %p286 = por %p284, %p285
    %p287 = scmp.le.s32.totalorder 1, %s17
    %p288 = scmp.lt.s32.totalorder %s17, 3
    %p289 = pnand %p287, %p288
    %p290 = pneg %p289
    // Predicated region
    $region9: #{lenet_forward.1} parent=5 // pred_check
      _
    $region10: #{lenet_forward.1} parent=5 // pred_check_branch
      %292 = sbr.rel (%p289) target = $region12
    $region11: #{lenet_forward.1} parent=5 // pred_region
      %s293 = ssub.s32 %s17, 1
      // Predicated region
      $region13: #{lenet_forward.1} parent=11 // pred_check
        %p294 = pneg %p64
      $region14: #{lenet_forward.1} parent=11 // pred_check_branch
        %296 = sbr.rel (%p294) target = $region16
      $region15: #{lenet_forward.1} parent=11 // pred_region
        _
      $region16: #{lenet_forward.1} parent=11 // pred_fallthru
        _
      // Predicated region
      $region17: #{lenet_forward.1} parent=11 // pred_check
        %p297 = pneg %p85
      $region18: #{lenet_forward.1} parent=11 // pred_check_branch
        %299 = sbr.rel (%p297) target = $region20
      $region19: #{lenet_forward.1} parent=11 // pred_region
        _
      $region20: #{lenet_forward.1} parent=11 // pred_fallthru
        _
      // Predicated region
      $region21: #{lenet_forward.1} parent=11 // pred_check
        %p300 = pneg %p106
      $region22: #{lenet_forward.1} parent=11 // pred_check_branch
        %302 = sbr.rel (%p300) target = $region24
      $region23: #{lenet_forward.1} parent=11 // pred_region
        _
      $region24: #{lenet_forward.1} parent=11 // pred_fallthru
        _
      // Predicated region
      $region25: #{lenet_forward.1} parent=11 // pred_check
        %p303 = pneg %p127
      $region26: #{lenet_forward.1} parent=11 // pred_check_branch
        %305 = sbr.rel (%p303) target = $region28
      $region27: #{lenet_forward.1} parent=11 // pred_region
        _
      $region28: #{lenet_forward.1} parent=11 // pred_fallthru
        _
      // Predicated region
      $region29: #{lenet_forward.1} parent=11 // pred_check
        %p306 = pneg %p148
      $region30: #{lenet_forward.1} parent=11 // pred_check_branch
        %308 = sbr.rel (%p306) target = $region32
      $region31: #{lenet_forward.1} parent=11 // pred_region
        _
      $region32: #{lenet_forward.1} parent=11 // pred_fallthru
        _
      // Predicated region
      $region33: #{lenet_forward.1} parent=11 // pred_check
        %p309 = pneg %p169
      $region34: #{lenet_forward.1} parent=11 // pred_check_branch
        %311 = sbr.rel (%p309) target = $region36
      $region35: #{lenet_forward.1} parent=11 // pred_region
        _
      $region36: #{lenet_forward.1} parent=11 // pred_fallthru
        _
      // Predicated region
      $region37: #{lenet_forward.1} parent=11 // pred_check
        %p312 = pneg %p190
      $region38: #{lenet_forward.1} parent=11 // pred_check_branch
        %314 = sbr.rel (%p312) target = $region40
      $region39: #{lenet_forward.1} parent=11 // pred_region
        _
      $region40: #{lenet_forward.1} parent=11 // pred_fallthru
        _
      // Predicated region
      $region41: #{lenet_forward.1} parent=11 // pred_check
        %p315 = pneg %p211
      $region42: #{lenet_forward.1} parent=11 // pred_check_branch
        %317 = sbr.rel (%p315) target = $region44
      $region43: #{lenet_forward.1} parent=11 // pred_region
        _
      $region44: #{lenet_forward.1} parent=11 // pred_fallthru
        _
      // Predicated region
      $region45: #{lenet_forward.1} parent=11 // pred_check
        %p318 = pneg %p232
      $region46: #{lenet_forward.1} parent=11 // pred_check_branch
        %320 = sbr.rel (%p318) target = $region48
      $region47: #{lenet_forward.1} parent=11 // pred_region
        _
      $region48: #{lenet_forward.1} parent=11 // pred_fallthru
        _
      // Predicated region
      $region49: #{lenet_forward.1} parent=11 // pred_check
        %p321 = pneg %p253
      $region50: #{lenet_forward.1} parent=11 // pred_check_branch
        %323 = sbr.rel (%p321) target = $region52
      $region51: #{lenet_forward.1} parent=11 // pred_region
        _
      $region52: #{lenet_forward.1} parent=11 // pred_fallthru
        _
    $region12: #{lenet_forward.1} parent=5 // pred_fallthru
      _
    %p324 = scmp.lt.s32.totalorder %s17, 2
    // Predicated region
    $region53: #{lenet_forward.1} parent=5 // pred_check
      %p325 = pneg %p324
    $region54: #{lenet_forward.1} parent=5 // pred_check_branch
      %327 = sbr.rel (%p325) target = $region56
    $region55: #{lenet_forward.1} parent=5 // pred_region
      // Predicated region
      $region57: #{lenet_forward.1} parent=55 // pred_check
        %p328 = pneg %p37
      $region58: #{lenet_forward.1} parent=55 // pred_check_branch
        %330 = sbr.rel (%p328) target = $region60
      $region59: #{lenet_forward.1} parent=55 // pred_region
        %p331 = scmp.lt.s32.totalorder %s17, 1
        %s332 = scalar_select %p331, %s17, 1
        %s333 = smul.addr %s332, 10
        %s334 = smul.addr %s333, 8
        %s335 = scalar_lea.vmem %s0, %s334
      $region60: #{lenet_forward.1} parent=55 // pred_fallthru
        _
    $region56: #{lenet_forward.1} parent=5 // pred_fallthru
      _
    %p336 = scmp.le.s32.totalorder 1, %s17
    %p337 = scmp.lt.s32.totalorder %s17, 3
    %p338 = pnand %p336, %p337
    %p339 = pneg %p338
    // Predicated region
    $region61: #{lenet_forward.1} parent=5 // pred_check
      _
    $region62: #{lenet_forward.1} parent=5 // pred_check_branch
      %341 = sbr.rel (%p338) target = $region64
    $region63: #{lenet_forward.1} parent=5 // pred_region
      %s342 = ssub.s32 %s17, 1
      %p343 = scmp.lt.s32.totalorder %s22, 1
      %s344 = scalar_select %p343, %s22, 1
      %s345 = smul.addr %s344, 10
      %s346 = smul.addr %s345, 8
      %s347 = scalar_lea.vmem %s0, %s346
      %p348 = pneg %p43
      %p349 = pneg %p40
      %p350 = pneg %p64
      %p351 = pneg %p61
      %p352 = pneg %p85
      %p353 = pneg %p82
      %p354 = pneg %p106
      %p355 = pneg %p103
      %p356 = pneg %p127
      %p357 = pneg %p124
      %p358 = pneg %p148
      %p359 = pneg %p145
      %p360 = pneg %p169
      %p361 = pneg %p166
      %p362 = pneg %p190
      %p363 = pneg %p187
      %p364 = pneg %p211
      %p365 = pneg %p208
      %p366 = pneg %p232
      %p367 = pneg %p229
      %p368 = pneg %p253
      %p369 = pneg %p250
      %p370 = pneg %p279
      %p371 = pneg %p276
      %p372 = scmp.lt.s32.totalorder %s22, 1
      %s373 = scalar_select %p372, %s22, 1
      %s374 = smul.addr %s373, 2
      %s375 = smul.addr %s374, 8
      %s376 = scalar_lea.vmem %s11, %s375
      %p377 = scmp.lt.s32.totalorder %s22, 1
      %s378 = scalar_select %p377, %s22, 1
      %s379 = smul.addr %s378, 10
      %s380 = smul.addr %s379, 8
      %s381 = scalar_lea.vmem %s0, %s380
      %p382 = scmp.lt.s32.totalorder %s22, 1
      %s383 = scalar_select %p382, %s22, 1
      %s384 = smul.addr %s383, 2
      %s385 = smul.addr %s384, 8
      %s386 = scalar_lea.vmem %s11, %s385
      %v387 = vld [vmem:[%s381] sm:$0xff]
      %v388 = vld [vmem:[%s381 + $0x8] sm:$0xff]
      %v389 = vld [vmem:[%s381 + $0x10] sm:$0xff]
      %v390 = vld [vmem:[%s381 + $0x18] sm:$0xff]
      %v391 = vld [vmem:[%s381 + $0x20] sm:$0xff]
      %v392 = vld [vmem:[%s381 + $0x28] sm:$0xff]
      %v393 = vld [vmem:[%s381 + $0x30] sm:$0xff]
      %v394 = vld [vmem:[%s381 + $0x38] sm:$0xff]
      %395 = vst [vmem:[#allocation2] sm:$0xff] %v387
      %396 = vst [vmem:[#allocation2 + $0x8] sm:$0xff] %v388
      %397 = vst [vmem:[#allocation2 + $0x10] sm:$0xff] %v389
      %398 = vst [vmem:[#allocation2 + $0x18] sm:$0xff] %v390
      %399 = vst [vmem:[#allocation2 + $0x20] sm:$0xff] %v391
      %400 = vst [vmem:[#allocation2 + $0x28] sm:$0xff] %v392
      %401 = vst [vmem:[#allocation2 + $0x30] sm:$0xff] %v393
      %402 = vst [vmem:[#allocation2 + $0x38] sm:$0xff] %v394
      %v403 = vld [vmem:[%s381] sm:$0xff]
      %v404 = vld [vmem:[%s381 + $0x8] sm:$0xff]
      %v405 = vld [vmem:[%s381 + $0x10] sm:$0xff]
      %v406 = vld [vmem:[%s381 + $0x18] sm:$0xff]
      %v407 = vld [vmem:[%s381 + $0x20] sm:$0xff]
      %v408 = vld [vmem:[%s381 + $0x28] sm:$0xff]
      %v409 = vld [vmem:[%s381 + $0x30] sm:$0xff]
      %v410 = vld [vmem:[%s381 + $0x38] sm:$0xff]
      %v411 = vld [vmem:[%s381 + $0x40] sm:$0xff]
      %421 = vrot.lane.b32.xlu0 %v403, 127
      %v422 = vpop.permute.xlu0 %421
      %423 = vrot.lane.b32.xlu0 %v404, 127
      %v424 = vpop.permute.xlu0 %423
      %425 = vrot.lane.b32.xlu0 %v405, 127
      %v426 = vpop.permute.xlu0 %425
      %427 = vrot.lane.b32.xlu0 %v406, 127
      %v428 = vpop.permute.xlu0 %427
      %429 = vrot.lane.b32.xlu0 %v407, 127
      %v430 = vpop.permute.xlu0 %429
      %431 = vrot.lane.b32.xlu0 %v408, 127
      %v432 = vpop.permute.xlu0 %431
      %433 = vrot.lane.b32.xlu0 %v409, 127
      %v434 = vpop.permute.xlu0 %433
      %435 = vrot.lane.b32.xlu0 %v410, 127
      %v436 = vpop.permute.xlu0 %435
      %437 = vrot.lane.b32.xlu0 %v411, 127
      %v438 = vpop.permute.xlu0 %437
      %vm439 = vcmask 1039360
      %v440 = vsel %vm439, %v422, %v424
      %v441 = vsel %vm439, %v424, %v426
      %v442 = vsel %vm439, %v426, %v428
      %v443 = vsel %vm439, %v428, %v430
      %v444 = vsel %vm439, %v430, %v432
      %v445 = vsel %vm439, %v432, %v434
      %v446 = vsel %vm439, %v434, %v436
      %v447 = vsel %vm439, %v436, %v438
      %456 = vst [vmem:[#allocation2 + $0x40] sm:$0xff] %v440
      %457 = vst [vmem:[#allocation2 + $0x48] sm:$0xff] %v441
      %458 = vst [vmem:[#allocation2 + $0x50] sm:$0xff] %v442
      %459 = vst [vmem:[#allocation2 + $0x58] sm:$0xff] %v443
      %460 = vst [vmem:[#allocation2 + $0x60] sm:$0xff] %v444
      %461 = vst [vmem:[#allocation2 + $0x68] sm:$0xff] %v445
      %462 = vst [vmem:[#allocation2 + $0x70] sm:$0xff] %v446
      %463 = vst [vmem:[#allocation2 + $0x78] sm:$0xff] %v447
      %v464 = vld [vmem:[%s381] sm:$0xff]
      %v465 = vld [vmem:[%s381 + $0x8] sm:$0xff]
      %v466 = vld [vmem:[%s381 + $0x10] sm:$0xff]
      %v467 = vld [vmem:[%s381 + $0x18] sm:$0xff]
      %v468 = vld [vmem:[%s381 + $0x20] sm:$0xff]
      %v469 = vld [vmem:[%s381 + $0x28] sm:$0xff]
      %v470 = vld [vmem:[%s381 + $0x30] sm:$0xff]
      %v471 = vld [vmem:[%s381 + $0x38] sm:$0xff]
      %v472 = vld [vmem:[%s381 + $0x40] sm:$0xff]
      %482 = vrot.lane.b32.xlu0 %v464, 126
      %v483 = vpop.permute.xlu0 %482
      %484 = vrot.lane.b32.xlu0 %v465, 126
      %v485 = vpop.permute.xlu0 %484
      %486 = vrot.lane.b32.xlu0 %v466, 126
      %v487 = vpop.permute.xlu0 %486
      %488 = vrot.lane.b32.xlu0 %v467, 126
      %v489 = vpop.permute.xlu0 %488
      %490 = vrot.lane.b32.xlu0 %v468, 126
      %v491 = vpop.permute.xlu0 %490
      %492 = vrot.lane.b32.xlu0 %v469, 126
      %v493 = vpop.permute.xlu0 %492
      %494 = vrot.lane.b32.xlu0 %v470, 126
      %v495 = vpop.permute.xlu0 %494
      %496 = vrot.lane.b32.xlu0 %v471, 126
      %v497 = vpop.permute.xlu0 %496
      %498 = vrot.lane.b32.xlu0 %v472, 126
      %v499 = vpop.permute.xlu0 %498
      %vm500 = vcmask 1031168
      %v501 = vsel %vm500, %v483, %v485
      %v502 = vsel %vm500, %v485, %v487
      %v503 = vsel %vm500, %v487, %v489
      %v504 = vsel %vm500, %v489, %v491
      %v505 = vsel %vm500, %v491, %v493
      %v506 = vsel %vm500, %v493, %v495
      %v507 = vsel %vm500, %v495, %v497
      %v508 = vsel %vm500, %v497, %v499
      %517 = vst [vmem:[#allocation2 + $0x80] sm:$0xff] %v501
      %518 = vst [vmem:[#allocation2 + $0x88] sm:$0xff] %v502
      %519 = vst [vmem:[#allocation2 + $0x90] sm:$0xff] %v503
      %520 = vst [vmem:[#allocation2 + $0x98] sm:$0xff] %v504
      %521 = vst [vmem:[#allocation2 + $0xa0] sm:$0xff] %v505
      %522 = vst [vmem:[#allocation2 + $0xa8] sm:$0xff] %v506
      %523 = vst [vmem:[#allocation2 + $0xb0] sm:$0xff] %v507
      %524 = vst [vmem:[#allocation2 + $0xb8] sm:$0xff] %v508
      %v525 = vld [vmem:[%s381] sm:$0xff]
      %v526 = vld [vmem:[%s381 + $0x8] sm:$0xff]
      %v527 = vld [vmem:[%s381 + $0x10] sm:$0xff]
      %v528 = vld [vmem:[%s381 + $0x18] sm:$0xff]
      %v529 = vld [vmem:[%s381 + $0x20] sm:$0xff]
      %v530 = vld [vmem:[%s381 + $0x28] sm:$0xff]
      %v531 = vld [vmem:[%s381 + $0x30] sm:$0xff]
      %v532 = vld [vmem:[%s381 + $0x38] sm:$0xff]
      %v533 = vld [vmem:[%s381 + $0x40] sm:$0xff]
      %543 = vrot.lane.b32.xlu0 %v525, 125
      %v544 = vpop.permute.xlu0 %543
      %545 = vrot.lane.b32.xlu0 %v526, 125
      %v546 = vpop.permute.xlu0 %545
      %547 = vrot.lane.b32.xlu0 %v527, 125
      %v548 = vpop.permute.xlu0 %547
      %549 = vrot.lane.b32.xlu0 %v528, 125
      %v550 = vpop.permute.xlu0 %549
      %551 = vrot.lane.b32.xlu0 %v529, 125
      %v552 = vpop.permute.xlu0 %551
      %553 = vrot.lane.b32.xlu0 %v530, 125
      %v554 = vpop.permute.xlu0 %553
      %555 = vrot.lane.b32.xlu0 %v531, 125
      %v556 = vpop.permute.xlu0 %555
      %557 = vrot.lane.b32.xlu0 %v532, 125
      %v558 = vpop.permute.xlu0 %557
      %559 = vrot.lane.b32.xlu0 %v533, 125
      %v560 = vpop.permute.xlu0 %559
      %vm561 = vcmask 1022976
      %v562 = vsel %vm561, %v544, %v546
      %v563 = vsel %vm561, %v546, %v548
      %v564 = vsel %vm561, %v548, %v550
      %v565 = vsel %vm561, %v550, %v552
      %v566 = vsel %vm561, %v552, %v554
      %v567 = vsel %vm561, %v554, %v556
      %v568 = vsel %vm561, %v556, %v558
      %v569 = vsel %vm561, %v558, %v560
      %578 = vst [vmem:[#allocation2 + $0xc0] sm:$0xff] %v562
      %579 = vst [vmem:[#allocation2 + $0xc8] sm:$0xff] %v563
      %580 = vst [vmem:[#allocation2 + $0xd0] sm:$0xff] %v564
      %581 = vst [vmem:[#allocation2 + $0xd8] sm:$0xff] %v565
      %582 = vst [vmem:[#allocation2 + $0xe0] sm:$0xff] %v566
      %583 = vst [vmem:[#allocation2 + $0xe8] sm:$0xff] %v567
      %584 = vst [vmem:[#allocation2 + $0xf0] sm:$0xff] %v568
      %585 = vst [vmem:[#allocation2 + $0xf8] sm:$0xff] %v569
      %v586 = vld [vmem:[%s381] sm:$0xff]
      %v587 = vld [vmem:[%s381 + $0x8] sm:$0xff]
      %v588 = vld [vmem:[%s381 + $0x10] sm:$0xff]
      %v589 = vld [vmem:[%s381 + $0x18] sm:$0xff]
      %v590 = vld [vmem:[%s381 + $0x20] sm:$0xff]
      %v591 = vld [vmem:[%s381 + $0x28] sm:$0xff]
      %v592 = vld [vmem:[%s381 + $0x30] sm:$0xff]
      %v593 = vld [vmem:[%s381 + $0x38] sm:$0xff]
      %v594 = vld [vmem:[%s381 + $0x40] sm:$0xff]
      %604 = vrot.lane.b32.xlu0 %v586, 124
      %v605 = vpop.permute.xlu0 %604
      %606 = vrot.lane.b32.xlu0 %v587, 124
      %v607 = vpop.permute.xlu0 %606
      %608 = vrot.lane.b32.xlu0 %v588, 124
      %v609 = vpop.permute.xlu0 %608
      %610 = vrot.lane.b32.xlu0 %v589, 124
      %v611 = vpop.permute.xlu0 %610
      %612 = vrot.lane.b32.xlu0 %v590, 124
      %v613 = vpop.permute.xlu0 %612
      %614 = vrot.lane.b32.xlu0 %v591, 124
      %v615 = vpop.permute.xlu0 %614
      %616 = vrot.lane.b32.xlu0 %v592, 124
      %v617 = vpop.permute.xlu0 %616
      %618 = vrot.lane.b32.xlu0 %v593, 124
      %v619 = vpop.permute.xlu0 %618
      %620 = vrot.lane.b32.xlu0 %v594, 124
      %v621 = vpop.permute.xlu0 %620
      %vm622 = vcmask 1014784
      %v623 = vsel %vm622, %v605, %v607
      %v624 = vsel %vm622, %v607, %v609
      %v625 = vsel %vm622, %v609, %v611
      %v626 = vsel %vm622, %v611, %v613
      %v627 = vsel %vm622, %v613, %v615
      %v628 = vsel %vm622, %v615, %v617
      %v629 = vsel %vm622, %v617, %v619
      %v630 = vsel %vm622, %v619, %v621
      %639 = vst [vmem:[#allocation2 + $0x100] sm:$0xff] %v623
      %640 = vst [vmem:[#allocation2 + $0x108] sm:$0xff] %v624
      %641 = vst [vmem:[#allocation2 + $0x110] sm:$0xff] %v625
      %642 = vst [vmem:[#allocation2 + $0x118] sm:$0xff] %v626
      %643 = vst [vmem:[#allocation2 + $0x120] sm:$0xff] %v627
      %644 = vst [vmem:[#allocation2 + $0x128] sm:$0xff] %v628
      %645 = vst [vmem:[#allocation2 + $0x130] sm:$0xff] %v629
      %646 = vst [vmem:[#allocation2 + $0x138] sm:$0xff] %v630
      %v647 = vld [vmem:[%s381] sm:$0xff]
      %v648 = vld [vmem:[%s381 + $0x8] sm:$0xff]
      %v649 = vld [vmem:[%s381 + $0x10] sm:$0xff]
      %v650 = vld [vmem:[%s381 + $0x18] sm:$0xff]
      %v651 = vld [vmem:[%s381 + $0x20] sm:$0xff]
      %v652 = vld [vmem:[%s381 + $0x28] sm:$0xff]
      %v653 = vld [vmem:[%s381 + $0x30] sm:$0xff]
      %v654 = vld [vmem:[%s381 + $0x38] sm:$0xff]
      %v655 = vld [vmem:[%s381 + $0x40] sm:$0xff]
      %665 = vrot.lane.b32.xlu0 %v647, 96
      %v666 = vpop.permute.xlu0 %665
      %667 = vrot.lane.b32.xlu0 %v648, 96
      %v668 = vpop.permute.xlu0 %667
      %669 = vrot.lane.b32.xlu0 %v649, 96
      %v670 = vpop.permute.xlu0 %669
      %671 = vrot.lane.b32.xlu0 %v650, 96
      %v672 = vpop.permute.xlu0 %671
      %673 = vrot.lane.b32.xlu0 %v651, 96
      %v674 = vpop.permute.xlu0 %673
      %675 = vrot.lane.b32.xlu0 %v652, 96
      %v676 = vpop.permute.xlu0 %675
      %677 = vrot.lane.b32.xlu0 %v653, 96
      %v678 = vpop.permute.xlu0 %677
      %679 = vrot.lane.b32.xlu0 %v654, 96
      %v680 = vpop.permute.xlu0 %679
      %681 = vrot.lane.b32.xlu0 %v655, 96
      %v682 = vpop.permute.xlu0 %681
      %vm683 = vcmask 785408
      %v684 = vsel %vm683, %v666, %v668
      %v685 = vsel %vm683, %v668, %v670
      %v686 = vsel %vm683, %v670, %v672
      %v687 = vsel %vm683, %v672, %v674
      %v688 = vsel %vm683, %v674, %v676
      %v689 = vsel %vm683, %v676, %v678
      %v690 = vsel %vm683, %v678, %v680
      %v691 = vsel %vm683, %v680, %v682
      %700 = vst [vmem:[#allocation2 + $0x140] sm:$0xff] %v684
      %701 = vst [vmem:[#allocation2 + $0x148] sm:$0xff] %v685
      %702 = vst [vmem:[#allocation2 + $0x150] sm:$0xff] %v686
      %703 = vst [vmem:[#allocation2 + $0x158] sm:$0xff] %v687
      %704 = vst [vmem:[#allocation2 + $0x160] sm:$0xff] %v688
      %705 = vst [vmem:[#allocation2 + $0x168] sm:$0xff] %v689
      %706 = vst [vmem:[#allocation2 + $0x170] sm:$0xff] %v690
      %707 = vst [vmem:[#allocation2 + $0x178] sm:$0xff] %v691
      %v708 = vld [vmem:[%s381] sm:$0xff]
      %v709 = vld [vmem:[%s381 + $0x8] sm:$0xff]
      %v710 = vld [vmem:[%s381 + $0x10] sm:$0xff]
      %v711 = vld [vmem:[%s381 + $0x18] sm:$0xff]
      %v712 = vld [vmem:[%s381 + $0x20] sm:$0xff]
      %v713 = vld [vmem:[%s381 + $0x28] sm:$0xff]
      %v714 = vld [vmem:[%s381 + $0x30] sm:$0xff]
      %v715 = vld [vmem:[%s381 + $0x38] sm:$0xff]
      %v716 = vld [vmem:[%s381 + $0x40] sm:$0xff]
      %726 = vrot.lane.b32.xlu0 %v708, 95
      %v727 = vpop.permute.xlu0 %726
      %728 = vrot.lane.b32.xlu0 %v709, 95
      %v729 = vpop.permute.xlu0 %728
      %730 = vrot.lane.b32.xlu0 %v710, 95
      %v731 = vpop.permute.xlu0 %730
      %732 = vrot.lane.b32.xlu0 %v711, 95
      %v733 = vpop.permute.xlu0 %732
      %734 = vrot.lane.b32.xlu0 %v712, 95
      %v735 = vpop.permute.xlu0 %734
      %736 = vrot.lane.b32.xlu0 %v713, 95
      %v737 = vpop.permute.xlu0 %736
      %738 = vrot.lane.b32.xlu0 %v714, 95
      %v739 = vpop.permute.xlu0 %738
      %740 = vrot.lane.b32.xlu0 %v715, 95
      %v741 = vpop.permute.xlu0 %740
      %742 = vrot.lane.b32.xlu0 %v716, 95
      %v743 = vpop.permute.xlu0 %742
      %vm744 = vcmask 777216
      %v745 = vsel %vm744, %v727, %v729
      %v746 = vsel %vm744, %v729, %v731
      %v747 = vsel %vm744, %v731, %v733
      %v748 = vsel %vm744, %v733, %v735
      %v749 = vsel %vm744, %v735, %v737
      %v750 = vsel %vm744, %v737, %v739
      %v751 = vsel %vm744, %v739, %v741
      %v752 = vsel %vm744, %v741, %v743
      %761 = vst [vmem:[#allocation2 + $0x180] sm:$0xff] %v745
      %762 = vst [vmem:[#allocation2 + $0x188] sm:$0xff] %v746
      %763 = vst [vmem:[#allocation2 + $0x190] sm:$0xff] %v747
      %764 = vst [vmem:[#allocation2 + $0x198] sm:$0xff] %v748
      %765 = vst [vmem:[#allocation2 + $0x1a0] sm:$0xff] %v749
      %766 = vst [vmem:[#allocation2 + $0x1a8] sm:$0xff] %v750
      %767 = vst [vmem:[#allocation2 + $0x1b0] sm:$0xff] %v751
      %768 = vst [vmem:[#allocation2 + $0x1b8] sm:$0xff] %v752
      %v769 = vld [vmem:[%s381] sm:$0xff]
      %v770 = vld [vmem:[%s381 + $0x8] sm:$0xff]
      %v771 = vld [vmem:[%s381 + $0x10] sm:$0xff]
      %v772 = vld [vmem:[%s381 + $0x18] sm:$0xff]
      %v773 = vld [vmem:[%s381 + $0x20] sm:$0xff]
      %v774 = vld [vmem:[%s381 + $0x28] sm:$0xff]
      %v775 = vld [vmem:[%s381 + $0x30] sm:$0xff]
      %v776 = vld [vmem:[%s381 + $0x38] sm:$0xff]
      %v777 = vld [vmem:[%s381 + $0x40] sm:$0xff]
      %787 = vrot.lane.b32.xlu0 %v769, 94
      %v788 = vpop.permute.xlu0 %787
      %789 = vrot.lane.b32.xlu0 %v770, 94
      %v790 = vpop.permute.xlu0 %789
      %791 = vrot.lane.b32.xlu0 %v771, 94
      %v792 = vpop.permute.xlu0 %791
      %793 = vrot.lane.b32.xlu0 %v772, 94
      %v794 = vpop.permute.xlu0 %793
      %795 = vrot.lane.b32.xlu0 %v773, 94
      %v796 = vpop.permute.xlu0 %795
      %797 = vrot.lane.b32.xlu0 %v774, 94
      %v798 = vpop.permute.xlu0 %797
      %799 = vrot.lane.b32.xlu0 %v775, 94
      %v800 = vpop.permute.xlu0 %799
      %801 = vrot.lane.b32.xlu0 %v776, 94
      %v802 = vpop.permute.xlu0 %801
      %803 = vrot.lane.b32.xlu0 %v777, 94
      %v804 = vpop.permute.xlu0 %803
      %vm805 = vcmask 769024
      %v806 = vsel %vm805, %v788, %v790
      %v807 = vsel %vm805, %v790, %v792
      %v808 = vsel %vm805, %v792, %v794
      %v809 = vsel %vm805, %v794, %v796
      %v810 = vsel %vm805, %v796, %v798
      %v811 = vsel %vm805, %v798, %v800
      %v812 = vsel %vm805, %v800, %v802
      %v813 = vsel %vm805, %v802, %v804
      %822 = vst [vmem:[#allocation2 + $0x1c0] sm:$0xff] %v806
      %823 = vst [vmem:[#allocation2 + $0x1c8] sm:$0xff] %v807
      %824 = vst [vmem:[#allocation2 + $0x1d0] sm:$0xff] %v808
      %825 = vst [vmem:[#allocation2 + $0x1d8] sm:$0xff] %v809
      %826 = vst [vmem:[#allocation2 + $0x1e0] sm:$0xff] %v810
      %827 = vst [vmem:[#allocation2 + $0x1e8] sm:$0xff] %v811
      %828 = vst [vmem:[#allocation2 + $0x1f0] sm:$0xff] %v812
      %829 = vst [vmem:[#allocation2 + $0x1f8] sm:$0xff] %v813
      %v830 = vld [vmem:[%s381] sm:$0xff]
      %v831 = vld [vmem:[%s381 + $0x8] sm:$0xff]
      %v832 = vld [vmem:[%s381 + $0x10] sm:$0xff]
      %v833 = vld [vmem:[%s381 + $0x18] sm:$0xff]
      %v834 = vld [vmem:[%s381 + $0x20] sm:$0xff]
      %v835 = vld [vmem:[%s381 + $0x28] sm:$0xff]
      %v836 = vld [vmem:[%s381 + $0x30] sm:$0xff]
      %v837 = vld [vmem:[%s381 + $0x38] sm:$0xff]
      %v838 = vld [vmem:[%s381 + $0x40] sm:$0xff]
      %848 = vrot.lane.b32.xlu0 %v830, 93
      %v849 = vpop.permute.xlu0 %848
      %850 = vrot.lane.b32.xlu0 %v831, 93
      %v851 = vpop.permute.xlu0 %850
      %852 = vrot.lane.b32.xlu0 %v832, 93
      %v853 = vpop.permute.xlu0 %852
      %854 = vrot.lane.b32.xlu0 %v833, 93
      %v855 = vpop.permute.xlu0 %854
      %856 = vrot.lane.b32.xlu0 %v834, 93
      %v857 = vpop.permute.xlu0 %856
      %858 = vrot.lane.b32.xlu0 %v835, 93
      %v859 = vpop.permute.xlu0 %858
      %860 = vrot.lane.b32.xlu0 %v836, 93
      %v861 = vpop.permute.xlu0 %860
      %862 = vrot.lane.b32.xlu0 %v837, 93
      %v863 = vpop.permute.xlu0 %862
      %864 = vrot.lane.b32.xlu0 %v838, 93
      %v865 = vpop.permute.xlu0 %864
      %vm866 = vcmask 760832
      %v867 = vsel %vm866, %v849, %v851
      %v868 = vsel %vm866, %v851, %v853
      %v869 = vsel %vm866, %v853, %v855
      %v870 = vsel %vm866, %v855, %v857
      %v871 = vsel %vm866, %v857, %v859
      %v872 = vsel %vm866, %v859, %v861
      %v873 = vsel %vm866, %v861, %v863
      %v874 = vsel %vm866, %v863, %v865
      %883 = vst [vmem:[#allocation2 + $0x200] sm:$0xff] %v867
      %884 = vst [vmem:[#allocation2 + $0x208] sm:$0xff] %v868
      %885 = vst [vmem:[#allocation2 + $0x210] sm:$0xff] %v869
      %886 = vst [vmem:[#allocation2 + $0x218] sm:$0xff] %v870
      %887 = vst [vmem:[#allocation2 + $0x220] sm:$0xff] %v871
      %888 = vst [vmem:[#allocation2 + $0x228] sm:$0xff] %v872
      %889 = vst [vmem:[#allocation2 + $0x230] sm:$0xff] %v873
      %890 = vst [vmem:[#allocation2 + $0x238] sm:$0xff] %v874
      %v891 = vld [vmem:[%s381] sm:$0xff]
      %v892 = vld [vmem:[%s381 + $0x8] sm:$0xff]
      %v893 = vld [vmem:[%s381 + $0x10] sm:$0xff]
      %v894 = vld [vmem:[%s381 + $0x18] sm:$0xff]
      %v895 = vld [vmem:[%s381 + $0x20] sm:$0xff]
      %v896 = vld [vmem:[%s381 + $0x28] sm:$0xff]
      %v897 = vld [vmem:[%s381 + $0x30] sm:$0xff]
      %v898 = vld [vmem:[%s381 + $0x38] sm:$0xff]
      %v899 = vld [vmem:[%s381 + $0x40] sm:$0xff]
      %909 = vrot.lane.b32.xlu0 %v891, 92
      %v910 = vpop.permute.xlu0 %909
      %911 = vrot.lane.b32.xlu0 %v892, 92
      %v912 = vpop.permute.xlu0 %911
      %913 = vrot.lane.b32.xlu0 %v893, 92
      %v914 = vpop.permute.xlu0 %913
      %915 = vrot.lane.b32.xlu0 %v894, 92
      %v916 = vpop.permute.xlu0 %915
      %917 = vrot.lane.b32.xlu0 %v895, 92
      %v918 = vpop.permute.xlu0 %917
      %919 = vrot.lane.b32.xlu0 %v896, 92
      %v920 = vpop.permute.xlu0 %919
      %921 = vrot.lane.b32.xlu0 %v897, 92
      %v922 = vpop.permute.xlu0 %921
      %923 = vrot.lane.b32.xlu0 %v898, 92
      %v924 = vpop.permute.xlu0 %923
      %925 = vrot.lane.b32.xlu0 %v899, 92
      %v926 = vpop.permute.xlu0 %925
      %vm927 = vcmask 752640
      %v928 = vsel %vm927, %v910, %v912
      %v929 = vsel %vm927, %v912, %v914
      %v930 = vsel %vm927, %v914, %v916
      %v931 = vsel %vm927, %v916, %v918
      %v932 = vsel %vm927, %v918, %v920
      %v933 = vsel %vm927, %v920, %v922
      %v934 = vsel %vm927, %v922, %v924
      %v935 = vsel %vm927, %v924, %v926
      %944 = vst [vmem:[#allocation2 + $0x240] sm:$0xff] %v928
      %945 = vst [vmem:[#allocation2 + $0x248] sm:$0xff] %v929
      %946 = vst [vmem:[#allocation2 + $0x250] sm:$0xff] %v930
      %947 = vst [vmem:[#allocation2 + $0x258] sm:$0xff] %v931
      %948 = vst [vmem:[#allocation2 + $0x260] sm:$0xff] %v932
      %949 = vst [vmem:[#allocation2 + $0x268] sm:$0xff] %v933
      %950 = vst [vmem:[#allocation2 + $0x270] sm:$0xff] %v934
      %951 = vst [vmem:[#allocation2 + $0x278] sm:$0xff] %v935
      %v952 = vld [vmem:[%s381] sm:$0xff]
      %v953 = vld [vmem:[%s381 + $0x8] sm:$0xff]
      %v954 = vld [vmem:[%s381 + $0x10] sm:$0xff]
      %v955 = vld [vmem:[%s381 + $0x18] sm:$0xff]
      %v956 = vld [vmem:[%s381 + $0x20] sm:$0xff]
      %v957 = vld [vmem:[%s381 + $0x28] sm:$0xff]
      %v958 = vld [vmem:[%s381 + $0x30] sm:$0xff]
      %v959 = vld [vmem:[%s381 + $0x38] sm:$0xff]
      %v960 = vld [vmem:[%s381 + $0x40] sm:$0xff]
      %970 = vrot.lane.b32.xlu0 %v952, 64
      %v971 = vpop.permute.xlu0 %970
      %972 = vrot.lane.b32.xlu0 %v953, 64
      %v973 = vpop.permute.xlu0 %972
      %974 = vrot.lane.b32.xlu0 %v954, 64
      %v975 = vpop.permute.xlu0 %974
      %976 = vrot.lane.b32.xlu0 %v955, 64
      %v977 = vpop.permute.xlu0 %976
      %978 = vrot.lane.b32.xlu0 %v956, 64
      %v979 = vpop.permute.xlu0 %978
      %980 = vrot.lane.b32.xlu0 %v957, 64
      %v981 = vpop.permute.xlu0 %980
      %982 = vrot.lane.b32.xlu0 %v958, 64
      %v983 = vpop.permute.xlu0 %982
      %984 = vrot.lane.b32.xlu0 %v959, 64
      %v985 = vpop.permute.xlu0 %984
      %986 = vrot.lane.b32.xlu0 %v960, 64
      %v987 = vpop.permute.xlu0 %986
      %vm988 = vcmask 523264
      %v989 = vsel %vm988, %v971, %v973
      %v990 = vsel %vm988, %v973, %v975
      %v991 = vsel %vm988, %v975, %v977
      %v992 = vsel %vm988, %v977, %v979
      %v993 = vsel %vm988, %v979, %v981
      %v994 = vsel %vm988, %v981, %v983
      %v995 = vsel %vm988, %v983, %v985
      %v996 = vsel %vm988, %v985, %v987
      %1005 = vst [vmem:[#allocation2 + $0x280] sm:$0xff] %v989
      %1006 = vst [vmem:[#allocation2 + $0x288] sm:$0xff] %v990
      %1007 = vst [vmem:[#allocation2 + $0x290] sm:$0xff] %v991
      %1008 = vst [vmem:[#allocation2 + $0x298] sm:$0xff] %v992
      %1009 = vst [vmem:[#allocation2 + $0x2a0] sm:$0xff] %v993
      %1010 = vst [vmem:[#allocation2 + $0x2a8] sm:$0xff] %v994
      %1011 = vst [vmem:[#allocation2 + $0x2b0] sm:$0xff] %v995
      %1012 = vst [vmem:[#allocation2 + $0x2b8] sm:$0xff] %v996
      %v1013 = vld [vmem:[%s381] sm:$0xff]
      %v1014 = vld [vmem:[%s381 + $0x8] sm:$0xff]
      %v1015 = vld [vmem:[%s381 + $0x10] sm:$0xff]
      %v1016 = vld [vmem:[%s381 + $0x18] sm:$0xff]
      %v1017 = vld [vmem:[%s381 + $0x20] sm:$0xff]
      %v1018 = vld [vmem:[%s381 + $0x28] sm:$0xff]
      %v1019 = vld [vmem:[%s381 + $0x30] sm:$0xff]
      %v1020 = vld [vmem:[%s381 + $0x38] sm:$0xff]
      %v1021 = vld [vmem:[%s381 + $0x40] sm:$0xff]
      %1031 = vrot.lane.b32.xlu0 %v1013, 63
      %v1032 = vpop.permute.xlu0 %1031
      %1033 = vrot.lane.b32.xlu0 %v1014, 63
      %v1034 = vpop.permute.xlu0 %1033
      %1035 = vrot.lane.b32.xlu0 %v1015, 63
      %v1036 = vpop.permute.xlu0 %1035
      %1037 = vrot.lane.b32.xlu0 %v1016, 63
      %v1038 = vpop.permute.xlu0 %1037
      %1039 = vrot.lane.b32.xlu0 %v1017, 63
      %v1040 = vpop.permute.xlu0 %1039
      %1041 = vrot.lane.b32.xlu0 %v1018, 63
      %v1042 = vpop.permute.xlu0 %1041
      %1043 = vrot.lane.b32.xlu0 %v1019, 63
      %v1044 = vpop.permute.xlu0 %1043
      %1045 = vrot.lane.b32.xlu0 %v1020, 63
      %v1046 = vpop.permute.xlu0 %1045
      %1047 = vrot.lane.b32.xlu0 %v1021, 63
      %v1048 = vpop.permute.xlu0 %1047
      %vm1049 = vcmask 515072
      %v1050 = vsel %vm1049, %v1032, %v1034
      %v1051 = vsel %vm1049, %v1034, %v1036
      %v1052 = vsel %vm1049, %v1036, %v1038
      %v1053 = vsel %vm1049, %v1038, %v1040
      %v1054 = vsel %vm1049, %v1040, %v1042
      %v1055 = vsel %vm1049, %v1042, %v1044
      %v1056 = vsel %vm1049, %v1044, %v1046
      %v1057 = vsel %vm1049, %v1046, %v1048
      %1066 = vst [vmem:[#allocation2 + $0x2c0] sm:$0xff] %v1050
      %1067 = vst [vmem:[#allocation2 + $0x2c8] sm:$0xff] %v1051
      %1068 = vst [vmem:[#allocation2 + $0x2d0] sm:$0xff] %v1052
      %1069 = vst [vmem:[#allocation2 + $0x2d8] sm:$0xff] %v1053
      %1070 = vst [vmem:[#allocation2 + $0x2e0] sm:$0xff] %v1054
      %1071 = vst [vmem:[#allocation2 + $0x2e8] sm:$0xff] %v1055
      %1072 = vst [vmem:[#allocation2 + $0x2f0] sm:$0xff] %v1056
      %1073 = vst [vmem:[#allocation2 + $0x2f8] sm:$0xff] %v1057
      %v1074 = vld [vmem:[%s381] sm:$0xff]
      %v1075 = vld [vmem:[%s381 + $0x8] sm:$0xff]
      %v1076 = vld [vmem:[%s381 + $0x10] sm:$0xff]
      %v1077 = vld [vmem:[%s381 + $0x18] sm:$0xff]
      %v1078 = vld [vmem:[%s381 + $0x20] sm:$0xff]
      %v1079 = vld [vmem:[%s381 + $0x28] sm:$0xff]
      %v1080 = vld [vmem:[%s381 + $0x30] sm:$0xff]
      %v1081 = vld [vmem:[%s381 + $0x38] sm:$0xff]
      %v1082 = vld [vmem:[%s381 + $0x40] sm:$0xff]
      %1092 = vrot.lane.b32.xlu0 %v1074, 62
      %v1093 = vpop.permute.xlu0 %1092
      %1094 = vrot.lane.b32.xlu0 %v1075, 62
      %v1095 = vpop.permute.xlu0 %1094
      %1096 = vrot.lane.b32.xlu0 %v1076, 62
      %v1097 = vpop.permute.xlu0 %1096
      %1098 = vrot.lane.b32.xlu0 %v1077, 62
      %v1099 = vpop.permute.xlu0 %1098
      %1100 = vrot.lane.b32.xlu0 %v1078, 62
      %v1101 = vpop.permute.xlu0 %1100
      %1102 = vrot.lane.b32.xlu0 %v1079, 62
      %v1103 = vpop.permute.xlu0 %1102
      %1104 = vrot.lane.b32.xlu0 %v1080, 62
      %v1105 = vpop.permute.xlu0 %1104
      %1106 = vrot.lane.b32.xlu0 %v1081, 62
      %v1107 = vpop.permute.xlu0 %1106
      %1108 = vrot.lane.b32.xlu0 %v1082, 62
      %v1109 = vpop.permute.xlu0 %1108
      %vm1110 = vcmask 506880
      %v1111 = vsel %vm1110, %v1093, %v1095
      %v1112 = vsel %vm1110, %v1095, %v1097
      %v1113 = vsel %vm1110, %v1097, %v1099
      %v1114 = vsel %vm1110, %v1099, %v1101
      %v1115 = vsel %vm1110, %v1101, %v1103
      %v1116 = vsel %vm1110, %v1103, %v1105
      %v1117 = vsel %vm1110, %v1105, %v1107
      %v1118 = vsel %vm1110, %v1107, %v1109
      %1127 = vst [vmem:[#allocation2 + $0x300] sm:$0xff] %v1111
      %1128 = vst [vmem:[#allocation2 + $0x308] sm:$0xff] %v1112
      %1129 = vst [vmem:[#allocation2 + $0x310] sm:$0xff] %v1113
      %1130 = vst [vmem:[#allocation2 + $0x318] sm:$0xff] %v1114
      %1131 = vst [vmem:[#allocation2 + $0x320] sm:$0xff] %v1115
      %1132 = vst [vmem:[#allocation2 + $0x328] sm:$0xff] %v1116
      %1133 = vst [vmem:[#allocation2 + $0x330] sm:$0xff] %v1117
      %1134 = vst [vmem:[#allocation2 + $0x338] sm:$0xff] %v1118
      %v1135 = vld [vmem:[%s381] sm:$0xff]
      %v1136 = vld [vmem:[%s381 + $0x8] sm:$0xff]
      %v1137 = vld [vmem:[%s381 + $0x10] sm:$0xff]
      %v1138 = vld [vmem:[%s381 + $0x18] sm:$0xff]
      %v1139 = vld [vmem:[%s381 + $0x20] sm:$0xff]
      %v1140 = vld [vmem:[%s381 + $0x28] sm:$0xff]
      %v1141 = vld [vmem:[%s381 + $0x30] sm:$0xff]
      %v1142 = vld [vmem:[%s381 + $0x38] sm:$0xff]
      %v1143 = vld [vmem:[%s381 + $0x40] sm:$0xff]
      %1153 = vrot.lane.b32.xlu0 %v1135, 61
      %v1154 = vpop.permute.xlu0 %1153
      %1155 = vrot.lane.b32.xlu0 %v1136, 61
      %v1156 = vpop.permute.xlu0 %1155
      %1157 = vrot.lane.b32.xlu0 %v1137, 61
      %v1158 = vpop.permute.xlu0 %1157
      %1159 = vrot.lane.b32.xlu0 %v1138, 61
      %v1160 = vpop.permute.xlu0 %1159
      %1161 = vrot.lane.b32.xlu0 %v1139, 61
      %v1162 = vpop.permute.xlu0 %1161
      %1163 = vrot.lane.b32.xlu0 %v1140, 61
      %v1164 = vpop.permute.xlu0 %1163
      %1165 = vrot.lane.b32.xlu0 %v1141, 61
      %v1166 = vpop.permute.xlu0 %1165
      %1167 = vrot.lane.b32.xlu0 %v1142, 61
      %v1168 = vpop.permute.xlu0 %1167
      %1169 = vrot.lane.b32.xlu0 %v1143, 61
      %v1170 = vpop.permute.xlu0 %1169
      %vm1171 = vcmask 498688
      %v1172 = vsel %vm1171, %v1154, %v1156
      %v1173 = vsel %vm1171, %v1156, %v1158
      %v1174 = vsel %vm1171, %v1158, %v1160
      %v1175 = vsel %vm1171, %v1160, %v1162
      %v1176 = vsel %vm1171, %v1162, %v1164
      %v1177 = vsel %vm1171, %v1164, %v1166
      %v1178 = vsel %vm1171, %v1166, %v1168
      %v1179 = vsel %vm1171, %v1168, %v1170
      %1188 = vst [vmem:[#allocation2 + $0x340] sm:$0xff] %v1172
      %1189 = vst [vmem:[#allocation2 + $0x348] sm:$0xff] %v1173
      %1190 = vst [vmem:[#allocation2 + $0x350] sm:$0xff] %v1174
      %1191 = vst [vmem:[#allocation2 + $0x358] sm:$0xff] %v1175
      %1192 = vst [vmem:[#allocation2 + $0x360] sm:$0xff] %v1176
      %1193 = vst [vmem:[#allocation2 + $0x368] sm:$0xff] %v1177
      %1194 = vst [vmem:[#allocation2 + $0x370] sm:$0xff] %v1178
      %1195 = vst [vmem:[#allocation2 + $0x378] sm:$0xff] %v1179
      %v1196 = vld [vmem:[%s381] sm:$0xff]
      %v1197 = vld [vmem:[%s381 + $0x8] sm:$0xff]
      %v1198 = vld [vmem:[%s381 + $0x10] sm:$0xff]
      %v1199 = vld [vmem:[%s381 + $0x18] sm:$0xff]
      %v1200 = vld [vmem:[%s381 + $0x20] sm:$0xff]
      %v1201 = vld [vmem:[%s381 + $0x28] sm:$0xff]
      %v1202 = vld [vmem:[%s381 + $0x30] sm:$0xff]
      %v1203 = vld [vmem:[%s381 + $0x38] sm:$0xff]
      %v1204 = vld [vmem:[%s381 + $0x40] sm:$0xff]
      %1214 = vrot.lane.b32.xlu0 %v1196, 60
      %v1215 = vpop.permute.xlu0 %1214
      %1216 = vrot.lane.b32.xlu0 %v1197, 60
      %v1217 = vpop.permute.xlu0 %1216
      %1218 = vrot.lane.b32.xlu0 %v1198, 60
      %v1219 = vpop.permute.xlu0 %1218
      %1220 = vrot.lane.b32.xlu0 %v1199, 60
      %v1221 = vpop.permute.xlu0 %1220
      %1222 = vrot.lane.b32.xlu0 %v1200, 60
      %v1223 = vpop.permute.xlu0 %1222
      %1224 = vrot.lane.b32.xlu0 %v1201, 60
      %v1225 = vpop.permute.xlu0 %1224
      %1226 = vrot.lane.b32.xlu0 %v1202, 60
      %v1227 = vpop.permute.xlu0 %1226
      %1228 = vrot.lane.b32.xlu0 %v1203, 60
      %v1229 = vpop.permute.xlu0 %1228
      %1230 = vrot.lane.b32.xlu0 %v1204, 60
      %v1231 = vpop.permute.xlu0 %1230
      %vm1232 = vcmask 490496
      %v1233 = vsel %vm1232, %v1215, %v1217
      %v1234 = vsel %vm1232, %v1217, %v1219
      %v1235 = vsel %vm1232, %v1219, %v1221
      %v1236 = vsel %vm1232, %v1221, %v1223
      %v1237 = vsel %vm1232, %v1223, %v1225
      %v1238 = vsel %vm1232, %v1225, %v1227
      %v1239 = vsel %vm1232, %v1227, %v1229
      %v1240 = vsel %vm1232, %v1229, %v1231
      %1249 = vst [vmem:[#allocation2 + $0x380] sm:$0xff] %v1233
      %1250 = vst [vmem:[#allocation2 + $0x388] sm:$0xff] %v1234
      %1251 = vst [vmem:[#allocation2 + $0x390] sm:$0xff] %v1235
      %1252 = vst [vmem:[#allocation2 + $0x398] sm:$0xff] %v1236
      %1253 = vst [vmem:[#allocation2 + $0x3a0] sm:$0xff] %v1237
      %1254 = vst [vmem:[#allocation2 + $0x3a8] sm:$0xff] %v1238
      %1255 = vst [vmem:[#allocation2 + $0x3b0] sm:$0xff] %v1239
      %1256 = vst [vmem:[#allocation2 + $0x3b8] sm:$0xff] %v1240
      %v1257 = vld [vmem:[%s381] sm:$0xff]
      %v1258 = vld [vmem:[%s381 + $0x8] sm:$0xff]
      %v1259 = vld [vmem:[%s381 + $0x10] sm:$0xff]
      %v1260 = vld [vmem:[%s381 + $0x18] sm:$0xff]
      %v1261 = vld [vmem:[%s381 + $0x20] sm:$0xff]
      %v1262 = vld [vmem:[%s381 + $0x28] sm:$0xff]
      %v1263 = vld [vmem:[%s381 + $0x30] sm:$0xff]
      %v1264 = vld [vmem:[%s381 + $0x38] sm:$0xff]
      %v1265 = vld [vmem:[%s381 + $0x40] sm:$0xff]
      %1275 = vrot.lane.b32.xlu0 %v1257, 32
      %v1276 = vpop.permute.xlu0 %1275
      %1277 = vrot.lane.b32.xlu0 %v1258, 32
      %v1278 = vpop.permute.xlu0 %1277
      %1279 = vrot.lane.b32.xlu0 %v1259, 32
      %v1280 = vpop.permute.xlu0 %1279
      %1281 = vrot.lane.b32.xlu0 %v1260, 32
      %v1282 = vpop.permute.xlu0 %1281
      %1283 = vrot.lane.b32.xlu0 %v1261, 32
      %v1284 = vpop.permute.xlu0 %1283
      %1285 = vrot.lane.b32.xlu0 %v1262, 32
      %v1286 = vpop.permute.xlu0 %1285
      %1287 = vrot.lane.b32.xlu0 %v1263, 32
      %v1288 = vpop.permute.xlu0 %1287
      %1289 = vrot.lane.b32.xlu0 %v1264, 32
      %v1290 = vpop.permute.xlu0 %1289
      %1291 = vrot.lane.b32.xlu0 %v1265, 32
      %v1292 = vpop.permute.xlu0 %1291
      %vm1293 = vcmask 261120
      %v1294 = vsel %vm1293, %v1276, %v1278
      %v1295 = vsel %vm1293, %v1278, %v1280
      %v1296 = vsel %vm1293, %v1280, %v1282
      %v1297 = vsel %vm1293, %v1282, %v1284
      %v1298 = vsel %vm1293, %v1284, %v1286
      %v1299 = vsel %vm1293, %v1286, %v1288
      %v1300 = vsel %vm1293, %v1288, %v1290
      %v1301 = vsel %vm1293, %v1290, %v1292
      %1310 = vst [vmem:[#allocation2 + $0x3c0] sm:$0xff] %v1294
      %1311 = vst [vmem:[#allocation2 + $0x3c8] sm:$0xff] %v1295
      %1312 = vst [vmem:[#allocation2 + $0x3d0] sm:$0xff] %v1296
      %1313 = vst [vmem:[#allocation2 + $0x3d8] sm:$0xff] %v1297
      %1314 = vst [vmem:[#allocation2 + $0x3e0] sm:$0xff] %v1298
      %1315 = vst [vmem:[#allocation2 + $0x3e8] sm:$0xff] %v1299
      %1316 = vst [vmem:[#allocation2 + $0x3f0] sm:$0xff] %v1300
      %1317 = vst [vmem:[#allocation2 + $0x3f8] sm:$0xff] %v1301
      %v1318 = vld [vmem:[%s381] sm:$0xff]
      %v1319 = vld [vmem:[%s381 + $0x8] sm:$0xff]
      %v1320 = vld [vmem:[%s381 + $0x10] sm:$0xff]
      %v1321 = vld [vmem:[%s381 + $0x18] sm:$0xff]
      %v1322 = vld [vmem:[%s381 + $0x20] sm:$0xff]
      %v1323 = vld [vmem:[%s381 + $0x28] sm:$0xff]
      %v1324 = vld [vmem:[%s381 + $0x30] sm:$0xff]
      %v1325 = vld [vmem:[%s381 + $0x38] sm:$0xff]
      %v1326 = vld [vmem:[%s381 + $0x40] sm:$0xff]
      %1336 = vrot.lane.b32.xlu0 %v1318, 31
      %v1337 = vpop.permute.xlu0 %1336
      %1338 = vrot.lane.b32.xlu0 %v1319, 31
      %v1339 = vpop.permute.xlu0 %1338
      %1340 = vrot.lane.b32.xlu0 %v1320, 31
      %v1341 = vpop.permute.xlu0 %1340
      %1342 = vrot.lane.b32.xlu0 %v1321, 31
      %v1343 = vpop.permute.xlu0 %1342
      %1344 = vrot.lane.b32.xlu0 %v1322, 31
      %v1345 = vpop.permute.xlu0 %1344
      %1346 = vrot.lane.b32.xlu0 %v1323, 31
      %v1347 = vpop.permute.xlu0 %1346
      %1348 = vrot.lane.b32.xlu0 %v1324, 31
      %v1349 = vpop.permute.xlu0 %1348
      %1350 = vrot.lane.b32.xlu0 %v1325, 31
      %v1351 = vpop.permute.xlu0 %1350
      %1352 = vrot.lane.b32.xlu0 %v1326, 31
      %v1353 = vpop.permute.xlu0 %1352
      %vm1354 = vcmask 252928
      %v1355 = vsel %vm1354, %v1337, %v1339
      %v1356 = vsel %vm1354, %v1339, %v1341
      %v1357 = vsel %vm1354, %v1341, %v1343
      %v1358 = vsel %vm1354, %v1343, %v1345
      %v1359 = vsel %vm1354, %v1345, %v1347
      %v1360 = vsel %vm1354, %v1347, %v1349
      %v1361 = vsel %vm1354, %v1349, %v1351
      %v1362 = vsel %vm1354, %v1351, %v1353
      %1371 = vst [vmem:[#allocation2 + $0x400] sm:$0xff] %v1355
      %1372 = vst [vmem:[#allocation2 + $0x408] sm:$0xff] %v1356
      %1373 = vst [vmem:[#allocation2 + $0x410] sm:$0xff] %v1357
      %1374 = vst [vmem:[#allocation2 + $0x418] sm:$0xff] %v1358
      %1375 = vst [vmem:[#allocation2 + $0x420] sm:$0xff] %v1359
      %1376 = vst [vmem:[#allocation2 + $0x428] sm:$0xff] %v1360
      %1377 = vst [vmem:[#allocation2 + $0x430] sm:$0xff] %v1361
      %1378 = vst [vmem:[#allocation2 + $0x438] sm:$0xff] %v1362
      %v1379 = vld [vmem:[%s381] sm:$0xff]
      %v1380 = vld [vmem:[%s381 + $0x8] sm:$0xff]
      %v1381 = vld [vmem:[%s381 + $0x10] sm:$0xff]
      %v1382 = vld [vmem:[%s381 + $0x18] sm:$0xff]
      %v1383 = vld [vmem:[%s381 + $0x20] sm:$0xff]
      %v1384 = vld [vmem:[%s381 + $0x28] sm:$0xff]
      %v1385 = vld [vmem:[%s381 + $0x30] sm:$0xff]
      %v1386 = vld [vmem:[%s381 + $0x38] sm:$0xff]
      %v1387 = vld [vmem:[%s381 + $0x40] sm:$0xff]
      %1397 = vrot.lane.b32.xlu0 %v1379, 30
      %v1398 = vpop.permute.xlu0 %1397
      %1399 = vrot.lane.b32.xlu0 %v1380, 30
      %v1400 = vpop.permute.xlu0 %1399
      %1401 = vrot.lane.b32.xlu0 %v1381, 30
      %v1402 = vpop.permute.xlu0 %1401
      %1403 = vrot.lane.b32.xlu0 %v1382, 30
      %v1404 = vpop.permute.xlu0 %1403
      %1405 = vrot.lane.b32.xlu0 %v1383, 30
      %v1406 = vpop.permute.xlu0 %1405
      %1407 = vrot.lane.b32.xlu0 %v1384, 30
      %v1408 = vpop.permute.xlu0 %1407
      %1409 = vrot.lane.b32.xlu0 %v1385, 30
      %v1410 = vpop.permute.xlu0 %1409
      %1411 = vrot.lane.b32.xlu0 %v1386, 30
      %v1412 = vpop.permute.xlu0 %1411
      %1413 = vrot.lane.b32.xlu0 %v1387, 30
      %v1414 = vpop.permute.xlu0 %1413
      %vm1415 = vcmask 244736
      %v1416 = vsel %vm1415, %v1398, %v1400
      %v1417 = vsel %vm1415, %v1400, %v1402
      %v1418 = vsel %vm1415, %v1402, %v1404
      %v1419 = vsel %vm1415, %v1404, %v1406
      %v1420 = vsel %vm1415, %v1406, %v1408
      %v1421 = vsel %vm1415, %v1408, %v1410
      %v1422 = vsel %vm1415, %v1410, %v1412
      %v1423 = vsel %vm1415, %v1412, %v1414
      %1432 = vst [vmem:[#allocation2 + $0x440] sm:$0xff] %v1416
      %1433 = vst [vmem:[#allocation2 + $0x448] sm:$0xff] %v1417
      %1434 = vst [vmem:[#allocation2 + $0x450] sm:$0xff] %v1418
      %1435 = vst [vmem:[#allocation2 + $0x458] sm:$0xff] %v1419
      %1436 = vst [vmem:[#allocation2 + $0x460] sm:$0xff] %v1420
      %1437 = vst [vmem:[#allocation2 + $0x468] sm:$0xff] %v1421
      %1438 = vst [vmem:[#allocation2 + $0x470] sm:$0xff] %v1422
      %1439 = vst [vmem:[#allocation2 + $0x478] sm:$0xff] %v1423
      %v1440 = vld [vmem:[%s381] sm:$0xff]
      %v1441 = vld [vmem:[%s381 + $0x8] sm:$0xff]
      %v1442 = vld [vmem:[%s381 + $0x10] sm:$0xff]
      %v1443 = vld [vmem:[%s381 + $0x18] sm:$0xff]
      %v1444 = vld [vmem:[%s381 + $0x20] sm:$0xff]
      %v1445 = vld [vmem:[%s381 + $0x28] sm:$0xff]
      %v1446 = vld [vmem:[%s381 + $0x30] sm:$0xff]
      %v1447 = vld [vmem:[%s381 + $0x38] sm:$0xff]
      %v1448 = vld [vmem:[%s381 + $0x40] sm:$0xff]
      %1458 = vrot.lane.b32.xlu0 %v1440, 29
      %v1459 = vpop.permute.xlu0 %1458
      %1460 = vrot.lane.b32.xlu0 %v1441, 29
      %v1461 = vpop.permute.xlu0 %1460
      %1462 = vrot.lane.b32.xlu0 %v1442, 29
      %v1463 = vpop.permute.xlu0 %1462
      %1464 = vrot.lane.b32.xlu0 %v1443, 29
      %v1465 = vpop.permute.xlu0 %1464
      %1466 = vrot.lane.b32.xlu0 %v1444, 29
      %v1467 = vpop.permute.xlu0 %1466
      %1468 = vrot.lane.b32.xlu0 %v1445, 29
      %v1469 = vpop.permute.xlu0 %1468
      %1470 = vrot.lane.b32.xlu0 %v1446, 29
      %v1471 = vpop.permute.xlu0 %1470
      %1472 = vrot.lane.b32.xlu0 %v1447, 29
      %v1473 = vpop.permute.xlu0 %1472
      %1474 = vrot.lane.b32.xlu0 %v1448, 29
      %v1475 = vpop.permute.xlu0 %1474
      %vm1476 = vcmask 236544
      %v1477 = vsel %vm1476, %v1459, %v1461
      %v1478 = vsel %vm1476, %v1461, %v1463
      %v1479 = vsel %vm1476, %v1463, %v1465
      %v1480 = vsel %vm1476, %v1465, %v1467
      %v1481 = vsel %vm1476, %v1467, %v1469
      %v1482 = vsel %vm1476, %v1469, %v1471
      %v1483 = vsel %vm1476, %v1471, %v1473
      %v1484 = vsel %vm1476, %v1473, %v1475
      %1493 = vst [vmem:[#allocation2 + $0x480] sm:$0xff] %v1477
      %1494 = vst [vmem:[#allocation2 + $0x488] sm:$0xff] %v1478
      %1495 = vst [vmem:[#allocation2 + $0x490] sm:$0xff] %v1479
      %1496 = vst [vmem:[#allocation2 + $0x498] sm:$0xff] %v1480
      %1497 = vst [vmem:[#allocation2 + $0x4a0] sm:$0xff] %v1481
      %1498 = vst [vmem:[#allocation2 + $0x4a8] sm:$0xff] %v1482
      %1499 = vst [vmem:[#allocation2 + $0x4b0] sm:$0xff] %v1483
      %1500 = vst [vmem:[#allocation2 + $0x4b8] sm:$0xff] %v1484
      %v1501 = vld [vmem:[%s381] sm:$0xff]
      %v1502 = vld [vmem:[%s381 + $0x8] sm:$0xff]
      %v1503 = vld [vmem:[%s381 + $0x10] sm:$0xff]
      %v1504 = vld [vmem:[%s381 + $0x18] sm:$0xff]
      %v1505 = vld [vmem:[%s381 + $0x20] sm:$0xff]
      %v1506 = vld [vmem:[%s381 + $0x28] sm:$0xff]
      %v1507 = vld [vmem:[%s381 + $0x30] sm:$0xff]
      %v1508 = vld [vmem:[%s381 + $0x38] sm:$0xff]
      %v1509 = vld [vmem:[%s381 + $0x40] sm:$0xff]
      %1519 = vrot.lane.b32.xlu0 %v1501, 28
      %v1520 = vpop.permute.xlu0 %1519
      %1521 = vrot.lane.b32.xlu0 %v1502, 28
      %v1522 = vpop.permute.xlu0 %1521
      %1523 = vrot.lane.b32.xlu0 %v1503, 28
      %v1524 = vpop.permute.xlu0 %1523
      %1525 = vrot.lane.b32.xlu0 %v1504, 28
      %v1526 = vpop.permute.xlu0 %1525
      %1527 = vrot.lane.b32.xlu0 %v1505, 28
      %v1528 = vpop.permute.xlu0 %1527
      %1529 = vrot.lane.b32.xlu0 %v1506, 28
      %v1530 = vpop.permute.xlu0 %1529
      %1531 = vrot.lane.b32.xlu0 %v1507, 28
      %v1532 = vpop.permute.xlu0 %1531
      %1533 = vrot.lane.b32.xlu0 %v1508, 28
      %v1534 = vpop.permute.xlu0 %1533
      %1535 = vrot.lane.b32.xlu0 %v1509, 28
      %v1536 = vpop.permute.xlu0 %1535
      %vm1537 = vcmask 228352
      %v1538 = vsel %vm1537, %v1520, %v1522
      %v1539 = vsel %vm1537, %v1522, %v1524
      %v1540 = vsel %vm1537, %v1524, %v1526
      %v1541 = vsel %vm1537, %v1526, %v1528
      %v1542 = vsel %vm1537, %v1528, %v1530
      %v1543 = vsel %vm1537, %v1530, %v1532
      %v1544 = vsel %vm1537, %v1532, %v1534
      %v1545 = vsel %vm1537, %v1534, %v1536
      %1554 = vst [vmem:[#allocation2 + $0x4c0] sm:$0xff] %v1538
      %1555 = vst [vmem:[#allocation2 + $0x4c8] sm:$0xff] %v1539
      %1556 = vst [vmem:[#allocation2 + $0x4d0] sm:$0xff] %v1540
      %1557 = vst [vmem:[#allocation2 + $0x4d8] sm:$0xff] %v1541
      %1558 = vst [vmem:[#allocation2 + $0x4e0] sm:$0xff] %v1542
      %1559 = vst [vmem:[#allocation2 + $0x4e8] sm:$0xff] %v1543
      %1560 = vst [vmem:[#allocation2 + $0x4f0] sm:$0xff] %v1544
      %1561 = vst [vmem:[#allocation2 + $0x4f8] sm:$0xff] %v1545
      %v1562 = vld [vmem:[%s381 + $0x8] sm:$0xff]
      %v1563 = vld [vmem:[%s381 + $0x10] sm:$0xff]
      %v1564 = vld [vmem:[%s381 + $0x18] sm:$0xff]
      %v1565 = vld [vmem:[%s381 + $0x20] sm:$0xff]
      %v1566 = vld [vmem:[%s381 + $0x28] sm:$0xff]
      %v1567 = vld [vmem:[%s381 + $0x30] sm:$0xff]
      %v1568 = vld [vmem:[%s381 + $0x38] sm:$0xff]
      %v1569 = vld [vmem:[%s381 + $0x40] sm:$0xff]
      %1570 = vst [vmem:[#allocation2 + $0x500] sm:$0xff] %v1562
      %1571 = vst [vmem:[#allocation2 + $0x508] sm:$0xff] %v1563
      %1572 = vst [vmem:[#allocation2 + $0x510] sm:$0xff] %v1564
      %1573 = vst [vmem:[#allocation2 + $0x518] sm:$0xff] %v1565
      %1574 = vst [vmem:[#allocation2 + $0x520] sm:$0xff] %v1566
      %1575 = vst [vmem:[#allocation2 + $0x528] sm:$0xff] %v1567
      %1576 = vst [vmem:[#allocation2 + $0x530] sm:$0xff] %v1568
      %1577 = vst [vmem:[#allocation2 + $0x538] sm:$0xff] %v1569
      %v1578 = vld [vmem:[%s381 + $0x8] sm:$0xff]
      %v1579 = vld [vmem:[%s381 + $0x10] sm:$0xff]
      %v1580 = vld [vmem:[%s381 + $0x18] sm:$0xff]
      %v1581 = vld [vmem:[%s381 + $0x20] sm:$0xff]
      %v1582 = vld [vmem:[%s381 + $0x28] sm:$0xff]
      %v1583 = vld [vmem:[%s381 + $0x30] sm:$0xff]
      %v1584 = vld [vmem:[%s381 + $0x38] sm:$0xff]
      %v1585 = vld [vmem:[%s381 + $0x40] sm:$0xff]
      %v1586 = vld [vmem:[%s381 + $0x48] sm:$0xff]
      %1596 = vrot.lane.b32.xlu0 %v1578, 127
      %v1597 = vpop.permute.xlu0 %1596
      %1598 = vrot.lane.b32.xlu0 %v1579, 127
      %v1599 = vpop.permute.xlu0 %1598
      %1600 = vrot.lane.b32.xlu0 %v1580, 127
      %v1601 = vpop.permute.xlu0 %1600
      %1602 = vrot.lane.b32.xlu0 %v1581, 127
      %v1603 = vpop.permute.xlu0 %1602
      %1604 = vrot.lane.b32.xlu0 %v1582, 127
      %v1605 = vpop.permute.xlu0 %1604
      %1606 = vrot.lane.b32.xlu0 %v1583, 127
      %v1607 = vpop.permute.xlu0 %1606
      %1608 = vrot.lane.b32.xlu0 %v1584, 127
      %v1609 = vpop.permute.xlu0 %1608
      %1610 = vrot.lane.b32.xlu0 %v1585, 127
      %v1611 = vpop.permute.xlu0 %1610
      %1612 = vrot.lane.b32.xlu0 %v1586, 127
      %v1613 = vpop.permute.xlu0 %1612
      %v1614 = vsel %vm439, %v1597, %v1599
      %v1615 = vsel %vm439, %v1599, %v1601
      %v1616 = vsel %vm439, %v1601, %v1603
      %v1617 = vsel %vm439, %v1603, %v1605
      %v1618 = vsel %vm439, %v1605, %v1607
      %v1619 = vsel %vm439, %v1607, %v1609
      %v1620 = vsel %vm439, %v1609, %v1611
      %v1621 = vsel %vm439, %v1611, %v1613
      %1630 = vst [vmem:[#allocation2 + $0x540] sm:$0xff] %v1614
      %1631 = vst [vmem:[#allocation2 + $0x548] sm:$0xff] %v1615
      %1632 = vst [vmem:[#allocation2 + $0x550] sm:$0xff] %v1616
      %1633 = vst [vmem:[#allocation2 + $0x558] sm:$0xff] %v1617
      %1634 = vst [vmem:[#allocation2 + $0x560] sm:$0xff] %v1618
      %1635 = vst [vmem:[#allocation2 + $0x568] sm:$0xff] %v1619
      %1636 = vst [vmem:[#allocation2 + $0x570] sm:$0xff] %v1620
      %1637 = vst [vmem:[#allocation2 + $0x578] sm:$0xff] %v1621
      %v1638 = vld [vmem:[%s381 + $0x8] sm:$0xff]
      %v1639 = vld [vmem:[%s381 + $0x10] sm:$0xff]
      %v1640 = vld [vmem:[%s381 + $0x18] sm:$0xff]
      %v1641 = vld [vmem:[%s381 + $0x20] sm:$0xff]
      %v1642 = vld [vmem:[%s381 + $0x28] sm:$0xff]
      %v1643 = vld [vmem:[%s381 + $0x30] sm:$0xff]
      %v1644 = vld [vmem:[%s381 + $0x38] sm:$0xff]
      %v1645 = vld [vmem:[%s381 + $0x40] sm:$0xff]
      %v1646 = vld [vmem:[%s381 + $0x48] sm:$0xff]
      %1656 = vrot.lane.b32.xlu0 %v1638, 126
      %v1657 = vpop.permute.xlu0 %1656
      %1658 = vrot.lane.b32.xlu0 %v1639, 126
      %v1659 = vpop.permute.xlu0 %1658
      %1660 = vrot.lane.b32.xlu0 %v1640, 126
      %v1661 = vpop.permute.xlu0 %1660
      %1662 = vrot.lane.b32.xlu0 %v1641, 126
      %v1663 = vpop.permute.xlu0 %1662
      %1664 = vrot.lane.b32.xlu0 %v1642, 126
      %v1665 = vpop.permute.xlu0 %1664
      %1666 = vrot.lane.b32.xlu0 %v1643, 126
      %v1667 = vpop.permute.xlu0 %1666
      %1668 = vrot.lane.b32.xlu0 %v1644, 126
      %v1669 = vpop.permute.xlu0 %1668
      %1670 = vrot.lane.b32.xlu0 %v1645, 126
      %v1671 = vpop.permute.xlu0 %1670
      %1672 = vrot.lane.b32.xlu0 %v1646, 126
      %v1673 = vpop.permute.xlu0 %1672
      %v1674 = vsel %vm500, %v1657, %v1659
      %v1675 = vsel %vm500, %v1659, %v1661
      %v1676 = vsel %vm500, %v1661, %v1663
      %v1677 = vsel %vm500, %v1663, %v1665
      %v1678 = vsel %vm500, %v1665, %v1667
      %v1679 = vsel %vm500, %v1667, %v1669
      %v1680 = vsel %vm500, %v1669, %v1671
      %v1681 = vsel %vm500, %v1671, %v1673
      %1690 = vst [vmem:[#allocation2 + $0x580] sm:$0xff] %v1674
      %1691 = vst [vmem:[#allocation2 + $0x588] sm:$0xff] %v1675
      %1692 = vst [vmem:[#allocation2 + $0x590] sm:$0xff] %v1676
      %1693 = vst [vmem:[#allocation2 + $0x598] sm:$0xff] %v1677
      %1694 = vst [vmem:[#allocation2 + $0x5a0] sm:$0xff] %v1678
      %1695 = vst [vmem:[#allocation2 + $0x5a8] sm:$0xff] %v1679
      %1696 = vst [vmem:[#allocation2 + $0x5b0] sm:$0xff] %v1680
      %1697 = vst [vmem:[#allocation2 + $0x5b8] sm:$0xff] %v1681
      %v1698 = vld [vmem:[%s381 + $0x8] sm:$0xff]
      %v1699 = vld [vmem:[%s381 + $0x10] sm:$0xff]
      %v1700 = vld [vmem:[%s381 + $0x18] sm:$0xff]
      %v1701 = vld [vmem:[%s381 + $0x20] sm:$0xff]
      %v1702 = vld [vmem:[%s381 + $0x28] sm:$0xff]
      %v1703 = vld [vmem:[%s381 + $0x30] sm:$0xff]
      %v1704 = vld [vmem:[%s381 + $0x38] sm:$0xff]
      %v1705 = vld [vmem:[%s381 + $0x40] sm:$0xff]
      %v1706 = vld [vmem:[%s381 + $0x48] sm:$0xff]
      %1716 = vrot.lane.b32.xlu0 %v1698, 125
      %v1717 = vpop.permute.xlu0 %1716
      %1718 = vrot.lane.b32.xlu0 %v1699, 125
      %v1719 = vpop.permute.xlu0 %1718
      %1720 = vrot.lane.b32.xlu0 %v1700, 125
      %v1721 = vpop.permute.xlu0 %1720
      %1722 = vrot.lane.b32.xlu0 %v1701, 125
      %v1723 = vpop.permute.xlu0 %1722
      %1724 = vrot.lane.b32.xlu0 %v1702, 125
      %v1725 = vpop.permute.xlu0 %1724
      %1726 = vrot.lane.b32.xlu0 %v1703, 125
      %v1727 = vpop.permute.xlu0 %1726
      %1728 = vrot.lane.b32.xlu0 %v1704, 125
      %v1729 = vpop.permute.xlu0 %1728
      %1730 = vrot.lane.b32.xlu0 %v1705, 125
      %v1731 = vpop.permute.xlu0 %1730
      %1732 = vrot.lane.b32.xlu0 %v1706, 125
      %v1733 = vpop.permute.xlu0 %1732
      %v1734 = vsel %vm561, %v1717, %v1719
      %v1735 = vsel %vm561, %v1719, %v1721
      %v1736 = vsel %vm561, %v1721, %v1723
      %v1737 = vsel %vm561, %v1723, %v1725
      %v1738 = vsel %vm561, %v1725, %v1727
      %v1739 = vsel %vm561, %v1727, %v1729
      %v1740 = vsel %vm561, %v1729, %v1731
      %v1741 = vsel %vm561, %v1731, %v1733
      %1750 = vst [vmem:[#allocation2 + $0x5c0] sm:$0xff] %v1734
      %1751 = vst [vmem:[#allocation2 + $0x5c8] sm:$0xff] %v1735
      %1752 = vst [vmem:[#allocation2 + $0x5d0] sm:$0xff] %v1736
      %1753 = vst [vmem:[#allocation2 + $0x5d8] sm:$0xff] %v1737
      %1754 = vst [vmem:[#allocation2 + $0x5e0] sm:$0xff] %v1738
      %1755 = vst [vmem:[#allocation2 + $0x5e8] sm:$0xff] %v1739
      %1756 = vst [vmem:[#allocation2 + $0x5f0] sm:$0xff] %v1740
      %1757 = vst [vmem:[#allocation2 + $0x5f8] sm:$0xff] %v1741
      %v1758 = vld [vmem:[%s381 + $0x8] sm:$0xff]
      %v1759 = vld [vmem:[%s381 + $0x10] sm:$0xff]
      %v1760 = vld [vmem:[%s381 + $0x18] sm:$0xff]
      %v1761 = vld [vmem:[%s381 + $0x20] sm:$0xff]
      %v1762 = vld [vmem:[%s381 + $0x28] sm:$0xff]
      %v1763 = vld [vmem:[%s381 + $0x30] sm:$0xff]
      %v1764 = vld [vmem:[%s381 + $0x38] sm:$0xff]
      %v1765 = vld [vmem:[%s381 + $0x40] sm:$0xff]
      %v1766 = vld [vmem:[%s381 + $0x48] sm:$0xff]
      %1776 = vrot.lane.b32.xlu0 %v1758, 124
      %v1777 = vpop.permute.xlu0 %1776
      %1778 = vrot.lane.b32.xlu0 %v1759, 124
      %v1779 = vpop.permute.xlu0 %1778
      %1780 = vrot.lane.b32.xlu0 %v1760, 124
      %v1781 = vpop.permute.xlu0 %1780
      %1782 = vrot.lane.b32.xlu0 %v1761, 124
      %v1783 = vpop.permute.xlu0 %1782
      %1784 = vrot.lane.b32.xlu0 %v1762, 124
      %v1785 = vpop.permute.xlu0 %1784
      %1786 = vrot.lane.b32.xlu0 %v1763, 124
      %v1787 = vpop.permute.xlu0 %1786
      %1788 = vrot.lane.b32.xlu0 %v1764, 124
      %v1789 = vpop.permute.xlu0 %1788
      %1790 = vrot.lane.b32.xlu0 %v1765, 124
      %v1791 = vpop.permute.xlu0 %1790
      %1792 = vrot.lane.b32.xlu0 %v1766, 124
      %v1793 = vpop.permute.xlu0 %1792
      %v1794 = vsel %vm622, %v1777, %v1779
      %v1795 = vsel %vm622, %v1779, %v1781
      %v1796 = vsel %vm622, %v1781, %v1783
      %v1797 = vsel %vm622, %v1783, %v1785
      %v1798 = vsel %vm622, %v1785, %v1787
      %v1799 = vsel %vm622, %v1787, %v1789
      %v1800 = vsel %vm622, %v1789, %v1791
      %v1801 = vsel %vm622, %v1791, %v1793
      %1810 = vst [vmem:[#allocation2 + $0x600] sm:$0xff] %v1794
      %1811 = vst [vmem:[#allocation2 + $0x608] sm:$0xff] %v1795
      %1812 = vst [vmem:[#allocation2 + $0x610] sm:$0xff] %v1796
      %1813 = vst [vmem:[#allocation2 + $0x618] sm:$0xff] %v1797
      %1814 = vst [vmem:[#allocation2 + $0x620] sm:$0xff] %v1798
      %1815 = vst [vmem:[#allocation2 + $0x628] sm:$0xff] %v1799
      %1816 = vst [vmem:[#allocation2 + $0x630] sm:$0xff] %v1800
      %1817 = vst [vmem:[#allocation2 + $0x638] sm:$0xff] %v1801
      %v1818 = vld [vmem:[%s1] sm:$0xff]
      %v1819 = vld [vmem:[%s1 + $0x8] sm:$0xff]
      %v1820 = vld [vmem:[#allocation2] sm:$0xff]
      %v1821 = vld [vmem:[#allocation2 + $0x8] sm:$0xff]
      %v1822 = vld [vmem:[#allocation2 + $0x10] sm:$0xff]
      %v1823 = vld [vmem:[#allocation2 + $0x18] sm:$0xff]
      %v1824 = vld [vmem:[#allocation2 + $0x20] sm:$0xff]
      %v1825 = vld [vmem:[#allocation2 + $0x28] sm:$0xff]
      %v1826 = vld [vmem:[#allocation2 + $0x30] sm:$0xff]
      %v1827 = vld [vmem:[#allocation2 + $0x38] sm:$0xff]
      %v1828 = vld [vmem:[#allocation2 + $0x40] sm:$0xff]
      %v1829 = vld [vmem:[#allocation2 + $0x48] sm:$0xff]
      %v1830 = vld [vmem:[#allocation2 + $0x50] sm:$0xff]
      %v1831 = vld [vmem:[#allocation2 + $0x58] sm:$0xff]
      %v1832 = vld [vmem:[#allocation2 + $0x60] sm:$0xff]
      %v1833 = vld [vmem:[#allocation2 + $0x68] sm:$0xff]
      %v1834 = vld [vmem:[#allocation2 + $0x70] sm:$0xff]
      %v1835 = vld [vmem:[#allocation2 + $0x78] sm:$0xff]
      %v1836 = vld [vmem:[#allocation2 + $0x80] sm:$0xff]
      %v1837 = vld [vmem:[#allocation2 + $0x88] sm:$0xff]
      %v1838 = vld [vmem:[#allocation2 + $0x90] sm:$0xff]
      %v1839 = vld [vmem:[#allocation2 + $0x98] sm:$0xff]
      %v1840 = vld [vmem:[#allocation2 + $0xa0] sm:$0xff]
      %v1841 = vld [vmem:[#allocation2 + $0xa8] sm:$0xff]
      %v1842 = vld [vmem:[#allocation2 + $0xb0] sm:$0xff]
      %v1843 = vld [vmem:[#allocation2 + $0xb8] sm:$0xff]
      %v1844 = vld [vmem:[#allocation2 + $0xc0] sm:$0xff]
      %v1845 = vld [vmem:[#allocation2 + $0xc8] sm:$0xff]
      %v1846 = vld [vmem:[#allocation2 + $0xd0] sm:$0xff]
      %v1847 = vld [vmem:[#allocation2 + $0xd8] sm:$0xff]
      %v1848 = vld [vmem:[#allocation2 + $0xe0] sm:$0xff]
      %v1849 = vld [vmem:[#allocation2 + $0xe8] sm:$0xff]
      %v1850 = vld [vmem:[#allocation2 + $0xf0] sm:$0xff]
      %v1851 = vld [vmem:[#allocation2 + $0xf8] sm:$0xff]
      %v1852 = vld [vmem:[#allocation2 + $0x100] sm:$0xff]
      %v1853 = vld [vmem:[#allocation2 + $0x108] sm:$0xff]
      %v1854 = vld [vmem:[#allocation2 + $0x110] sm:$0xff]
      %v1855 = vld [vmem:[#allocation2 + $0x118] sm:$0xff]
      %v1856 = vld [vmem:[#allocation2 + $0x120] sm:$0xff]
      %v1857 = vld [vmem:[#allocation2 + $0x128] sm:$0xff]
      %v1858 = vld [vmem:[#allocation2 + $0x130] sm:$0xff]
      %v1859 = vld [vmem:[#allocation2 + $0x138] sm:$0xff]
      %v1860 = vld [vmem:[#allocation2 + $0x140] sm:$0xff]
      %v1861 = vld [vmem:[#allocation2 + $0x148] sm:$0xff]
      %v1862 = vld [vmem:[#allocation2 + $0x150] sm:$0xff]
      %v1863 = vld [vmem:[#allocation2 + $0x158] sm:$0xff]
      %v1864 = vld [vmem:[#allocation2 + $0x160] sm:$0xff]
      %v1865 = vld [vmem:[#allocation2 + $0x168] sm:$0xff]
      %v1866 = vld [vmem:[#allocation2 + $0x170] sm:$0xff]
      %v1867 = vld [vmem:[#allocation2 + $0x178] sm:$0xff]
      %v1868 = vld [vmem:[#allocation2 + $0x180] sm:$0xff]
      %v1869 = vld [vmem:[#allocation2 + $0x188] sm:$0xff]
      %v1870 = vld [vmem:[#allocation2 + $0x190] sm:$0xff]
      %v1871 = vld [vmem:[#allocation2 + $0x198] sm:$0xff]
      %v1872 = vld [vmem:[#allocation2 + $0x1a0] sm:$0xff]
      %v1873 = vld [vmem:[#allocation2 + $0x1a8] sm:$0xff]
      %v1874 = vld [vmem:[#allocation2 + $0x1b0] sm:$0xff]
      %v1875 = vld [vmem:[#allocation2 + $0x1b8] sm:$0xff]
      %v1876 = vld [vmem:[#allocation2 + $0x1c0] sm:$0xff]
      %v1877 = vld [vmem:[#allocation2 + $0x1c8] sm:$0xff]
      %v1878 = vld [vmem:[#allocation2 + $0x1d0] sm:$0xff]
      %v1879 = vld [vmem:[#allocation2 + $0x1d8] sm:$0xff]
      %v1880 = vld [vmem:[#allocation2 + $0x1e0] sm:$0xff]
      %v1881 = vld [vmem:[#allocation2 + $0x1e8] sm:$0xff]
      %v1882 = vld [vmem:[#allocation2 + $0x1f0] sm:$0xff]
      %v1883 = vld [vmem:[#allocation2 + $0x1f8] sm:$0xff]
      %v1884 = vld [vmem:[#allocation2 + $0x200] sm:$0xff]
      %v1885 = vld [vmem:[#allocation2 + $0x208] sm:$0xff]
      %v1886 = vld [vmem:[#allocation2 + $0x210] sm:$0xff]
      %v1887 = vld [vmem:[#allocation2 + $0x218] sm:$0xff]
      %v1888 = vld [vmem:[#allocation2 + $0x220] sm:$0xff]
      %v1889 = vld [vmem:[#allocation2 + $0x228] sm:$0xff]
      %v1890 = vld [vmem:[#allocation2 + $0x230] sm:$0xff]
      %v1891 = vld [vmem:[#allocation2 + $0x238] sm:$0xff]
      %v1892 = vld [vmem:[#allocation2 + $0x240] sm:$0xff]
      %v1893 = vld [vmem:[#allocation2 + $0x248] sm:$0xff]
      %v1894 = vld [vmem:[#allocation2 + $0x250] sm:$0xff]
      %v1895 = vld [vmem:[#allocation2 + $0x258] sm:$0xff]
      %v1896 = vld [vmem:[#allocation2 + $0x260] sm:$0xff]
      %v1897 = vld [vmem:[#allocation2 + $0x268] sm:$0xff]
      %v1898 = vld [vmem:[#allocation2 + $0x270] sm:$0xff]
      %v1899 = vld [vmem:[#allocation2 + $0x278] sm:$0xff]
      %v1900 = vld [vmem:[#allocation2 + $0x280] sm:$0xff]
      %v1901 = vld [vmem:[#allocation2 + $0x288] sm:$0xff]
      %v1902 = vld [vmem:[#allocation2 + $0x290] sm:$0xff]
      %v1903 = vld [vmem:[#allocation2 + $0x298] sm:$0xff]
      %v1904 = vld [vmem:[#allocation2 + $0x2a0] sm:$0xff]
      %v1905 = vld [vmem:[#allocation2 + $0x2a8] sm:$0xff]
      %v1906 = vld [vmem:[#allocation2 + $0x2b0] sm:$0xff]
      %v1907 = vld [vmem:[#allocation2 + $0x2b8] sm:$0xff]
      %v1908 = vld [vmem:[#allocation2 + $0x2c0] sm:$0xff]
      %v1909 = vld [vmem:[#allocation2 + $0x2c8] sm:$0xff]
      %v1910 = vld [vmem:[#allocation2 + $0x2d0] sm:$0xff]
      %v1911 = vld [vmem:[#allocation2 + $0x2d8] sm:$0xff]
      %v1912 = vld [vmem:[#allocation2 + $0x2e0] sm:$0xff]
      %v1913 = vld [vmem:[#allocation2 + $0x2e8] sm:$0xff]
      %v1914 = vld [vmem:[#allocation2 + $0x2f0] sm:$0xff]
      %v1915 = vld [vmem:[#allocation2 + $0x2f8] sm:$0xff]
      %v1916 = vld [vmem:[#allocation2 + $0x300] sm:$0xff]
      %v1917 = vld [vmem:[#allocation2 + $0x308] sm:$0xff]
      %v1918 = vld [vmem:[#allocation2 + $0x310] sm:$0xff]
      %v1919 = vld [vmem:[#allocation2 + $0x318] sm:$0xff]
      %v1920 = vld [vmem:[#allocation2 + $0x320] sm:$0xff]
      %v1921 = vld [vmem:[#allocation2 + $0x328] sm:$0xff]
      %v1922 = vld [vmem:[#allocation2 + $0x330] sm:$0xff]
      %v1923 = vld [vmem:[#allocation2 + $0x338] sm:$0xff]
      %v1924 = vld [vmem:[#allocation2 + $0x340] sm:$0xff]
      %v1925 = vld [vmem:[#allocation2 + $0x348] sm:$0xff]
      %v1926 = vld [vmem:[#allocation2 + $0x350] sm:$0xff]
      %v1927 = vld [vmem:[#allocation2 + $0x358] sm:$0xff]
      %v1928 = vld [vmem:[#allocation2 + $0x360] sm:$0xff]
      %v1929 = vld [vmem:[#allocation2 + $0x368] sm:$0xff]
      %v1930 = vld [vmem:[#allocation2 + $0x370] sm:$0xff]
      %v1931 = vld [vmem:[#allocation2 + $0x378] sm:$0xff]
      %v1932 = vld [vmem:[#allocation2 + $0x380] sm:$0xff]
      %v1933 = vld [vmem:[#allocation2 + $0x388] sm:$0xff]
      %v1934 = vld [vmem:[#allocation2 + $0x390] sm:$0xff]
      %v1935 = vld [vmem:[#allocation2 + $0x398] sm:$0xff]
      %v1936 = vld [vmem:[#allocation2 + $0x3a0] sm:$0xff]
      %v1937 = vld [vmem:[#allocation2 + $0x3a8] sm:$0xff]
      %v1938 = vld [vmem:[#allocation2 + $0x3b0] sm:$0xff]
      %v1939 = vld [vmem:[#allocation2 + $0x3b8] sm:$0xff]
      %v1940 = vld [vmem:[#allocation2 + $0x3c0] sm:$0xff]
      %v1941 = vld [vmem:[#allocation2 + $0x3c8] sm:$0xff]
      %v1942 = vld [vmem:[#allocation2 + $0x3d0] sm:$0xff]
      %v1943 = vld [vmem:[#allocation2 + $0x3d8] sm:$0xff]
      %v1944 = vld [vmem:[#allocation2 + $0x3e0] sm:$0xff]
      %v1945 = vld [vmem:[#allocation2 + $0x3e8] sm:$0xff]
      %v1946 = vld [vmem:[#allocation2 + $0x3f0] sm:$0xff]
      %v1947 = vld [vmem:[#allocation2 + $0x3f8] sm:$0xff]
      %v1948 = vld [vmem:[#allocation2 + $0x400] sm:$0xff]
      %v1949 = vld [vmem:[#allocation2 + $0x408] sm:$0xff]
      %v1950 = vld [vmem:[#allocation2 + $0x410] sm:$0xff]
      %v1951 = vld [vmem:[#allocation2 + $0x418] sm:$0xff]
      %v1952 = vld [vmem:[#allocation2 + $0x420] sm:$0xff]
      %v1953 = vld [vmem:[#allocation2 + $0x428] sm:$0xff]
      %v1954 = vld [vmem:[#allocation2 + $0x430] sm:$0xff]
      %v1955 = vld [vmem:[#allocation2 + $0x438] sm:$0xff]
      %v1956 = vld [vmem:[#allocation2 + $0x440] sm:$0xff]
      %v1957 = vld [vmem:[#allocation2 + $0x448] sm:$0xff]
      %v1958 = vld [vmem:[#allocation2 + $0x450] sm:$0xff]
      %v1959 = vld [vmem:[#allocation2 + $0x458] sm:$0xff]
      %v1960 = vld [vmem:[#allocation2 + $0x460] sm:$0xff]
      %v1961 = vld [vmem:[#allocation2 + $0x468] sm:$0xff]
      %v1962 = vld [vmem:[#allocation2 + $0x470] sm:$0xff]
      %v1963 = vld [vmem:[#allocation2 + $0x478] sm:$0xff]
      %v1964 = vld [vmem:[#allocation2 + $0x480] sm:$0xff]
      %v1965 = vld [vmem:[#allocation2 + $0x488] sm:$0xff]
      %v1966 = vld [vmem:[#allocation2 + $0x490] sm:$0xff]
      %v1967 = vld [vmem:[#allocation2 + $0x498] sm:$0xff]
      %v1968 = vld [vmem:[#allocation2 + $0x4a0] sm:$0xff]
      %v1969 = vld [vmem:[#allocation2 + $0x4a8] sm:$0xff]
      %v1970 = vld [vmem:[#allocation2 + $0x4b0] sm:$0xff]
      %v1971 = vld [vmem:[#allocation2 + $0x4b8] sm:$0xff]
      %v1972 = vld [vmem:[#allocation2 + $0x4c0] sm:$0xff]
      %v1973 = vld [vmem:[#allocation2 + $0x4c8] sm:$0xff]
      %v1974 = vld [vmem:[#allocation2 + $0x4d0] sm:$0xff]
      %v1975 = vld [vmem:[#allocation2 + $0x4d8] sm:$0xff]
      %v1976 = vld [vmem:[#allocation2 + $0x4e0] sm:$0xff]
      %v1977 = vld [vmem:[#allocation2 + $0x4e8] sm:$0xff]
      %v1978 = vld [vmem:[#allocation2 + $0x4f0] sm:$0xff]
      %v1979 = vld [vmem:[#allocation2 + $0x4f8] sm:$0xff]
      %v1980 = vld [vmem:[#allocation2 + $0x500] sm:$0xff]
      %v1981 = vld [vmem:[#allocation2 + $0x508] sm:$0xff]
      %v1982 = vld [vmem:[#allocation2 + $0x510] sm:$0xff]
      %v1983 = vld [vmem:[#allocation2 + $0x518] sm:$0xff]
      %v1984 = vld [vmem:[#allocation2 + $0x520] sm:$0xff]
      %v1985 = vld [vmem:[#allocation2 + $0x528] sm:$0xff]
      %v1986 = vld [vmem:[#allocation2 + $0x530] sm:$0xff]
      %v1987 = vld [vmem:[#allocation2 + $0x538] sm:$0xff]
      %v1988 = vld [vmem:[#allocation2 + $0x540] sm:$0xff]
      %v1989 = vld [vmem:[#allocation2 + $0x548] sm:$0xff]
      %v1990 = vld [vmem:[#allocation2 + $0x550] sm:$0xff]
      %v1991 = vld [vmem:[#allocation2 + $0x558] sm:$0xff]
      %v1992 = vld [vmem:[#allocation2 + $0x560] sm:$0xff]
      %v1993 = vld [vmem:[#allocation2 + $0x568] sm:$0xff]
      %v1994 = vld [vmem:[#allocation2 + $0x570] sm:$0xff]
      %v1995 = vld [vmem:[#allocation2 + $0x578] sm:$0xff]
      %v1996 = vld [vmem:[#allocation2 + $0x580] sm:$0xff]
      %v1997 = vld [vmem:[#allocation2 + $0x588] sm:$0xff]
      %v1998 = vld [vmem:[#allocation2 + $0x590] sm:$0xff]
      %v1999 = vld [vmem:[#allocation2 + $0x598] sm:$0xff]
      %v2000 = vld [vmem:[#allocation2 + $0x5a0] sm:$0xff]
      %v2001 = vld [vmem:[#allocation2 + $0x5a8] sm:$0xff]
      %v2002 = vld [vmem:[#allocation2 + $0x5b0] sm:$0xff]
      %v2003 = vld [vmem:[#allocation2 + $0x5b8] sm:$0xff]
      %v2004 = vld [vmem:[#allocation2 + $0x5c0] sm:$0xff]
      %v2005 = vld [vmem:[#allocation2 + $0x5c8] sm:$0xff]
      %v2006 = vld [vmem:[#allocation2 + $0x5d0] sm:$0xff]
      %v2007 = vld [vmem:[#allocation2 + $0x5d8] sm:$0xff]
      %v2008 = vld [vmem:[#allocation2 + $0x5e0] sm:$0xff]
      %v2009 = vld [vmem:[#allocation2 + $0x5e8] sm:$0xff]
      %v2010 = vld [vmem:[#allocation2 + $0x5f0] sm:$0xff]
      %v2011 = vld [vmem:[#allocation2 + $0x5f8] sm:$0xff]
      %v2012 = vld [vmem:[#allocation2 + $0x600] sm:$0xff]
      %v2013 = vld [vmem:[#allocation2 + $0x608] sm:$0xff]
      %v2014 = vld [vmem:[#allocation2 + $0x610] sm:$0xff]
      %v2015 = vld [vmem:[#allocation2 + $0x618] sm:$0xff]
      %v2016 = vld [vmem:[#allocation2 + $0x620] sm:$0xff]
      %v2017 = vld [vmem:[#allocation2 + $0x628] sm:$0xff]
      %v2018 = vld [vmem:[#allocation2 + $0x630] sm:$0xff]
      %v2019 = vld [vmem:[#allocation2 + $0x638] sm:$0xff]
      %v2020 = vld [vmem:[%s2] sm:$0xff]
      %2022 = vset.pattern.permute.xlu0 0
      %2023 = vperm.xlu0 %2022, %v2020
      %v2024 = vpop.permute.xlu0 %2023
      %vm2026 = vcmask 588800
      %v2028 = vsel %vm2026, %v1819, 0
      %2030 = vmatprep.subr.mxu0 %v1941
      %2031 = vmatpush1.msra.mxu0 %v1940
      %2032 = vmatprep.subr.mxu0 %v1933
      %2033 = vmatpush1.msra.mxu0 %v1932
      %2034 = vmatprep.subr.mxu0 %v1925
      %2035 = vmatpush1.msra.mxu0 %v1924
      %2036 = vmatprep.subr.mxu0 %v1917
      %2037 = vmatpush1.msra.mxu0 %v1916
      %2038 = vmatprep.subr.mxu0 %v1909
      %2039 = vmatpush1.msra.mxu0 %v1908
      %2040 = vmatprep.subr.mxu0 %v1901
      %2041 = vmatpush1.msra.mxu0 %v1900
      %2042 = vmatprep.subr.mxu0 %v1893
      %2043 = vmatpush1.msra.mxu0 %v1892
      %2044 = vmatprep.subr.mxu0 %v1885
      %2045 = vmatpush1.msra.mxu0 %v1884
      %2046 = vmatprep.subr.mxu0 %v1877
      %2047 = vmatpush1.msra.mxu0 %v1876
      %2048 = vmatprep.subr.mxu0 %v1869
      %2049 = vmatpush1.msra.mxu0 %v1868
      %2050 = vmatprep.subr.mxu0 %v1861
      %2051 = vmatpush1.msra.mxu0 %v1860
      %2052 = vmatprep.subr.mxu0 %v1853
      %2053 = vmatpush1.msra.mxu0 %v1852
      %2054 = vmatprep.subr.mxu0 %v1845
      %2055 = vmatpush1.msra.mxu0 %v1844
      %2056 = vmatprep.subr.mxu0 %v1837
      %2057 = vmatpush1.msra.mxu0 %v1836
      %2058 = vmatprep.subr.mxu0 %v1829
      %2059 = vmatpush1.msra.mxu0 %v1828
      %2060 = vmatprep.subr.mxu0 %v1821
      %2061 = vmatpush1.msra.mxu0 %v1820
      %2062 = vmatprep.subr.mxu0 0.0
      %2063 = vmatpush2.msra.mxu0 0.0
      %2064 = vmatprep.subr.mxu0 0.0
      %2065 = vmatpush2.msra.mxu0 0.0
      %2066 = vmatprep.subr.mxu0 0.0
      %2067 = vmatpush2.msra.mxu0 0.0
      %2068 = vmatprep.subr.mxu0 0.0
      %2069 = vmatpush2.msra.mxu0 0.0
      %2070 = vmatprep.subr.mxu0 0.0
      %2071 = vmatpush2.msra.mxu0 0.0
      %2072 = vmatprep.subr.mxu0 0.0
      %2073 = vmatpush2.msra.mxu0 0.0
      %2074 = vmatprep.subr.mxu0 0.0
      %2075 = vmatpush2.msra.mxu0 0.0
      %2076 = vmatprep.subr.mxu0 %v2013
      %2077 = vmatpush2.msra.mxu0 %v2012
      %2078 = vmatprep.subr.mxu0 %v2005
      %2079 = vmatpush2.msra.mxu0 %v2004
      %2080 = vmatprep.subr.mxu0 %v1997
      %2081 = vmatpush2.msra.mxu0 %v1996
      %2082 = vmatprep.subr.mxu0 %v1989
      %2083 = vmatpush2.msra.mxu0 %v1988
      %2084 = vmatprep.subr.mxu0 %v1981
      %2085 = vmatpush2.msra.mxu0 %v1980
      %2086 = vmatprep.subr.mxu0 %v1973
      %2087 = vmatpush2.msra.mxu0 %v1972
      %2088 = vmatprep.subr.mxu0 %v1965
      %2089 = vmatpush2.msra.mxu0 %v1964
      %2090 = vmatprep.subr.mxu0 %v1957
      %2091 = vmatpush2.msra.mxu0 %v1956
      %2092 = vmatprep.subr.mxu0 %v1949
      %2093 = vmatpush2.msra.mxu0 %v1948
      %2094 = vmatprep.mubr.f32.mxu0 %v2028
      %2095 = vmatmul.mubr.f32.gmra.mxu0 %v1818
      %v2096 = vpop.f32.mrf.mxu0
      %v2097 = vadd.f32 %v2024, %v2096
      %v2098 = vpop.f32.mrf.mxu0
      %v2099 = vadd.f32 %v2024, %v2098
      %2100 = vdwg.mxu0
      %2101 = vmatprep.subr.mxu0 %v1943
      %2102 = vmatpush1.msra.mxu0 %v1942
      %2103 = vmatprep.subr.mxu0 %v1935
      %2104 = vmatpush1.msra.mxu0 %v1934
      %2105 = vmatprep.subr.mxu0 %v1927
      %2106 = vmatpush1.msra.mxu0 %v1926
      %2107 = vmatprep.subr.mxu0 %v1919
      %2108 = vmatpush1.msra.mxu0 %v1918
      %2109 = vmatprep.subr.mxu0 %v1911
      %2110 = vmatpush1.msra.mxu0 %v1910
      %2111 = vmatprep.subr.mxu0 %v1903
      %2112 = vmatpush1.msra.mxu0 %v1902
      %2113 = vmatprep.subr.mxu0 %v1895
      %2114 = vmatpush1.msra.mxu0 %v1894
      %2115 = vmatprep.subr.mxu0 %v1887
      %2116 = vmatpush1.msra.mxu0 %v1886
      %2117 = vmatprep.subr.mxu0 %v1879
      %2118 = vmatpush1.msra.mxu0 %v1878
      %2119 = vmatprep.subr.mxu0 %v1871
      %2120 = vmatpush1.msra.mxu0 %v1870
      %2121 = vmatprep.subr.mxu0 %v1863
      %2122 = vmatpush1.msra.mxu0 %v1862
      %2123 = vmatprep.subr.mxu0 %v1855
      %2124 = vmatpush1.msra.mxu0 %v1854
      %2125 = vmatprep.subr.mxu0 %v1847
      %2126 = vmatpush1.msra.mxu0 %v1846
      %2127 = vmatprep.subr.mxu0 %v1839
      %2128 = vmatpush1.msra.mxu0 %v1838
      %2129 = vmatprep.subr.mxu0 %v1831
      %2130 = vmatpush1.msra.mxu0 %v1830
      %2131 = vmatprep.subr.mxu0 %v1823
      %2132 = vmatpush1.msra.mxu0 %v1822
      %2133 = vmatprep.subr.mxu0 0.0
      %2134 = vmatpush2.msra.mxu0 0.0
      %2135 = vmatprep.subr.mxu0 0.0
      %2136 = vmatpush2.msra.mxu0 0.0
      %2137 = vmatprep.subr.mxu0 0.0
      %2138 = vmatpush2.msra.mxu0 0.0
      %2139 = vmatprep.subr.mxu0 0.0
      %2140 = vmatpush2.msra.mxu0 0.0
      %2141 = vmatprep.subr.mxu0 0.0
      %2142 = vmatpush2.msra.mxu0 0.0
      %2143 = vmatprep.subr.mxu0 0.0
      %2144 = vmatpush2.msra.mxu0 0.0
      %2145 = vmatprep.subr.mxu0 0.0
      %2146 = vmatpush2.msra.mxu0 0.0
      %2147 = vmatprep.subr.mxu0 %v2015
      %2148 = vmatpush2.msra.mxu0 %v2014
      %2149 = vmatprep.subr.mxu0 %v2007
      %2150 = vmatpush2.msra.mxu0 %v2006
      %2151 = vmatprep.subr.mxu0 %v1999
      %2152 = vmatpush2.msra.mxu0 %v1998
      %2153 = vmatprep.subr.mxu0 %v1991
      %2154 = vmatpush2.msra.mxu0 %v1990
      %2155 = vmatprep.subr.mxu0 %v1983
      %2156 = vmatpush2.msra.mxu0 %v1982
      %2157 = vmatprep.subr.mxu0 %v1975
      %2158 = vmatpush2.msra.mxu0 %v1974
      %2159 = vmatprep.subr.mxu0 %v1967
      %2160 = vmatpush2.msra.mxu0 %v1966
      %2161 = vmatprep.subr.mxu0 %v1959
      %2162 = vmatpush2.msra.mxu0 %v1958
      %2163 = vmatprep.subr.mxu0 %v1951
      %2164 = vmatpush2.msra.mxu0 %v1950
      %2165 = vmatprep.mubr.f32.mxu0 %v2028
      %2166 = vmatmul.mubr.f32.gmra.mxu0 %v1818
      %v2167 = vpop.f32.mrf.mxu0
      %v2168 = vadd.f32 %v2024, %v2167
      %v2169 = vpop.f32.mrf.mxu0
      %v2170 = vadd.f32 %v2024, %v2169
      %2171 = vdwg.mxu0
      %2172 = vmatprep.subr.mxu0 %v1945
      %2173 = vmatpush1.msra.mxu0 %v1944
      %2174 = vmatprep.subr.mxu0 %v1937
      %2175 = vmatpush1.msra.mxu0 %v1936
      %2176 = vmatprep.subr.mxu0 %v1929
      %2177 = vmatpush1.msra.mxu0 %v1928
      %2178 = vmatprep.subr.mxu0 %v1921
      %2179 = vmatpush1.msra.mxu0 %v1920
      %2180 = vmatprep.subr.mxu0 %v1913
      %2181 = vmatpush1.msra.mxu0 %v1912
      %2182 = vmatprep.subr.mxu0 %v1905
      %2183 = vmatpush1.msra.mxu0 %v1904
      %2184 = vmatprep.subr.mxu0 %v1897
      %2185 = vmatpush1.msra.mxu0 %v1896
      %2186 = vmatprep.subr.mxu0 %v1889
      %2187 = vmatpush1.msra.mxu0 %v1888
      %2188 = vmatprep.subr.mxu0 %v1881
      %2189 = vmatpush1.msra.mxu0 %v1880
      %2190 = vmatprep.subr.mxu0 %v1873
      %2191 = vmatpush1.msra.mxu0 %v1872
      %2192 = vmatprep.subr.mxu0 %v1865
      %2193 = vmatpush1.msra.mxu0 %v1864
      %2194 = vmatprep.subr.mxu0 %v1857
      %2195 = vmatpush1.msra.mxu0 %v1856
      %2196 = vmatprep.subr.mxu0 %v1849
      %2197 = vmatpush1.msra.mxu0 %v1848
      %2198 = vmatprep.subr.mxu0 %v1841
      %2199 = vmatpush1.msra.mxu0 %v1840
      %2200 = vmatprep.subr.mxu0 %v1833
      %2201 = vmatpush1.msra.mxu0 %v1832
      %2202 = vmatprep.subr.mxu0 %v1825
      %2203 = vmatpush1.msra.mxu0 %v1824
      %2204 = vmatprep.subr.mxu0 0.0
      %2205 = vmatpush2.msra.mxu0 0.0
      %2206 = vmatprep.subr.mxu0 0.0
      %2207 = vmatpush2.msra.mxu0 0.0
      %2208 = vmatprep.subr.mxu0 0.0
      %2209 = vmatpush2.msra.mxu0 0.0
      %2210 = vmatprep.subr.mxu0 0.0
      %2211 = vmatpush2.msra.mxu0 0.0
      %2212 = vmatprep.subr.mxu0 0.0
      %2213 = vmatpush2.msra.mxu0 0.0
      %2214 = vmatprep.subr.mxu0 0.0
      %2215 = vmatpush2.msra.mxu0 0.0
      %2216 = vmatprep.subr.mxu0 0.0
      %2217 = vmatpush2.msra.mxu0 0.0
      %2218 = vmatprep.subr.mxu0 %v2017
      %2219 = vmatpush2.msra.mxu0 %v2016
      %2220 = vmatprep.subr.mxu0 %v2009
      %2221 = vmatpush2.msra.mxu0 %v2008
      %2222 = vmatprep.subr.mxu0 %v2001
      %2223 = vmatpush2.msra.mxu0 %v2000
      %2224 = vmatprep.subr.mxu0 %v1993
      %2225 = vmatpush2.msra.mxu0 %v1992
      %2226 = vmatprep.subr.mxu0 %v1985
      %2227 = vmatpush2.msra.mxu0 %v1984
      %2228 = vmatprep.subr.mxu0 %v1977
      %2229 = vmatpush2.msra.mxu0 %v1976
      %2230 = vmatprep.subr.mxu0 %v1969
      %2231 = vmatpush2.msra.mxu0 %v1968
      %2232 = vmatprep.subr.mxu0 %v1961
      %2233 = vmatpush2.msra.mxu0 %v1960
      %2234 = vmatprep.subr.mxu0 %v1953
      %2235 = vmatpush2.msra.mxu0 %v1952
      %2236 = vmatprep.mubr.f32.mxu0 %v2028
      %2237 = vmatmul.mubr.f32.gmra.mxu0 %v1818
      %v2238 = vpop.f32.mrf.mxu0
      %v2239 = vadd.f32 %v2024, %v2238
      %v2240 = vpop.f32.mrf.mxu0
      %v2241 = vadd.f32 %v2024, %v2240
      %2242 = vdwg.mxu0
      %2243 = vmatprep.subr.mxu0 %v1947
      %2244 = vmatpush1.msra.mxu0 %v1946
      %2245 = vmatprep.subr.mxu0 %v1939
      %2246 = vmatpush1.msra.mxu0 %v1938
      %2247 = vmatprep.subr.mxu0 %v1931
      %2248 = vmatpush1.msra.mxu0 %v1930
      %2249 = vmatprep.subr.mxu0 %v1923
      %2250 = vmatpush1.msra.mxu0 %v1922
      %2251 = vmatprep.subr.mxu0 %v1915
      %2252 = vmatpush1.msra.mxu0 %v1914
      %2253 = vmatprep.subr.mxu0 %v1907
      %2254 = vmatpush1.msra.mxu0 %v1906
      %2255 = vmatprep.subr.mxu0 %v1899
      %2256 = vmatpush1.msra.mxu0 %v1898
      %2257 = vmatprep.subr.mxu0 %v1891
      %2258 = vmatpush1.msra.mxu0 %v1890
      %2259 = vmatprep.subr.mxu0 %v1883
      %2260 = vmatpush1.msra.mxu0 %v1882
      %2261 = vmatprep.subr.mxu0 %v1875
      %2262 = vmatpush1.msra.mxu0 %v1874
      %2263 = vmatprep.subr.mxu0 %v1867
      %2264 = vmatpush1.msra.mxu0 %v1866
      %2265 = vmatprep.subr.mxu0 %v1859
      %2266 = vmatpush1.msra.mxu0 %v1858
      %2267 = vmatprep.subr.mxu0 %v1851
      %2268 = vmatpush1.msra.mxu0 %v1850
      %2269 = vmatprep.subr.mxu0 %v1843
      %2270 = vmatpush1.msra.mxu0 %v1842
      %2271 = vmatprep.subr.mxu0 %v1835
      %2272 = vmatpush1.msra.mxu0 %v1834
      %2273 = vmatprep.subr.mxu0 %v1827
      %2274 = vmatpush1.msra.mxu0 %v1826
      %2275 = vmatprep.subr.mxu0 0.0
      %2276 = vmatpush2.msra.mxu0 0.0
      %2277 = vmatprep.subr.mxu0 0.0
      %2278 = vmatpush2.msra.mxu0 0.0
      %2279 = vmatprep.subr.mxu0 0.0
      %2280 = vmatpush2.msra.mxu0 0.0
      %2281 = vmatprep.subr.mxu0 0.0
      %2282 = vmatpush2.msra.mxu0 0.0
      %2283 = vmatprep.subr.mxu0 0.0
      %2284 = vmatpush2.msra.mxu0 0.0
      %2285 = vmatprep.subr.mxu0 0.0
      %2286 = vmatpush2.msra.mxu0 0.0
      %2287 = vmatprep.subr.mxu0 0.0
      %2288 = vmatpush2.msra.mxu0 0.0
      %2289 = vmatprep.subr.mxu0 %v2019
      %2290 = vmatpush2.msra.mxu0 %v2018
      %2291 = vmatprep.subr.mxu0 %v2011
      %2292 = vmatpush2.msra.mxu0 %v2010
      %2293 = vmatprep.subr.mxu0 %v2003
      %2294 = vmatpush2.msra.mxu0 %v2002
      %2295 = vmatprep.subr.mxu0 %v1995
      %2296 = vmatpush2.msra.mxu0 %v1994
      %2297 = vmatprep.subr.mxu0 %v1987
      %2298 = vmatpush2.msra.mxu0 %v1986
      %2299 = vmatprep.subr.mxu0 %v1979
      %2300 = vmatpush2.msra.mxu0 %v1978
      %2301 = vmatprep.subr.mxu0 %v1971
      %2302 = vmatpush2.msra.mxu0 %v1970
      %2303 = vmatprep.subr.mxu0 %v1963
      %2304 = vmatpush2.msra.mxu0 %v1962
      %2305 = vmatprep.subr.mxu0 %v1955
      %2306 = vmatpush2.msra.mxu0 %v1954
      %2307 = vmatprep.mubr.f32.mxu0 %v2028
      %2308 = vmatmul.mubr.f32.gmra.mxu0 %v1818
      %v2309 = vpop.f32.mrf.mxu0
      %v2310 = vadd.f32 %v2024, %v2309
      %v2311 = vpop.f32.mrf.mxu0
      %v2312 = vadd.f32 %v2024, %v2311
      %2313 = vdwg.mxu0
      %v2314 = vmax.f32 %v2097, 0.0
      %v2315 = vmax.f32 %v2099, 0.0
      %v2316 = vmax.f32 %v2168, 0.0
      %v2317 = vmax.f32 %v2170, 0.0
      %v2318 = vmax.f32 %v2239, 0.0
      %v2319 = vmax.f32 %v2241, 0.0
      %v2320 = vmax.f32 %v2310, 0.0
      %v2321 = vmax.f32 %v2312, 0.0
      %2330 = vrot.lane.b32.xlu0 %v2314, 127
      %v2331 = vpop.permute.xlu0 %2330
      %2332 = vrot.lane.b32.xlu0 %v2315, 127
      %v2333 = vpop.permute.xlu0 %2332
      %2334 = vrot.lane.b32.xlu0 %v2316, 127
      %v2335 = vpop.permute.xlu0 %2334
      %2336 = vrot.lane.b32.xlu0 %v2317, 127
      %v2337 = vpop.permute.xlu0 %2336
      %2338 = vrot.lane.b32.xlu0 %v2318, 127
      %v2339 = vpop.permute.xlu0 %2338
      %2340 = vrot.lane.b32.xlu0 %v2319, 127
      %v2341 = vpop.permute.xlu0 %2340
      %2342 = vrot.lane.b32.xlu0 %v2320, 127
      %v2343 = vpop.permute.xlu0 %2342
      %2344 = vrot.lane.b32.xlu0 %v2321, 127
      %v2345 = vpop.permute.xlu0 %2344
      %v2346 = vsel %vm439, %v2331, %v2333
      %v2347 = vsel %vm439, %v2333, %v2335
      %v2348 = vsel %vm439, %v2335, %v2337
      %v2349 = vsel %vm439, %v2337, %v2339
      %v2350 = vsel %vm439, %v2339, %v2341
      %v2351 = vsel %vm439, %v2341, %v2343
      %v2352 = vsel %vm439, %v2343, %v2345
      %v2361 = vmax.f32 %v2314, %v2346
      %v2362 = vmax.f32 %v2315, %v2347
      %v2363 = vmax.f32 %v2316, %v2348
      %v2364 = vmax.f32 %v2317, %v2349
      %v2365 = vmax.f32 %v2318, %v2350
      %v2366 = vmax.f32 %v2319, %v2351
      %v2367 = vmax.f32 %v2320, %v2352
      %v2368 = vmax.f32 %v2321, %v2345
      %2377 = vrot.lane.b32.xlu0 %v2361, 96
      %v2378 = vpop.permute.xlu0 %2377
      %2379 = vrot.lane.b32.xlu0 %v2362, 96
      %v2380 = vpop.permute.xlu0 %2379
      %2381 = vrot.lane.b32.xlu0 %v2363, 96
      %v2382 = vpop.permute.xlu0 %2381
      %2383 = vrot.lane.b32.xlu0 %v2364, 96
      %v2384 = vpop.permute.xlu0 %2383
      %2385 = vrot.lane.b32.xlu0 %v2365, 96
      %v2386 = vpop.permute.xlu0 %2385
      %2387 = vrot.lane.b32.xlu0 %v2366, 96
      %v2388 = vpop.permute.xlu0 %2387
      %2389 = vrot.lane.b32.xlu0 %v2367, 96
      %v2390 = vpop.permute.xlu0 %2389
      %2391 = vrot.lane.b32.xlu0 %v2368, 96
      %v2392 = vpop.permute.xlu0 %2391
      %v2393 = vsel %vm683, %v2378, %v2380
      %v2394 = vsel %vm683, %v2380, %v2382
      %v2395 = vsel %vm683, %v2382, %v2384
      %v2396 = vsel %vm683, %v2384, %v2386
      %v2397 = vsel %vm683, %v2386, %v2388
      %v2398 = vsel %vm683, %v2388, %v2390
      %v2399 = vsel %vm683, %v2390, %v2392
      %v2408 = vmax.f32 %v2361, %v2393
      %v2409 = vmax.f32 %v2362, %v2394
      %v2410 = vmax.f32 %v2363, %v2395
      %v2411 = vmax.f32 %v2364, %v2396
      %v2412 = vmax.f32 %v2365, %v2397
      %v2413 = vmax.f32 %v2366, %v2398
      %v2414 = vmax.f32 %v2367, %v2399
      %v2415 = vmax.f32 %v2368, %v2392
      %2416 = vst [vmem:[#allocation3] sm:$0xff] %v2408
      %2417 = vst [vmem:[#allocation3 + $0x8] sm:$0xff] %v2409
      %2418 = vst [vmem:[#allocation3 + $0x10] sm:$0xff] %v2410
      %2419 = vst [vmem:[#allocation3 + $0x18] sm:$0xff] %v2411
      %2420 = vst [vmem:[#allocation3 + $0x20] sm:$0xff] %v2412
      %2427 = vrot.lane.b32.xlu0 %v2408, 126
      %v2428 = vpop.permute.xlu0 %2427
      %2429 = vrot.lane.b32.xlu0 %v2409, 126
      %v2430 = vpop.permute.xlu0 %2429
      %2431 = vrot.lane.b32.xlu0 %v2410, 126
      %v2432 = vpop.permute.xlu0 %2431
      %2433 = vrot.lane.b32.xlu0 %v2411, 126
      %v2434 = vpop.permute.xlu0 %2433
      %2435 = vrot.lane.b32.xlu0 %v2412, 126
      %v2436 = vpop.permute.xlu0 %2435
      %2437 = vrot.lane.b32.xlu0 %v2413, 126
      %v2438 = vpop.permute.xlu0 %2437
      %v2439 = vsel %vm500, %v2428, %v2430
      %v2440 = vsel %vm500, %v2430, %v2432
      %v2441 = vsel %vm500, %v2432, %v2434
      %v2442 = vsel %vm500, %v2434, %v2436
      %v2443 = vsel %vm500, %v2436, %v2438
      %2449 = vst [vmem:[#allocation3 + $0x28] sm:$0xff] %v2439
      %2450 = vst [vmem:[#allocation3 + $0x30] sm:$0xff] %v2440
      %2451 = vst [vmem:[#allocation3 + $0x38] sm:$0xff] %v2441
      %2452 = vst [vmem:[#allocation3 + $0x40] sm:$0xff] %v2442
      %2453 = vst [vmem:[#allocation3 + $0x48] sm:$0xff] %v2443
      %2454 = vrot.lane.b32.xlu0 %v2408, 124
      %v2455 = vpop.permute.xlu0 %2454
      %2456 = vrot.lane.b32.xlu0 %v2409, 124
      %v2457 = vpop.permute.xlu0 %2456
      %2458 = vrot.lane.b32.xlu0 %v2410, 124
      %v2459 = vpop.permute.xlu0 %2458
      %2460 = vrot.lane.b32.xlu0 %v2411, 124
      %v2461 = vpop.permute.xlu0 %2460
      %2462 = vrot.lane.b32.xlu0 %v2412, 124
      %v2463 = vpop.permute.xlu0 %2462
      %2464 = vrot.lane.b32.xlu0 %v2413, 124
      %v2465 = vpop.permute.xlu0 %2464
      %v2466 = vsel %vm622, %v2455, %v2457
      %v2467 = vsel %vm622, %v2457, %v2459
      %v2468 = vsel %vm622, %v2459, %v2461
      %v2469 = vsel %vm622, %v2461, %v2463
      %v2470 = vsel %vm622, %v2463, %v2465
      %2476 = vst [vmem:[#allocation3 + $0x50] sm:$0xff] %v2466
      %2477 = vst [vmem:[#allocation3 + $0x58] sm:$0xff] %v2467
      %2478 = vst [vmem:[#allocation3 + $0x60] sm:$0xff] %v2468
      %2479 = vst [vmem:[#allocation3 + $0x68] sm:$0xff] %v2469
      %2480 = vst [vmem:[#allocation3 + $0x70] sm:$0xff] %v2470
      %2481 = vrot.lane.b32.xlu0 %v2408, 122
      %v2482 = vpop.permute.xlu0 %2481
      %2483 = vrot.lane.b32.xlu0 %v2409, 122
      %v2484 = vpop.permute.xlu0 %2483
      %2485 = vrot.lane.b32.xlu0 %v2410, 122
      %v2486 = vpop.permute.xlu0 %2485
      %2487 = vrot.lane.b32.xlu0 %v2411, 122
      %v2488 = vpop.permute.xlu0 %2487
      %2489 = vrot.lane.b32.xlu0 %v2412, 122
      %v2490 = vpop.permute.xlu0 %2489
      %2491 = vrot.lane.b32.xlu0 %v2413, 122
      %v2492 = vpop.permute.xlu0 %2491
      %vm2493 = vcmask 998400
      %v2494 = vsel %vm2493, %v2482, %v2484
      %v2495 = vsel %vm2493, %v2484, %v2486
      %v2496 = vsel %vm2493, %v2486, %v2488
      %v2497 = vsel %vm2493, %v2488, %v2490
      %v2498 = vsel %vm2493, %v2490, %v2492
      %2504 = vst [vmem:[#allocation3 + $0x78] sm:$0xff] %v2494
      %2505 = vst [vmem:[#allocation3 + $0x80] sm:$0xff] %v2495
      %2506 = vst [vmem:[#allocation3 + $0x88] sm:$0xff] %v2496
      %2507 = vst [vmem:[#allocation3 + $0x90] sm:$0xff] %v2497
      %2508 = vst [vmem:[#allocation3 + $0x98] sm:$0xff] %v2498
      %2509 = vrot.lane.b32.xlu0 %v2408, 120
      %v2510 = vpop.permute.xlu0 %2509
      %2511 = vrot.lane.b32.xlu0 %v2409, 120
      %v2512 = vpop.permute.xlu0 %2511
      %2513 = vrot.lane.b32.xlu0 %v2410, 120
      %v2514 = vpop.permute.xlu0 %2513
      %2515 = vrot.lane.b32.xlu0 %v2411, 120
      %v2516 = vpop.permute.xlu0 %2515
      %2517 = vrot.lane.b32.xlu0 %v2412, 120
      %v2518 = vpop.permute.xlu0 %2517
      %2519 = vrot.lane.b32.xlu0 %v2413, 120
      %v2520 = vpop.permute.xlu0 %2519
      %vm2521 = vcmask 982016
      %v2522 = vsel %vm2521, %v2510, %v2512
      %v2523 = vsel %vm2521, %v2512, %v2514
      %v2524 = vsel %vm2521, %v2514, %v2516
      %v2525 = vsel %vm2521, %v2516, %v2518
      %v2526 = vsel %vm2521, %v2518, %v2520
      %2532 = vst [vmem:[#allocation3 + $0xa0] sm:$0xff] %v2522
      %2533 = vst [vmem:[#allocation3 + $0xa8] sm:$0xff] %v2523
      %2534 = vst [vmem:[#allocation3 + $0xb0] sm:$0xff] %v2524
      %2535 = vst [vmem:[#allocation3 + $0xb8] sm:$0xff] %v2525
      %2536 = vst [vmem:[#allocation3 + $0xc0] sm:$0xff] %v2526
      %2537 = vrot.lane.b32.xlu0 %v2408, 64
      %v2538 = vpop.permute.xlu0 %2537
      %2539 = vrot.lane.b32.xlu0 %v2409, 64
      %v2540 = vpop.permute.xlu0 %2539
      %2541 = vrot.lane.b32.xlu0 %v2410, 64
      %v2542 = vpop.permute.xlu0 %2541
      %2543 = vrot.lane.b32.xlu0 %v2411, 64
      %v2544 = vpop.permute.xlu0 %2543
      %2545 = vrot.lane.b32.xlu0 %v2412, 64
      %v2546 = vpop.permute.xlu0 %2545
      %2547 = vrot.lane.b32.xlu0 %v2413, 64
      %v2548 = vpop.permute.xlu0 %2547
      %v2549 = vsel %vm988, %v2538, %v2540
      %v2550 = vsel %vm988, %v2540, %v2542
      %v2551 = vsel %vm988, %v2542, %v2544
      %v2552 = vsel %vm988, %v2544, %v2546
      %v2553 = vsel %vm988, %v2546, %v2548
      %2559 = vst [vmem:[#allocation3 + $0xc8] sm:$0xff] %v2549
      %2560 = vst [vmem:[#allocation3 + $0xd0] sm:$0xff] %v2550
      %2561 = vst [vmem:[#allocation3 + $0xd8] sm:$0xff] %v2551
      %2562 = vst [vmem:[#allocation3 + $0xe0] sm:$0xff] %v2552
      %2563 = vst [vmem:[#allocation3 + $0xe8] sm:$0xff] %v2553
      %2564 = vrot.lane.b32.xlu0 %v2408, 62
      %v2565 = vpop.permute.xlu0 %2564
      %2566 = vrot.lane.b32.xlu0 %v2409, 62
      %v2567 = vpop.permute.xlu0 %2566
      %2568 = vrot.lane.b32.xlu0 %v2410, 62
      %v2569 = vpop.permute.xlu0 %2568
      %2570 = vrot.lane.b32.xlu0 %v2411, 62
      %v2571 = vpop.permute.xlu0 %2570
      %2572 = vrot.lane.b32.xlu0 %v2412, 62
      %v2573 = vpop.permute.xlu0 %2572
      %2574 = vrot.lane.b32.xlu0 %v2413, 62
      %v2575 = vpop.permute.xlu0 %2574
      %v2576 = vsel %vm1110, %v2565, %v2567
      %v2577 = vsel %vm1110, %v2567, %v2569
      %v2578 = vsel %vm1110, %v2569, %v2571
      %v2579 = vsel %vm1110, %v2571, %v2573
      %v2580 = vsel %vm1110, %v2573, %v2575
      %2586 = vst [vmem:[#allocation3 + $0xf0] sm:$0xff] %v2576
      %2587 = vst [vmem:[#allocation3 + $0xf8] sm:$0xff] %v2577
      %2588 = vst [vmem:[#allocation3 + $0x100] sm:$0xff] %v2578
      %2589 = vst [vmem:[#allocation3 + $0x108] sm:$0xff] %v2579
      %2590 = vst [vmem:[#allocation3 + $0x110] sm:$0xff] %v2580
      %2591 = vrot.lane.b32.xlu0 %v2408, 60
      %v2592 = vpop.permute.xlu0 %2591
      %2593 = vrot.lane.b32.xlu0 %v2409, 60
      %v2594 = vpop.permute.xlu0 %2593
      %2595 = vrot.lane.b32.xlu0 %v2410, 60
      %v2596 = vpop.permute.xlu0 %2595
      %2597 = vrot.lane.b32.xlu0 %v2411, 60
      %v2598 = vpop.permute.xlu0 %2597
      %2599 = vrot.lane.b32.xlu0 %v2412, 60
      %v2600 = vpop.permute.xlu0 %2599
      %2601 = vrot.lane.b32.xlu0 %v2413, 60
      %v2602 = vpop.permute.xlu0 %2601
      %v2603 = vsel %vm1232, %v2592, %v2594
      %v2604 = vsel %vm1232, %v2594, %v2596
      %v2605 = vsel %vm1232, %v2596, %v2598
      %v2606 = vsel %vm1232, %v2598, %v2600
      %v2607 = vsel %vm1232, %v2600, %v2602
      %2613 = vst [vmem:[#allocation3 + $0x118] sm:$0xff] %v2603
      %2614 = vst [vmem:[#allocation3 + $0x120] sm:$0xff] %v2604
      %2615 = vst [vmem:[#allocation3 + $0x128] sm:$0xff] %v2605
      %2616 = vst [vmem:[#allocation3 + $0x130] sm:$0xff] %v2606
      %2617 = vst [vmem:[#allocation3 + $0x138] sm:$0xff] %v2607
      %2618 = vrot.lane.b32.xlu0 %v2408, 58
      %v2619 = vpop.permute.xlu0 %2618
      %2620 = vrot.lane.b32.xlu0 %v2409, 58
      %v2621 = vpop.permute.xlu0 %2620
      %2622 = vrot.lane.b32.xlu0 %v2410, 58
      %v2623 = vpop.permute.xlu0 %2622
      %2624 = vrot.lane.b32.xlu0 %v2411, 58
      %v2625 = vpop.permute.xlu0 %2624
      %2626 = vrot.lane.b32.xlu0 %v2412, 58
      %v2627 = vpop.permute.xlu0 %2626
      %2628 = vrot.lane.b32.xlu0 %v2413, 58
      %v2629 = vpop.permute.xlu0 %2628
      %vm2630 = vcmask 474112
      %v2631 = vsel %vm2630, %v2619, %v2621
      %v2632 = vsel %vm2630, %v2621, %v2623
      %v2633 = vsel %vm2630, %v2623, %v2625
      %v2634 = vsel %vm2630, %v2625, %v2627
      %v2635 = vsel %vm2630, %v2627, %v2629
      %2641 = vst [vmem:[#allocation3 + $0x140] sm:$0xff] %v2631
      %2642 = vst [vmem:[#allocation3 + $0x148] sm:$0xff] %v2632
      %2643 = vst [vmem:[#allocation3 + $0x150] sm:$0xff] %v2633
      %2644 = vst [vmem:[#allocation3 + $0x158] sm:$0xff] %v2634
      %2645 = vst [vmem:[#allocation3 + $0x160] sm:$0xff] %v2635
      %2646 = vrot.lane.b32.xlu0 %v2408, 56
      %v2647 = vpop.permute.xlu0 %2646
      %2648 = vrot.lane.b32.xlu0 %v2409, 56
      %v2649 = vpop.permute.xlu0 %2648
      %2650 = vrot.lane.b32.xlu0 %v2410, 56
      %v2651 = vpop.permute.xlu0 %2650
      %2652 = vrot.lane.b32.xlu0 %v2411, 56
      %v2653 = vpop.permute.xlu0 %2652
      %2654 = vrot.lane.b32.xlu0 %v2412, 56
      %v2655 = vpop.permute.xlu0 %2654
      %2656 = vrot.lane.b32.xlu0 %v2413, 56
      %v2657 = vpop.permute.xlu0 %2656
      %vm2658 = vcmask 457728
      %v2659 = vsel %vm2658, %v2647, %v2649
      %v2660 = vsel %vm2658, %v2649, %v2651
      %v2661 = vsel %vm2658, %v2651, %v2653
      %v2662 = vsel %vm2658, %v2653, %v2655
      %v2663 = vsel %vm2658, %v2655, %v2657
      %2669 = vst [vmem:[#allocation3 + $0x168] sm:$0xff] %v2659
      %2670 = vst [vmem:[#allocation3 + $0x170] sm:$0xff] %v2660
      %2671 = vst [vmem:[#allocation3 + $0x178] sm:$0xff] %v2661
      %2672 = vst [vmem:[#allocation3 + $0x180] sm:$0xff] %v2662
      %2673 = vst [vmem:[#allocation3 + $0x188] sm:$0xff] %v2663
      %2674 = vst [vmem:[#allocation3 + $0x190] sm:$0xff] %v2409
      %2675 = vst [vmem:[#allocation3 + $0x198] sm:$0xff] %v2410
      %2676 = vst [vmem:[#allocation3 + $0x1a0] sm:$0xff] %v2411
      %2677 = vst [vmem:[#allocation3 + $0x1a8] sm:$0xff] %v2412
      %2678 = vst [vmem:[#allocation3 + $0x1b0] sm:$0xff] %v2413
      %2680 = vrot.lane.b32.xlu0 %v2414, 126
      %v2681 = vpop.permute.xlu0 %2680
      %v2682 = vsel %vm500, %v2438, %v2681
      %2684 = vst [vmem:[#allocation3 + $0x1b8] sm:$0xff] %v2440
      %2685 = vst [vmem:[#allocation3 + $0x1c0] sm:$0xff] %v2441
      %2686 = vst [vmem:[#allocation3 + $0x1c8] sm:$0xff] %v2442
      %2687 = vst [vmem:[#allocation3 + $0x1d0] sm:$0xff] %v2443
      %2688 = vst [vmem:[#allocation3 + $0x1d8] sm:$0xff] %v2682
      %2689 = vrot.lane.b32.xlu0 %v2414, 124
      %v2690 = vpop.permute.xlu0 %2689
      %v2691 = vsel %vm622, %v2465, %v2690
      %2693 = vst [vmem:[#allocation3 + $0x1e0] sm:$0xff] %v2467
      %2694 = vst [vmem:[#allocation3 + $0x1e8] sm:$0xff] %v2468
      %2695 = vst [vmem:[#allocation3 + $0x1f0] sm:$0xff] %v2469
      %2696 = vst [vmem:[#allocation3 + $0x1f8] sm:$0xff] %v2470
      %2697 = vst [vmem:[#allocation3 + $0x200] sm:$0xff] %v2691
      %2698 = vrot.lane.b32.xlu0 %v2414, 122
      %v2699 = vpop.permute.xlu0 %2698
      %v2700 = vsel %vm2493, %v2492, %v2699
      %2702 = vst [vmem:[#allocation3 + $0x208] sm:$0xff] %v2495
      %2703 = vst [vmem:[#allocation3 + $0x210] sm:$0xff] %v2496
      %2704 = vst [vmem:[#allocation3 + $0x218] sm:$0xff] %v2497
      %2705 = vst [vmem:[#allocation3 + $0x220] sm:$0xff] %v2498
      %2706 = vst [vmem:[#allocation3 + $0x228] sm:$0xff] %v2700
      %2707 = vrot.lane.b32.xlu0 %v2414, 120
      %v2708 = vpop.permute.xlu0 %2707
      %v2709 = vsel %vm2521, %v2520, %v2708
      %2711 = vst [vmem:[#allocation3 + $0x230] sm:$0xff] %v2523
      %2712 = vst [vmem:[#allocation3 + $0x238] sm:$0xff] %v2524
      %2713 = vst [vmem:[#allocation3 + $0x240] sm:$0xff] %v2525
      %2714 = vst [vmem:[#allocation3 + $0x248] sm:$0xff] %v2526
      %2715 = vst [vmem:[#allocation3 + $0x250] sm:$0xff] %v2709
      %2716 = vrot.lane.b32.xlu0 %v2414, 64
      %v2717 = vpop.permute.xlu0 %2716
      %v2718 = vsel %vm988, %v2548, %v2717
      %2720 = vst [vmem:[#allocation3 + $0x258] sm:$0xff] %v2550
      %2721 = vst [vmem:[#allocation3 + $0x260] sm:$0xff] %v2551
      %2722 = vst [vmem:[#allocation3 + $0x268] sm:$0xff] %v2552
      %2723 = vst [vmem:[#allocation3 + $0x270] sm:$0xff] %v2553
      %2724 = vst [vmem:[#allocation3 + $0x278] sm:$0xff] %v2718
      %2725 = vrot.lane.b32.xlu0 %v2414, 62
      %v2726 = vpop.permute.xlu0 %2725
      %v2727 = vsel %vm1110, %v2575, %v2726
      %2729 = vst [vmem:[#allocation3 + $0x280] sm:$0xff] %v2577
      %2730 = vst [vmem:[#allocation3 + $0x288] sm:$0xff] %v2578
      %2731 = vst [vmem:[#allocation3 + $0x290] sm:$0xff] %v2579
      %2732 = vst [vmem:[#allocation3 + $0x298] sm:$0xff] %v2580
      %2733 = vst [vmem:[#allocation3 + $0x2a0] sm:$0xff] %v2727
      %2734 = vrot.lane.b32.xlu0 %v2414, 60
      %v2735 = vpop.permute.xlu0 %2734
      %v2736 = vsel %vm1232, %v2602, %v2735
      %2738 = vst [vmem:[#allocation3 + $0x2a8] sm:$0xff] %v2604
      %2739 = vst [vmem:[#allocation3 + $0x2b0] sm:$0xff] %v2605
      %2740 = vst [vmem:[#allocation3 + $0x2b8] sm:$0xff] %v2606
      %2741 = vst [vmem:[#allocation3 + $0x2c0] sm:$0xff] %v2607
      %2742 = vst [vmem:[#allocation3 + $0x2c8] sm:$0xff] %v2736
      %2743 = vrot.lane.b32.xlu0 %v2414, 58
      %v2744 = vpop.permute.xlu0 %2743
      %v2745 = vsel %vm2630, %v2629, %v2744
      %2747 = vst [vmem:[#allocation3 + $0x2d0] sm:$0xff] %v2632
      %2748 = vst [vmem:[#allocation3 + $0x2d8] sm:$0xff] %v2633
      %2749 = vst [vmem:[#allocation3 + $0x2e0] sm:$0xff] %v2634
      %2750 = vst [vmem:[#allocation3 + $0x2e8] sm:$0xff] %v2635
      %2751 = vst [vmem:[#allocation3 + $0x2f0] sm:$0xff] %v2745
      %2752 = vrot.lane.b32.xlu0 %v2414, 56
      %v2753 = vpop.permute.xlu0 %2752
      %v2754 = vsel %vm2658, %v2657, %v2753
      %2756 = vst [vmem:[#allocation3 + $0x2f8] sm:$0xff] %v2660
      %2757 = vst [vmem:[#allocation3 + $0x300] sm:$0xff] %v2661
      %2758 = vst [vmem:[#allocation3 + $0x308] sm:$0xff] %v2662
      %2759 = vst [vmem:[#allocation3 + $0x310] sm:$0xff] %v2663
      %2760 = vst [vmem:[#allocation3 + $0x318] sm:$0xff] %v2754
      %2761 = vst [vmem:[#allocation3 + $0x320] sm:$0xff] %v2410
      %2762 = vst [vmem:[#allocation3 + $0x328] sm:$0xff] %v2411
      %2763 = vst [vmem:[#allocation3 + $0x330] sm:$0xff] %v2412
      %2764 = vst [vmem:[#allocation3 + $0x338] sm:$0xff] %v2413
      %2765 = vst [vmem:[#allocation3 + $0x340] sm:$0xff] %v2414
      %2767 = vrot.lane.b32.xlu0 %v2415, 126
      %v2768 = vpop.permute.xlu0 %2767
      %v2769 = vsel %vm500, %v2681, %v2768
      %2771 = vst [vmem:[#allocation3 + $0x348] sm:$0xff] %v2441
      %2772 = vst [vmem:[#allocation3 + $0x350] sm:$0xff] %v2442
      %2773 = vst [vmem:[#allocation3 + $0x358] sm:$0xff] %v2443
      %2774 = vst [vmem:[#allocation3 + $0x360] sm:$0xff] %v2682
      %2775 = vst [vmem:[#allocation3 + $0x368] sm:$0xff] %v2769
      %2776 = vrot.lane.b32.xlu0 %v2415, 124
      %v2777 = vpop.permute.xlu0 %2776
      %v2778 = vsel %vm622, %v2690, %v2777
      %2780 = vst [vmem:[#allocation3 + $0x370] sm:$0xff] %v2468
      %2781 = vst [vmem:[#allocation3 + $0x378] sm:$0xff] %v2469
      %2782 = vst [vmem:[#allocation3 + $0x380] sm:$0xff] %v2470
      %2783 = vst [vmem:[#allocation3 + $0x388] sm:$0xff] %v2691
      %2784 = vst [vmem:[#allocation3 + $0x390] sm:$0xff] %v2778
      %2785 = vrot.lane.b32.xlu0 %v2415, 122
      %v2786 = vpop.permute.xlu0 %2785
      %v2787 = vsel %vm2493, %v2699, %v2786
      %2789 = vst [vmem:[#allocation3 + $0x398] sm:$0xff] %v2496
      %2790 = vst [vmem:[#allocation3 + $0x3a0] sm:$0xff] %v2497
      %2791 = vst [vmem:[#allocation3 + $0x3a8] sm:$0xff] %v2498
      %2792 = vst [vmem:[#allocation3 + $0x3b0] sm:$0xff] %v2700
      %2793 = vst [vmem:[#allocation3 + $0x3b8] sm:$0xff] %v2787
      %2794 = vrot.lane.b32.xlu0 %v2415, 120
      %v2795 = vpop.permute.xlu0 %2794
      %v2796 = vsel %vm2521, %v2708, %v2795
      %2798 = vst [vmem:[#allocation3 + $0x3c0] sm:$0xff] %v2524
      %2799 = vst [vmem:[#allocation3 + $0x3c8] sm:$0xff] %v2525
      %2800 = vst [vmem:[#allocation3 + $0x3d0] sm:$0xff] %v2526
      %2801 = vst [vmem:[#allocation3 + $0x3d8] sm:$0xff] %v2709
      %2802 = vst [vmem:[#allocation3 + $0x3e0] sm:$0xff] %v2796
      %v2803 = vld [vmem:[%s3] sm:$0xff]
      %v2804 = vld [vmem:[%s3 + $0x8] sm:$0xff]
      %v2805 = vld [vmem:[%s3 + $0x10] sm:$0xff]
      %v2806 = vld [vmem:[%s3 + $0x18] sm:$0xff]
      %v2807 = vld [vmem:[#allocation3] sm:$0xff]
      %v2808 = vld [vmem:[#allocation3 + $0x8] sm:$0xff]
      %v2809 = vld [vmem:[#allocation3 + $0x10] sm:$0xff]
      %v2810 = vld [vmem:[#allocation3 + $0x18] sm:$0xff]
      %v2811 = vld [vmem:[#allocation3 + $0x20] sm:$0xff]
      %v2812 = vld [vmem:[#allocation3 + $0x28] sm:$0xff]
      %v2813 = vld [vmem:[#allocation3 + $0x30] sm:$0xff]
      %v2814 = vld [vmem:[#allocation3 + $0x38] sm:$0xff]
      %v2815 = vld [vmem:[#allocation3 + $0x40] sm:$0xff]
      %v2816 = vld [vmem:[#allocation3 + $0x48] sm:$0xff]
      %v2817 = vld [vmem:[#allocation3 + $0x50] sm:$0xff]
      %v2818 = vld [vmem:[#allocation3 + $0x58] sm:$0xff]
      %v2819 = vld [vmem:[#allocation3 + $0x60] sm:$0xff]
      %v2820 = vld [vmem:[#allocation3 + $0x68] sm:$0xff]
      %v2821 = vld [vmem:[#allocation3 + $0x70] sm:$0xff]
      %v2822 = vld [vmem:[#allocation3 + $0x78] sm:$0xff]
      %v2823 = vld [vmem:[#allocation3 + $0x80] sm:$0xff]
      %v2824 = vld [vmem:[#allocation3 + $0x88] sm:$0xff]
      %v2825 = vld [vmem:[#allocation3 + $0x90] sm:$0xff]
      %v2826 = vld [vmem:[#allocation3 + $0x98] sm:$0xff]
      %v2827 = vld [vmem:[#allocation3 + $0xa0] sm:$0xff]
      %v2828 = vld [vmem:[#allocation3 + $0xa8] sm:$0xff]
      %v2829 = vld [vmem:[#allocation3 + $0xb0] sm:$0xff]
      %v2830 = vld [vmem:[#allocation3 + $0xb8] sm:$0xff]
      %v2831 = vld [vmem:[#allocation3 + $0xc0] sm:$0xff]
      %v2832 = vld [vmem:[#allocation3 + $0xc8] sm:$0xff]
      %v2833 = vld [vmem:[#allocation3 + $0xd0] sm:$0xff]
      %v2834 = vld [vmem:[#allocation3 + $0xd8] sm:$0xff]
      %v2835 = vld [vmem:[#allocation3 + $0xe0] sm:$0xff]
      %v2836 = vld [vmem:[#allocation3 + $0xe8] sm:$0xff]
      %v2837 = vld [vmem:[#allocation3 + $0xf0] sm:$0xff]
      %v2838 = vld [vmem:[#allocation3 + $0xf8] sm:$0xff]
      %v2839 = vld [vmem:[#allocation3 + $0x100] sm:$0xff]
      %v2840 = vld [vmem:[#allocation3 + $0x108] sm:$0xff]
      %v2841 = vld [vmem:[#allocation3 + $0x110] sm:$0xff]
      %v2842 = vld [vmem:[#allocation3 + $0x118] sm:$0xff]
      %v2843 = vld [vmem:[#allocation3 + $0x120] sm:$0xff]
      %v2844 = vld [vmem:[#allocation3 + $0x128] sm:$0xff]
      %v2845 = vld [vmem:[#allocation3 + $0x130] sm:$0xff]
      %v2846 = vld [vmem:[#allocation3 + $0x138] sm:$0xff]
      %v2847 = vld [vmem:[#allocation3 + $0x140] sm:$0xff]
      %v2848 = vld [vmem:[#allocation3 + $0x148] sm:$0xff]
      %v2849 = vld [vmem:[#allocation3 + $0x150] sm:$0xff]
      %v2850 = vld [vmem:[#allocation3 + $0x158] sm:$0xff]
      %v2851 = vld [vmem:[#allocation3 + $0x160] sm:$0xff]
      %v2852 = vld [vmem:[#allocation3 + $0x168] sm:$0xff]
      %v2853 = vld [vmem:[#allocation3 + $0x170] sm:$0xff]
      %v2854 = vld [vmem:[#allocation3 + $0x178] sm:$0xff]
      %v2855 = vld [vmem:[#allocation3 + $0x180] sm:$0xff]
      %v2856 = vld [vmem:[#allocation3 + $0x188] sm:$0xff]
      %v2857 = vld [vmem:[#allocation3 + $0x190] sm:$0xff]
      %v2858 = vld [vmem:[#allocation3 + $0x198] sm:$0xff]
      %v2859 = vld [vmem:[#allocation3 + $0x1a0] sm:$0xff]
      %v2860 = vld [vmem:[#allocation3 + $0x1a8] sm:$0xff]
      %v2861 = vld [vmem:[#allocation3 + $0x1b0] sm:$0xff]
      %v2862 = vld [vmem:[#allocation3 + $0x1b8] sm:$0xff]
      %v2863 = vld [vmem:[#allocation3 + $0x1c0] sm:$0xff]
      %v2864 = vld [vmem:[#allocation3 + $0x1c8] sm:$0xff]
      %v2865 = vld [vmem:[#allocation3 + $0x1d0] sm:$0xff]
      %v2866 = vld [vmem:[#allocation3 + $0x1d8] sm:$0xff]
      %v2867 = vld [vmem:[#allocation3 + $0x1e0] sm:$0xff]
      %v2868 = vld [vmem:[#allocation3 + $0x1e8] sm:$0xff]
      %v2869 = vld [vmem:[#allocation3 + $0x1f0] sm:$0xff]
      %v2870 = vld [vmem:[#allocation3 + $0x1f8] sm:$0xff]
      %v2871 = vld [vmem:[#allocation3 + $0x200] sm:$0xff]
      %v2872 = vld [vmem:[#allocation3 + $0x208] sm:$0xff]
      %v2873 = vld [vmem:[#allocation3 + $0x210] sm:$0xff]
      %v2874 = vld [vmem:[#allocation3 + $0x218] sm:$0xff]
      %v2875 = vld [vmem:[#allocation3 + $0x220] sm:$0xff]
      %v2876 = vld [vmem:[#allocation3 + $0x228] sm:$0xff]
      %v2877 = vld [vmem:[#allocation3 + $0x230] sm:$0xff]
      %v2878 = vld [vmem:[#allocation3 + $0x238] sm:$0xff]
      %v2879 = vld [vmem:[#allocation3 + $0x240] sm:$0xff]
      %v2880 = vld [vmem:[#allocation3 + $0x248] sm:$0xff]
      %v2881 = vld [vmem:[#allocation3 + $0x250] sm:$0xff]
      %v2882 = vld [vmem:[#allocation3 + $0x258] sm:$0xff]
      %v2883 = vld [vmem:[#allocation3 + $0x260] sm:$0xff]
      %v2884 = vld [vmem:[#allocation3 + $0x268] sm:$0xff]
      %v2885 = vld [vmem:[#allocation3 + $0x270] sm:$0xff]
      %v2886 = vld [vmem:[#allocation3 + $0x278] sm:$0xff]
      %v2887 = vld [vmem:[#allocation3 + $0x280] sm:$0xff]
      %v2888 = vld [vmem:[#allocation3 + $0x288] sm:$0xff]
      %v2889 = vld [vmem:[#allocation3 + $0x290] sm:$0xff]
      %v2890 = vld [vmem:[#allocation3 + $0x298] sm:$0xff]
      %v2891 = vld [vmem:[#allocation3 + $0x2a0] sm:$0xff]
      %v2892 = vld [vmem:[#allocation3 + $0x2a8] sm:$0xff]
      %v2893 = vld [vmem:[#allocation3 + $0x2b0] sm:$0xff]
      %v2894 = vld [vmem:[#allocation3 + $0x2b8] sm:$0xff]
      %v2895 = vld [vmem:[#allocation3 + $0x2c0] sm:$0xff]
      %v2896 = vld [vmem:[#allocation3 + $0x2c8] sm:$0xff]
      %v2897 = vld [vmem:[#allocation3 + $0x2d0] sm:$0xff]
      %v2898 = vld [vmem:[#allocation3 + $0x2d8] sm:$0xff]
      %v2899 = vld [vmem:[#allocation3 + $0x2e0] sm:$0xff]
      %v2900 = vld [vmem:[#allocation3 + $0x2e8] sm:$0xff]
      %v2901 = vld [vmem:[#allocation3 + $0x2f0] sm:$0xff]
      %v2902 = vld [vmem:[#allocation3 + $0x2f8] sm:$0xff]
      %v2903 = vld [vmem:[#allocation3 + $0x300] sm:$0xff]
      %v2904 = vld [vmem:[#allocation3 + $0x308] sm:$0xff]
      %v2905 = vld [vmem:[#allocation3 + $0x310] sm:$0xff]
      %v2906 = vld [vmem:[#allocation3 + $0x318] sm:$0xff]
      %v2907 = vld [vmem:[#allocation3 + $0x320] sm:$0xff]
      %v2908 = vld [vmem:[#allocation3 + $0x328] sm:$0xff]
      %v2909 = vld [vmem:[#allocation3 + $0x330] sm:$0xff]
      %v2910 = vld [vmem:[#allocation3 + $0x338] sm:$0xff]
      %v2911 = vld [vmem:[#allocation3 + $0x340] sm:$0xff]
      %v2912 = vld [vmem:[#allocation3 + $0x348] sm:$0xff]
      %v2913 = vld [vmem:[#allocation3 + $0x350] sm:$0xff]
      %v2914 = vld [vmem:[#allocation3 + $0x358] sm:$0xff]
      %v2915 = vld [vmem:[#allocation3 + $0x360] sm:$0xff]
      %v2916 = vld [vmem:[#allocation3 + $0x368] sm:$0xff]
      %v2917 = vld [vmem:[#allocation3 + $0x370] sm:$0xff]
      %v2918 = vld [vmem:[#allocation3 + $0x378] sm:$0xff]
      %v2919 = vld [vmem:[#allocation3 + $0x380] sm:$0xff]
      %v2920 = vld [vmem:[#allocation3 + $0x388] sm:$0xff]
      %v2921 = vld [vmem:[#allocation3 + $0x390] sm:$0xff]
      %v2922 = vld [vmem:[#allocation3 + $0x398] sm:$0xff]
      %v2923 = vld [vmem:[#allocation3 + $0x3a0] sm:$0xff]
      %v2924 = vld [vmem:[#allocation3 + $0x3a8] sm:$0xff]
      %v2925 = vld [vmem:[#allocation3 + $0x3b0] sm:$0xff]
      %v2926 = vld [vmem:[#allocation3 + $0x3b8] sm:$0xff]
      %v2927 = vld [vmem:[#allocation3 + $0x3c0] sm:$0xff]
      %v2928 = vld [vmem:[#allocation3 + $0x3c8] sm:$0xff]
      %v2929 = vld [vmem:[#allocation3 + $0x3d0] sm:$0xff]
      %v2930 = vld [vmem:[#allocation3 + $0x3d8] sm:$0xff]
      %v2931 = vld [vmem:[#allocation3 + $0x3e0] sm:$0xff]
      %v2932 = vld [vmem:[%s4] sm:$0xff]
      %v2933 = vld [vmem:[%s4 + $0x8] sm:$0xff]
      %2935 = vset.pattern.permute.xlu0 0
      %2936 = vperm.xlu0 %2935, %v2932
      %v2937 = vpop.permute.xlu0 %2936
      %2940 = vset.pattern.permute.xlu0 0
      %2941 = vperm.xlu0 %2940, %v2933
      %v2942 = vpop.permute.xlu0 %2941
      %v2945 = vsel %vm2026, %v2804, 0
      %v2948 = vsel %vm2026, %v2806, 0
      %2950 = vmatprep.subr.mxu0 %v2883
      %2951 = vmatpush1.msra.mxu0 %v2882
      %2952 = vmatprep.subr.mxu0 %v2878
      %2953 = vmatpush1.msra.mxu0 %v2877
      %2954 = vmatprep.subr.mxu0 %v2873
      %2955 = vmatpush1.msra.mxu0 %v2872
      %2956 = vmatprep.subr.mxu0 %v2868
      %2957 = vmatpush1.msra.mxu0 %v2867
      %2958 = vmatprep.subr.mxu0 %v2863
      %2959 = vmatpush1.msra.mxu0 %v2862
      %2960 = vmatprep.subr.mxu0 %v2858
      %2961 = vmatpush1.msra.mxu0 %v2857
      %2962 = vmatprep.subr.mxu0 %v2853
      %2963 = vmatpush1.msra.mxu0 %v2852
      %2964 = vmatprep.subr.mxu0 %v2848
      %2965 = vmatpush1.msra.mxu0 %v2847
      %2966 = vmatprep.subr.mxu0 %v2843
      %2967 = vmatpush1.msra.mxu0 %v2842
      %2968 = vmatprep.subr.mxu0 %v2838
      %2969 = vmatpush1.msra.mxu0 %v2837
      %2970 = vmatprep.subr.mxu0 %v2833
      %2971 = vmatpush1.msra.mxu0 %v2832
      %2972 = vmatprep.subr.mxu0 %v2828
      %2973 = vmatpush1.msra.mxu0 %v2827
      %2974 = vmatprep.subr.mxu0 %v2823
      %2975 = vmatpush1.msra.mxu0 %v2822
      %2976 = vmatprep.subr.mxu0 %v2818
      %2977 = vmatpush1.msra.mxu0 %v2817
      %2978 = vmatprep.subr.mxu0 %v2813
      %2979 = vmatpush1.msra.mxu0 %v2812
      %2980 = vmatprep.subr.mxu0 %v2808
      %2981 = vmatpush1.msra.mxu0 %v2807
      %2982 = vmatprep.subr.mxu0 0.0
      %2983 = vmatpush2.msra.mxu0 0.0
      %2984 = vmatprep.subr.mxu0 0.0
      %2985 = vmatpush2.msra.mxu0 0.0
      %2986 = vmatprep.subr.mxu0 0.0
      %2987 = vmatpush2.msra.mxu0 0.0
      %2988 = vmatprep.subr.mxu0 0.0
      %2989 = vmatpush2.msra.mxu0 0.0
      %2990 = vmatprep.subr.mxu0 0.0
      %2991 = vmatpush2.msra.mxu0 0.0
      %2992 = vmatprep.subr.mxu0 0.0
      %2993 = vmatpush2.msra.mxu0 0.0
      %2994 = vmatprep.subr.mxu0 0.0
      %2995 = vmatpush2.msra.mxu0 0.0
      %2996 = vmatprep.subr.mxu0 %v2928
      %2997 = vmatpush2.msra.mxu0 %v2927
      %2998 = vmatprep.subr.mxu0 %v2923
      %2999 = vmatpush2.msra.mxu0 %v2922
      %3000 = vmatprep.subr.mxu0 %v2918
      %3001 = vmatpush2.msra.mxu0 %v2917
      %3002 = vmatprep.subr.mxu0 %v2913
      %3003 = vmatpush2.msra.mxu0 %v2912
      %3004 = vmatprep.subr.mxu0 %v2908
      %3005 = vmatpush2.msra.mxu0 %v2907
      %3006 = vmatprep.subr.mxu0 %v2903
      %3007 = vmatpush2.msra.mxu0 %v2902
      %3008 = vmatprep.subr.mxu0 %v2898
      %3009 = vmatpush2.msra.mxu0 %v2897
      %3010 = vmatprep.subr.mxu0 %v2893
      %3011 = vmatpush2.msra.mxu0 %v2892
      %3012 = vmatprep.subr.mxu0 %v2888
      %3013 = vmatpush2.msra.mxu0 %v2887
      %3014 = vmatprep.mubr.f32.mxu0 %v2945
      %3015 = vmatmul.mubr.f32.gmra.mxu0 %v2803
      %v3016 = vpop.f32.mrf.mxu0
      %v3017 = vadd.f32 %v2937, %v3016
      %v3018 = vpop.f32.mrf.mxu0
      %v3019 = vadd.f32 %v2937, %v3018
      %3020 = vmatprep.mubr.f32.mxu0 %v2948
      %3021 = vmatmul.mubr.f32.gmra.mxu0 %v2805
      %v3022 = vpop.f32.mrf.mxu0
      %v3023 = vadd.f32 %v2942, %v3022
      %v3024 = vpop.f32.mrf.mxu0
      %v3025 = vadd.f32 %v2942, %v3024
      %3026 = vdwg.mxu0
      %3027 = vmatprep.subr.mxu0 %v2885
      %3028 = vmatpush1.msra.mxu0 %v2884
      %3029 = vmatprep.subr.mxu0 %v2880
      %3030 = vmatpush1.msra.mxu0 %v2879
      %3031 = vmatprep.subr.mxu0 %v2875
      %3032 = vmatpush1.msra.mxu0 %v2874
      %3033 = vmatprep.subr.mxu0 %v2870
      %3034 = vmatpush1.msra.mxu0 %v2869
      %3035 = vmatprep.subr.mxu0 %v2865
      %3036 = vmatpush1.msra.mxu0 %v2864
      %3037 = vmatprep.subr.mxu0 %v2860
      %3038 = vmatpush1.msra.mxu0 %v2859
      %3039 = vmatprep.subr.mxu0 %v2855
      %3040 = vmatpush1.msra.mxu0 %v2854
      %3041 = vmatprep.subr.mxu0 %v2850
      %3042 = vmatpush1.msra.mxu0 %v2849
      %3043 = vmatprep.subr.mxu0 %v2845
      %3044 = vmatpush1.msra.mxu0 %v2844
      %3045 = vmatprep.subr.mxu0 %v2840
      %3046 = vmatpush1.msra.mxu0 %v2839
      %3047 = vmatprep.subr.mxu0 %v2835
      %3048 = vmatpush1.msra.mxu0 %v2834
      %3049 = vmatprep.subr.mxu0 %v2830
      %3050 = vmatpush1.msra.mxu0 %v2829
      %3051 = vmatprep.subr.mxu0 %v2825
      %3052 = vmatpush1.msra.mxu0 %v2824
      %3053 = vmatprep.subr.mxu0 %v2820
      %3054 = vmatpush1.msra.mxu0 %v2819
      %3055 = vmatprep.subr.mxu0 %v2815
      %3056 = vmatpush1.msra.mxu0 %v2814
      %3057 = vmatprep.subr.mxu0 %v2810
      %3058 = vmatpush1.msra.mxu0 %v2809
      %3059 = vmatprep.subr.mxu0 0.0
      %3060 = vmatpush2.msra.mxu0 0.0
      %3061 = vmatprep.subr.mxu0 0.0
      %3062 = vmatpush2.msra.mxu0 0.0
      %3063 = vmatprep.subr.mxu0 0.0
      %3064 = vmatpush2.msra.mxu0 0.0
      %3065 = vmatprep.subr.mxu0 0.0
      %3066 = vmatpush2.msra.mxu0 0.0
      %3067 = vmatprep.subr.mxu0 0.0
      %3068 = vmatpush2.msra.mxu0 0.0
      %3069 = vmatprep.subr.mxu0 0.0
      %3070 = vmatpush2.msra.mxu0 0.0
      %3071 = vmatprep.subr.mxu0 0.0
      %3072 = vmatpush2.msra.mxu0 0.0
      %3073 = vmatprep.subr.mxu0 %v2930
      %3074 = vmatpush2.msra.mxu0 %v2929
      %3075 = vmatprep.subr.mxu0 %v2925
      %3076 = vmatpush2.msra.mxu0 %v2924
      %3077 = vmatprep.subr.mxu0 %v2920
      %3078 = vmatpush2.msra.mxu0 %v2919
      %3079 = vmatprep.subr.mxu0 %v2915
      %3080 = vmatpush2.msra.mxu0 %v2914
      %3081 = vmatprep.subr.mxu0 %v2910
      %3082 = vmatpush2.msra.mxu0 %v2909
      %3083 = vmatprep.subr.mxu0 %v2905
      %3084 = vmatpush2.msra.mxu0 %v2904
      %3085 = vmatprep.subr.mxu0 %v2900
      %3086 = vmatpush2.msra.mxu0 %v2899
      %3087 = vmatprep.subr.mxu0 %v2895
      %3088 = vmatpush2.msra.mxu0 %v2894
      %3089 = vmatprep.subr.mxu0 %v2890
      %3090 = vmatpush2.msra.mxu0 %v2889
      %3091 = vmatprep.mubr.f32.mxu0 %v2945
      %3092 = vmatmul.mubr.f32.gmra.mxu0 %v2803
      %v3093 = vpop.f32.mrf.mxu0
      %v3094 = vadd.f32 %v2937, %v3093
      %v3095 = vpop.f32.mrf.mxu0
      %v3096 = vadd.f32 %v2937, %v3095
      %3097 = vmatprep.mubr.f32.mxu0 %v2948
      %3098 = vmatmul.mubr.f32.gmra.mxu0 %v2805
      %v3099 = vpop.f32.mrf.mxu0
      %v3100 = vadd.f32 %v2942, %v3099
      %v3101 = vpop.f32.mrf.mxu0
      %v3102 = vadd.f32 %v2942, %v3101
      %3103 = vdwg.mxu0
      %3104 = vmatprep.subr.mxu0 0.0
      %3105 = vmatpush1.msra.mxu0 %v2886
      %3106 = vmatprep.subr.mxu0 0.0
      %3107 = vmatpush1.msra.mxu0 %v2881
      %3108 = vmatprep.subr.mxu0 0.0
      %3109 = vmatpush1.msra.mxu0 %v2876
      %3110 = vmatprep.subr.mxu0 0.0
      %3111 = vmatpush1.msra.mxu0 %v2871
      %3112 = vmatprep.subr.mxu0 0.0
      %3113 = vmatpush1.msra.mxu0 %v2866
      %3114 = vmatprep.subr.mxu0 0.0
      %3115 = vmatpush1.msra.mxu0 %v2861
      %3116 = vmatprep.subr.mxu0 0.0
      %3117 = vmatpush1.msra.mxu0 %v2856
      %3118 = vmatprep.subr.mxu0 0.0
      %3119 = vmatpush1.msra.mxu0 %v2851
      %3120 = vmatprep.subr.mxu0 0.0
      %3121 = vmatpush1.msra.mxu0 %v2846
      %3122 = vmatprep.subr.mxu0 0.0
      %3123 = vmatpush1.msra.mxu0 %v2841
      %3124 = vmatprep.subr.mxu0 0.0
      %3125 = vmatpush1.msra.mxu0 %v2836
      %3126 = vmatprep.subr.mxu0 0.0
      %3127 = vmatpush1.msra.mxu0 %v2831
      %3128 = vmatprep.subr.mxu0 0.0
      %3129 = vmatpush1.msra.mxu0 %v2826
      %3130 = vmatprep.subr.mxu0 0.0
      %3131 = vmatpush1.msra.mxu0 %v2821
      %3132 = vmatprep.subr.mxu0 0.0
      %3133 = vmatpush1.msra.mxu0 %v2816
      %3134 = vmatprep.subr.mxu0 0.0
      %3135 = vmatpush1.msra.mxu0 %v2811
      %3136 = vmatprep.subr.mxu0 0.0
      %3137 = vmatpush2.msra.mxu0 0.0
      %3138 = vmatprep.subr.mxu0 0.0
      %3139 = vmatpush2.msra.mxu0 0.0
      %3140 = vmatprep.subr.mxu0 0.0
      %3141 = vmatpush2.msra.mxu0 0.0
      %3142 = vmatprep.subr.mxu0 0.0
      %3143 = vmatpush2.msra.mxu0 0.0
      %3144 = vmatprep.subr.mxu0 0.0
      %3145 = vmatpush2.msra.mxu0 0.0
      %3146 = vmatprep.subr.mxu0 0.0
      %3147 = vmatpush2.msra.mxu0 0.0
      %3148 = vmatprep.subr.mxu0 0.0
      %3149 = vmatpush2.msra.mxu0 0.0
      %3150 = vmatprep.subr.mxu0 0.0
      %3151 = vmatpush2.msra.mxu0 %v2931
      %3152 = vmatprep.subr.mxu0 0.0
      %3153 = vmatpush2.msra.mxu0 %v2926
      %3154 = vmatprep.subr.mxu0 0.0
      %3155 = vmatpush2.msra.mxu0 %v2921
      %3156 = vmatprep.subr.mxu0 0.0
      %3157 = vmatpush2.msra.mxu0 %v2916
      %3158 = vmatprep.subr.mxu0 0.0
      %3159 = vmatpush2.msra.mxu0 %v2911
      %3160 = vmatprep.subr.mxu0 0.0
      %3161 = vmatpush2.msra.mxu0 %v2906
      %3162 = vmatprep.subr.mxu0 0.0
      %3163 = vmatpush2.msra.mxu0 %v2901
      %3164 = vmatprep.subr.mxu0 0.0
      %3165 = vmatpush2.msra.mxu0 %v2896
      %3166 = vmatprep.subr.mxu0 0.0
      %3167 = vmatpush2.msra.mxu0 %v2891
      %3168 = vmatprep.mubr.f32.mxu0 %v2945
      %3169 = vmatmul.mubr.f32.gmra.mxu0 %v2803
      %v3170 = vpop.f32.mrf.mxu0
      %v3171 = vadd.f32 %v2937, %v3170
      %v3172 = vpop.f32.mrf.mxu0
      %3173 = vmatprep.mubr.f32.mxu0 %v2948
      %3174 = vmatmul.mubr.f32.gmra.mxu0 %v2805
      %v3175 = vpop.f32.mrf.mxu0
      %v3176 = vadd.f32 %v2942, %v3175
      %v3177 = vpop.f32.mrf.mxu0
      %3178 = vdwg.mxu0
      %v3179 = vmax.f32 %v3017, 0.0
      %v3180 = vmax.f32 %v3019, 0.0
      %v3181 = vmax.f32 %v3094, 0.0
      %v3182 = vmax.f32 %v3096, 0.0
      %v3183 = vmax.f32 %v3171, 0.0
      %v3184 = vmax.f32 %v3023, 0.0
      %v3185 = vmax.f32 %v3025, 0.0
      %v3186 = vmax.f32 %v3100, 0.0
      %v3187 = vmax.f32 %v3102, 0.0
      %v3188 = vmax.f32 %v3176, 0.0
      %3199 = vrot.lane.b32.xlu0 %v3179, 126
      %v3200 = vpop.permute.xlu0 %3199
      %3201 = vrot.lane.b32.xlu0 %v3180, 126
      %v3202 = vpop.permute.xlu0 %3201
      %3203 = vrot.lane.b32.xlu0 %v3181, 126
      %v3204 = vpop.permute.xlu0 %3203
      %3205 = vrot.lane.b32.xlu0 %v3182, 126
      %v3206 = vpop.permute.xlu0 %3205
      %3207 = vrot.lane.b32.xlu0 %v3183, 126
      %v3208 = vpop.permute.xlu0 %3207
      %3209 = vrot.lane.b32.xlu0 %v3184, 126
      %v3210 = vpop.permute.xlu0 %3209
      %3211 = vrot.lane.b32.xlu0 %v3185, 126
      %v3212 = vpop.permute.xlu0 %3211
      %3213 = vrot.lane.b32.xlu0 %v3186, 126
      %v3214 = vpop.permute.xlu0 %3213
      %3215 = vrot.lane.b32.xlu0 %v3187, 126
      %v3216 = vpop.permute.xlu0 %3215
      %3217 = vrot.lane.b32.xlu0 %v3188, 126
      %v3218 = vpop.permute.xlu0 %3217
      %v3219 = vsel %vm500, %v3200, %v3202
      %v3220 = vsel %vm500, %v3202, %v3204
      %v3221 = vsel %vm500, %v3204, %v3206
      %v3222 = vsel %vm500, %v3206, %v3208
      %v3223 = vsel %vm500, %v3210, %v3212
      %v3224 = vsel %vm500, %v3212, %v3214
      %v3225 = vsel %vm500, %v3214, %v3216
      %v3226 = vsel %vm500, %v3216, %v3218
      %v3237 = vmax.f32 %v3179, %v3219
      %v3238 = vmax.f32 %v3180, %v3220
      %v3239 = vmax.f32 %v3181, %v3221
      %v3240 = vmax.f32 %v3182, %v3222
      %v3241 = vmax.f32 %v3183, %v3208
      %v3242 = vmax.f32 %v3184, %v3223
      %v3243 = vmax.f32 %v3185, %v3224
      %v3244 = vmax.f32 %v3186, %v3225
      %v3245 = vmax.f32 %v3187, %v3226
      %v3246 = vmax.f32 %v3188, %v3218
      %3257 = vrot.lane.b32.xlu0 %v3237, 64
      %v3258 = vpop.permute.xlu0 %3257
      %3259 = vrot.lane.b32.xlu0 %v3238, 64
      %v3260 = vpop.permute.xlu0 %3259
      %3261 = vrot.lane.b32.xlu0 %v3239, 64
      %v3262 = vpop.permute.xlu0 %3261
      %3263 = vrot.lane.b32.xlu0 %v3240, 64
      %v3264 = vpop.permute.xlu0 %3263
      %3265 = vrot.lane.b32.xlu0 %v3241, 64
      %v3266 = vpop.permute.xlu0 %3265
      %3267 = vrot.lane.b32.xlu0 %v3242, 64
      %v3268 = vpop.permute.xlu0 %3267
      %3269 = vrot.lane.b32.xlu0 %v3243, 64
      %v3270 = vpop.permute.xlu0 %3269
      %3271 = vrot.lane.b32.xlu0 %v3244, 64
      %v3272 = vpop.permute.xlu0 %3271
      %3273 = vrot.lane.b32.xlu0 %v3245, 64
      %v3274 = vpop.permute.xlu0 %3273
      %3275 = vrot.lane.b32.xlu0 %v3246, 64
      %v3276 = vpop.permute.xlu0 %3275
      %v3277 = vsel %vm988, %v3258, %v3260
      %v3278 = vsel %vm988, %v3260, %v3262
      %v3279 = vsel %vm988, %v3262, %v3264
      %v3280 = vsel %vm988, %v3264, %v3266
      %v3281 = vsel %vm988, %v3268, %v3270
      %v3282 = vsel %vm988, %v3270, %v3272
      %v3283 = vsel %vm988, %v3272, %v3274
      %v3284 = vsel %vm988, %v3274, %v3276
      %v3295 = vmax.f32 %v3237, %v3277
      %v3296 = vmax.f32 %v3238, %v3278
      %v3297 = vmax.f32 %v3239, %v3279
      %v3298 = vmax.f32 %v3240, %v3280
      %v3299 = vmax.f32 %v3241, %v3266
      %v3300 = vmax.f32 %v3242, %v3281
      %v3301 = vmax.f32 %v3243, %v3282
      %v3302 = vmax.f32 %v3244, %v3283
      %v3303 = vmax.f32 %v3245, %v3284
      %v3304 = vmax.f32 %v3246, %v3276
      %vm3305 = vcmask 7168
      %3306 = vst.msk [vmem:[#allocation4] sm:$0xff] %vm3305, %v3295
      %3307 = vst.msk [vmem:[#allocation4 + $0x8] sm:$0xff] %vm3305, %v3300
      %3310 = vrot.lane.b32.xlu0 %v3295, 124
      %v3311 = vpop.permute.xlu0 %3310
      %3312 = vrot.lane.b32.xlu0 %v3300, 124
      %v3313 = vpop.permute.xlu0 %3312
      %3316 = vst.msk [vmem:[#allocation4 + $0x10] sm:$0xff] %vm3305, %v3311
      %3317 = vst.msk [vmem:[#allocation4 + $0x18] sm:$0xff] %vm3305, %v3313
      %3318 = vrot.lane.b32.xlu0 %v3295, 120
      %v3319 = vpop.permute.xlu0 %3318
      %3320 = vrot.lane.b32.xlu0 %v3300, 120
      %v3321 = vpop.permute.xlu0 %3320
      %3324 = vst.msk [vmem:[#allocation4 + $0x20] sm:$0xff] %vm3305, %v3319
      %3325 = vst.msk [vmem:[#allocation4 + $0x28] sm:$0xff] %vm3305, %v3321
      %3326 = vrot.lane.b32.xlu0 %v3295, 116
      %v3327 = vpop.permute.xlu0 %3326
      %3328 = vrot.lane.b32.xlu0 %v3300, 116
      %v3329 = vpop.permute.xlu0 %3328
      %3332 = vst.msk [vmem:[#allocation4 + $0x30] sm:$0xff] %vm3305, %v3327
      %3333 = vst.msk [vmem:[#allocation4 + $0x38] sm:$0xff] %vm3305, %v3329
      %3334 = vrot.lane.b32.xlu0 %v3295, 112
      %v3335 = vpop.permute.xlu0 %3334
      %3336 = vrot.lane.b32.xlu0 %v3300, 112
      %v3337 = vpop.permute.xlu0 %3336
      %3340 = vst.msk [vmem:[#allocation4 + $0x40] sm:$0xff] %vm3305, %v3335
      %3341 = vst.msk [vmem:[#allocation4 + $0x48] sm:$0xff] %vm3305, %v3337
      %3342 = vst.msk [vmem:[#allocation4 + $0x50] sm:$0xff] %vm3305, %v3296
      %3343 = vst.msk [vmem:[#allocation4 + $0x58] sm:$0xff] %vm3305, %v3301
      %3346 = vrot.lane.b32.xlu0 %v3296, 124
      %v3347 = vpop.permute.xlu0 %3346
      %3348 = vrot.lane.b32.xlu0 %v3301, 124
      %v3349 = vpop.permute.xlu0 %3348
      %3352 = vst.msk [vmem:[#allocation4 + $0x60] sm:$0xff] %vm3305, %v3347
      %3353 = vst.msk [vmem:[#allocation4 + $0x68] sm:$0xff] %vm3305, %v3349
      %3354 = vrot.lane.b32.xlu0 %v3296, 120
      %v3355 = vpop.permute.xlu0 %3354
      %3356 = vrot.lane.b32.xlu0 %v3301, 120
      %v3357 = vpop.permute.xlu0 %3356
      %3360 = vst.msk [vmem:[#allocation4 + $0x70] sm:$0xff] %vm3305, %v3355
      %3361 = vst.msk [vmem:[#allocation4 + $0x78] sm:$0xff] %vm3305, %v3357
      %3362 = vrot.lane.b32.xlu0 %v3296, 116
      %v3363 = vpop.permute.xlu0 %3362
      %3364 = vrot.lane.b32.xlu0 %v3301, 116
      %v3365 = vpop.permute.xlu0 %3364
      %3368 = vst.msk [vmem:[#allocation4 + $0x80] sm:$0xff] %vm3305, %v3363
      %3369 = vst.msk [vmem:[#allocation4 + $0x88] sm:$0xff] %vm3305, %v3365
      %3370 = vrot.lane.b32.xlu0 %v3296, 112
      %v3371 = vpop.permute.xlu0 %3370
      %3372 = vrot.lane.b32.xlu0 %v3301, 112
      %v3373 = vpop.permute.xlu0 %3372
      %3376 = vst.msk [vmem:[#allocation4 + $0x90] sm:$0xff] %vm3305, %v3371
      %3377 = vst.msk [vmem:[#allocation4 + $0x98] sm:$0xff] %vm3305, %v3373
      %3378 = vst.msk [vmem:[#allocation4 + $0xa0] sm:$0xff] %vm3305, %v3297
      %3379 = vst.msk [vmem:[#allocation4 + $0xa8] sm:$0xff] %vm3305, %v3302
      %3382 = vrot.lane.b32.xlu0 %v3297, 124
      %v3383 = vpop.permute.xlu0 %3382
      %3384 = vrot.lane.b32.xlu0 %v3302, 124
      %v3385 = vpop.permute.xlu0 %3384
      %3388 = vst.msk [vmem:[#allocation4 + $0xb0] sm:$0xff] %vm3305, %v3383
      %3389 = vst.msk [vmem:[#allocation4 + $0xb8] sm:$0xff] %vm3305, %v3385
      %3390 = vrot.lane.b32.xlu0 %v3297, 120
      %v3391 = vpop.permute.xlu0 %3390
      %3392 = vrot.lane.b32.xlu0 %v3302, 120
      %v3393 = vpop.permute.xlu0 %3392
      %3396 = vst.msk [vmem:[#allocation4 + $0xc0] sm:$0xff] %vm3305, %v3391
      %3397 = vst.msk [vmem:[#allocation4 + $0xc8] sm:$0xff] %vm3305, %v3393
      %3398 = vrot.lane.b32.xlu0 %v3297, 116
      %v3399 = vpop.permute.xlu0 %3398
      %3400 = vrot.lane.b32.xlu0 %v3302, 116
      %v3401 = vpop.permute.xlu0 %3400
      %3404 = vst.msk [vmem:[#allocation4 + $0xd0] sm:$0xff] %vm3305, %v3399
      %3405 = vst.msk [vmem:[#allocation4 + $0xd8] sm:$0xff] %vm3305, %v3401
      %3406 = vrot.lane.b32.xlu0 %v3297, 112
      %v3407 = vpop.permute.xlu0 %3406
      %3408 = vrot.lane.b32.xlu0 %v3302, 112
      %v3409 = vpop.permute.xlu0 %3408
      %3412 = vst.msk [vmem:[#allocation4 + $0xe0] sm:$0xff] %vm3305, %v3407
      %3413 = vst.msk [vmem:[#allocation4 + $0xe8] sm:$0xff] %vm3305, %v3409
      %3414 = vst.msk [vmem:[#allocation4 + $0xf0] sm:$0xff] %vm3305, %v3298
      %3415 = vst.msk [vmem:[#allocation4 + $0xf8] sm:$0xff] %vm3305, %v3303
      %3418 = vrot.lane.b32.xlu0 %v3298, 124
      %v3419 = vpop.permute.xlu0 %3418
      %3420 = vrot.lane.b32.xlu0 %v3303, 124
      %v3421 = vpop.permute.xlu0 %3420
      %3424 = vst.msk [vmem:[#allocation4 + $0x100] sm:$0xff] %vm3305, %v3419
      %3425 = vst.msk [vmem:[#allocation4 + $0x108] sm:$0xff] %vm3305, %v3421
      %3426 = vrot.lane.b32.xlu0 %v3298, 120
      %v3427 = vpop.permute.xlu0 %3426
      %3428 = vrot.lane.b32.xlu0 %v3303, 120
      %v3429 = vpop.permute.xlu0 %3428
      %3432 = vst.msk [vmem:[#allocation4 + $0x110] sm:$0xff] %vm3305, %v3427
      %3433 = vst.msk [vmem:[#allocation4 + $0x118] sm:$0xff] %vm3305, %v3429
      %3434 = vrot.lane.b32.xlu0 %v3298, 116
      %v3435 = vpop.permute.xlu0 %3434
      %3436 = vrot.lane.b32.xlu0 %v3303, 116
      %v3437 = vpop.permute.xlu0 %3436
      %3440 = vst.msk [vmem:[#allocation4 + $0x120] sm:$0xff] %vm3305, %v3435
      %3441 = vst.msk [vmem:[#allocation4 + $0x128] sm:$0xff] %vm3305, %v3437
      %3442 = vrot.lane.b32.xlu0 %v3298, 112
      %v3443 = vpop.permute.xlu0 %3442
      %3444 = vrot.lane.b32.xlu0 %v3303, 112
      %v3445 = vpop.permute.xlu0 %3444
      %3448 = vst.msk [vmem:[#allocation4 + $0x130] sm:$0xff] %vm3305, %v3443
      %3449 = vst.msk [vmem:[#allocation4 + $0x138] sm:$0xff] %vm3305, %v3445
      %3450 = vst.msk [vmem:[#allocation4 + $0x140] sm:$0xff] %vm3305, %v3299
      %3451 = vst.msk [vmem:[#allocation4 + $0x148] sm:$0xff] %vm3305, %v3304
      %3454 = vrot.lane.b32.xlu0 %v3299, 124
      %v3455 = vpop.permute.xlu0 %3454
      %3456 = vrot.lane.b32.xlu0 %v3304, 124
      %v3457 = vpop.permute.xlu0 %3456
      %3460 = vst.msk [vmem:[#allocation4 + $0x150] sm:$0xff] %vm3305, %v3455
      %3461 = vst.msk [vmem:[#allocation4 + $0x158] sm:$0xff] %vm3305, %v3457
      %3462 = vrot.lane.b32.xlu0 %v3299, 120
      %v3463 = vpop.permute.xlu0 %3462
      %3464 = vrot.lane.b32.xlu0 %v3304, 120
      %v3465 = vpop.permute.xlu0 %3464
      %3468 = vst.msk [vmem:[#allocation4 + $0x160] sm:$0xff] %vm3305, %v3463
      %3469 = vst.msk [vmem:[#allocation4 + $0x168] sm:$0xff] %vm3305, %v3465
      %3470 = vrot.lane.b32.xlu0 %v3299, 116
      %v3471 = vpop.permute.xlu0 %3470
      %3472 = vrot.lane.b32.xlu0 %v3304, 116
      %v3473 = vpop.permute.xlu0 %3472
      %3476 = vst.msk [vmem:[#allocation4 + $0x170] sm:$0xff] %vm3305, %v3471
      %3477 = vst.msk [vmem:[#allocation4 + $0x178] sm:$0xff] %vm3305, %v3473
      %3478 = vrot.lane.b32.xlu0 %v3299, 112
      %v3479 = vpop.permute.xlu0 %3478
      %3480 = vrot.lane.b32.xlu0 %v3304, 112
      %v3481 = vpop.permute.xlu0 %3480
      %3484 = vst.msk [vmem:[#allocation4 + $0x180] sm:$0xff] %vm3305, %v3479
      %3485 = vst.msk [vmem:[#allocation4 + $0x188] sm:$0xff] %vm3305, %v3481
      %v3486 = vld [vmem:[%s5] sm:$0xff]
      %v3487 = vld [vmem:[%s5 + $0x8] sm:$0xff]
      %v3488 = vld [vmem:[%s5 + $0x10] sm:$0xff]
      %v3489 = vld [vmem:[%s5 + $0x18] sm:$0xff]
      %v3490 = vld [vmem:[%s5 + $0x20] sm:$0xff]
      %v3491 = vld [vmem:[%s5 + $0x28] sm:$0xff]
      %v3492 = vld [vmem:[%s5 + $0x30] sm:$0xff]
      %v3493 = vld [vmem:[%s5 + $0x38] sm:$0xff]
      %v3494 = vld [vmem:[%s5 + $0x40] sm:$0xff]
      %v3495 = vld [vmem:[%s5 + $0x48] sm:$0xff]
      %v3496 = vld [vmem:[%s5 + $0x50] sm:$0xff]
      %v3497 = vld [vmem:[%s5 + $0x58] sm:$0xff]
      %v3498 = vld [vmem:[%s5 + $0x60] sm:$0xff]
      %v3499 = vld [vmem:[%s5 + $0x68] sm:$0xff]
      %v3500 = vld [vmem:[%s5 + $0x70] sm:$0xff]
      %v3501 = vld [vmem:[%s5 + $0x78] sm:$0xff]
      %v3502 = vld [vmem:[%s5 + $0x80] sm:$0xff]
      %v3503 = vld [vmem:[%s5 + $0x88] sm:$0xff]
      %v3504 = vld [vmem:[%s5 + $0x90] sm:$0xff]
      %v3505 = vld [vmem:[%s5 + $0x98] sm:$0xff]
      %v3506 = vld [vmem:[%s5 + $0xa0] sm:$0xff]
      %v3507 = vld [vmem:[%s5 + $0xa8] sm:$0xff]
      %v3508 = vld [vmem:[%s5 + $0xb0] sm:$0xff]
      %v3509 = vld [vmem:[%s5 + $0xb8] sm:$0xff]
      %v3510 = vld [vmem:[%s5 + $0xc0] sm:$0xff]
      %v3511 = vld [vmem:[%s5 + $0xc8] sm:$0xff]
      %v3512 = vld [vmem:[%s5 + $0xd0] sm:$0xff]
      %v3513 = vld [vmem:[%s5 + $0xd8] sm:$0xff]
      %v3514 = vld [vmem:[%s5 + $0xe0] sm:$0xff]
      %v3515 = vld [vmem:[%s5 + $0xe8] sm:$0xff]
      %v3516 = vld [vmem:[%s5 + $0xf0] sm:$0xff]
      %v3517 = vld [vmem:[%s5 + $0xf8] sm:$0xff]
      %v3518 = vld [vmem:[%s5 + $0x100] sm:$0xff]
      %v3519 = vld [vmem:[%s5 + $0x108] sm:$0xff]
      %v3520 = vld [vmem:[%s5 + $0x110] sm:$0xff]
      %v3521 = vld [vmem:[%s5 + $0x118] sm:$0xff]
      %v3522 = vld [vmem:[%s5 + $0x120] sm:$0xff]
      %v3523 = vld [vmem:[%s5 + $0x128] sm:$0xff]
      %v3524 = vld [vmem:[%s5 + $0x130] sm:$0xff]
      %v3525 = vld [vmem:[%s5 + $0x138] sm:$0xff]
      %v3526 = vld [vmem:[%s5 + $0x140] sm:$0xff]
      %v3527 = vld [vmem:[%s5 + $0x148] sm:$0xff]
      %v3528 = vld [vmem:[%s5 + $0x150] sm:$0xff]
      %v3529 = vld [vmem:[%s5 + $0x158] sm:$0xff]
      %v3530 = vld [vmem:[%s5 + $0x160] sm:$0xff]
      %v3531 = vld [vmem:[%s5 + $0x168] sm:$0xff]
      %v3532 = vld [vmem:[%s5 + $0x170] sm:$0xff]
      %v3533 = vld [vmem:[%s5 + $0x178] sm:$0xff]
      %v3534 = vld [vmem:[%s5 + $0x180] sm:$0xff]
      %v3535 = vld [vmem:[%s5 + $0x188] sm:$0xff]
      %v3536 = vld [vmem:[%s5 + $0x190] sm:$0xff]
      %v3537 = vld [vmem:[%s5 + $0x198] sm:$0xff]
      %v3538 = vld [vmem:[%s5 + $0x1a0] sm:$0xff]
      %v3539 = vld [vmem:[%s5 + $0x1a8] sm:$0xff]
      %v3540 = vld [vmem:[%s5 + $0x1b0] sm:$0xff]
      %v3541 = vld [vmem:[%s5 + $0x1b8] sm:$0xff]
      %v3542 = vld [vmem:[%s5 + $0x1c0] sm:$0xff]
      %v3543 = vld [vmem:[%s5 + $0x1c8] sm:$0xff]
      %v3544 = vld [vmem:[%s5 + $0x1d0] sm:$0xff]
      %v3545 = vld [vmem:[%s5 + $0x1d8] sm:$0xff]
      %v3546 = vld [vmem:[%s5 + $0x1e0] sm:$0xff]
      %v3547 = vld [vmem:[%s5 + $0x1e8] sm:$0xff]
      %v3548 = vld [vmem:[%s5 + $0x1f0] sm:$0xff]
      %v3549 = vld [vmem:[%s5 + $0x1f8] sm:$0xff]
      %v3550 = vld [vmem:[#allocation4] sm:$0xff]
      %v3551 = vld [vmem:[#allocation4 + $0x8] sm:$0xff]
      %v3552 = vld [vmem:[#allocation4 + $0x10] sm:$0xff]
      %v3553 = vld [vmem:[#allocation4 + $0x18] sm:$0xff]
      %v3554 = vld [vmem:[#allocation4 + $0x20] sm:$0xff]
      %v3555 = vld [vmem:[#allocation4 + $0x28] sm:$0xff]
      %v3556 = vld [vmem:[#allocation4 + $0x30] sm:$0xff]
      %v3557 = vld [vmem:[#allocation4 + $0x38] sm:$0xff]
      %v3558 = vld [vmem:[#allocation4 + $0x40] sm:$0xff]
      %v3559 = vld [vmem:[#allocation4 + $0x48] sm:$0xff]
      %v3560 = vld [vmem:[#allocation4 + $0x50] sm:$0xff]
      %v3561 = vld [vmem:[#allocation4 + $0x58] sm:$0xff]
      %v3562 = vld [vmem:[#allocation4 + $0x60] sm:$0xff]
      %v3563 = vld [vmem:[#allocation4 + $0x68] sm:$0xff]
      %v3564 = vld [vmem:[#allocation4 + $0x70] sm:$0xff]
      %v3565 = vld [vmem:[#allocation4 + $0x78] sm:$0xff]
      %v3566 = vld [vmem:[#allocation4 + $0x80] sm:$0xff]
      %v3567 = vld [vmem:[#allocation4 + $0x88] sm:$0xff]
      %v3568 = vld [vmem:[#allocation4 + $0x90] sm:$0xff]
      %v3569 = vld [vmem:[#allocation4 + $0x98] sm:$0xff]
      %v3570 = vld [vmem:[#allocation4 + $0xa0] sm:$0xff]
      %v3571 = vld [vmem:[#allocation4 + $0xa8] sm:$0xff]
      %v3572 = vld [vmem:[#allocation4 + $0xb0] sm:$0xff]
      %v3573 = vld [vmem:[#allocation4 + $0xb8] sm:$0xff]
      %v3574 = vld [vmem:[#allocation4 + $0xc0] sm:$0xff]
      %v3575 = vld [vmem:[#allocation4 + $0xc8] sm:$0xff]
      %v3576 = vld [vmem:[#allocation4 + $0xd0] sm:$0xff]
      %v3577 = vld [vmem:[#allocation4 + $0xd8] sm:$0xff]
      %v3578 = vld [vmem:[#allocation4 + $0xe0] sm:$0xff]
      %v3579 = vld [vmem:[#allocation4 + $0xe8] sm:$0xff]
      %v3580 = vld [vmem:[#allocation4 + $0xf0] sm:$0xff]
      %v3581 = vld [vmem:[#allocation4 + $0xf8] sm:$0xff]
      %v3582 = vld [vmem:[#allocation4 + $0x100] sm:$0xff]
      %v3583 = vld [vmem:[#allocation4 + $0x108] sm:$0xff]
      %v3584 = vld [vmem:[#allocation4 + $0x110] sm:$0xff]
      %v3585 = vld [vmem:[#allocation4 + $0x118] sm:$0xff]
      %v3586 = vld [vmem:[#allocation4 + $0x120] sm:$0xff]
      %v3587 = vld [vmem:[#allocation4 + $0x128] sm:$0xff]
      %v3588 = vld [vmem:[#allocation4 + $0x130] sm:$0xff]
      %v3589 = vld [vmem:[#allocation4 + $0x138] sm:$0xff]
      %v3590 = vld [vmem:[#allocation4 + $0x140] sm:$0xff]
      %v3591 = vld [vmem:[#allocation4 + $0x148] sm:$0xff]
      %v3592 = vld [vmem:[#allocation4 + $0x150] sm:$0xff]
      %v3593 = vld [vmem:[#allocation4 + $0x158] sm:$0xff]
      %v3594 = vld [vmem:[#allocation4 + $0x160] sm:$0xff]
      %v3595 = vld [vmem:[#allocation4 + $0x168] sm:$0xff]
      %v3596 = vld [vmem:[#allocation4 + $0x170] sm:$0xff]
      %v3597 = vld [vmem:[#allocation4 + $0x178] sm:$0xff]
      %v3598 = vld [vmem:[#allocation4 + $0x180] sm:$0xff]
      %v3599 = vld [vmem:[#allocation4 + $0x188] sm:$0xff]
      %v3600 = vld [vmem:[%s6] sm:$0xff]
      %v3601 = vld [vmem:[%s6 + $0x8] sm:$0xff]
      %v3602 = vld [vmem:[%s6 + $0x10] sm:$0xff]
      %v3603 = vld [vmem:[%s6 + $0x18] sm:$0xff]
      %v3604 = vld [vmem:[%s6 + $0x20] sm:$0xff]
      %v3605 = vld [vmem:[%s6 + $0x28] sm:$0xff]
      %v3606 = vld [vmem:[%s6 + $0x30] sm:$0xff]
      %v3607 = vld [vmem:[%s6 + $0x38] sm:$0xff]
      %v3608 = vld [vmem:[%s6 + $0x40] sm:$0xff]
      %v3609 = vld [vmem:[%s6 + $0x48] sm:$0xff]
      %v3610 = vld [vmem:[%s6 + $0x50] sm:$0xff]
      %v3611 = vld [vmem:[%s6 + $0x58] sm:$0xff]
      %v3612 = vld [vmem:[%s6 + $0x60] sm:$0xff]
      %v3613 = vld [vmem:[%s6 + $0x68] sm:$0xff]
      %v3614 = vld [vmem:[%s6 + $0x70] sm:$0xff]
      %v3615 = vld [vmem:[%s6 + $0x78] sm:$0xff]
      %vm3616 = vcmask 130048
      %v3618 = vsel %vm3616, %v3489, 0
      %v3621 = vsel %vm3616, %v3493, 0
      %v3624 = vsel %vm3616, %v3497, 0
      %v3627 = vsel %vm3616, %v3501, 0
      %v3630 = vsel %vm3616, %v3505, 0
      %v3633 = vsel %vm3616, %v3509, 0
      %v3636 = vsel %vm3616, %v3513, 0
      %v3639 = vsel %vm3616, %v3517, 0
      %v3642 = vsel %vm3616, %v3521, 0
      %v3645 = vsel %vm3616, %v3525, 0
      %v3648 = vsel %vm3616, %v3529, 0
      %v3651 = vsel %vm3616, %v3533, 0
      %v3654 = vsel %vm3616, %v3537, 0
      %v3657 = vsel %vm3616, %v3541, 0
      %v3660 = vsel %vm3616, %v3545, 0
      %v3663 = vsel %vm3616, %v3549, 0
      %3665 = vmatprep.subr.mxu0 0.0
      %3666 = vmatpush1.msra.mxu0 %v3565
      %3667 = vmatprep.subr.mxu0 0.0
      %3668 = vmatpush1.msra.mxu0 %v3564
      %3669 = vmatprep.subr.mxu0 0.0
      %3670 = vmatpush1.msra.mxu0 %v3563
      %3671 = vmatprep.subr.mxu0 0.0
      %3672 = vmatpush1.msra.mxu0 %v3562
      %3673 = vmatprep.subr.mxu0 0.0
      %3674 = vmatpush1.msra.mxu0 %v3561
      %3675 = vmatprep.subr.mxu0 0.0
      %3676 = vmatpush1.msra.mxu0 %v3560
      %3677 = vmatprep.subr.mxu0 0.0
      %3678 = vmatpush1.msra.mxu0 %v3559
      %3679 = vmatprep.subr.mxu0 0.0
      %3680 = vmatpush1.msra.mxu0 %v3558
      %3681 = vmatprep.subr.mxu0 0.0
      %3682 = vmatpush1.msra.mxu0 %v3557
      %3683 = vmatprep.subr.mxu0 0.0
      %3684 = vmatpush1.msra.mxu0 %v3556
      %3685 = vmatprep.subr.mxu0 0.0
      %3686 = vmatpush1.msra.mxu0 %v3555
      %3687 = vmatprep.subr.mxu0 0.0
      %3688 = vmatpush1.msra.mxu0 %v3554
      %3689 = vmatprep.subr.mxu0 0.0
      %3690 = vmatpush1.msra.mxu0 %v3553
      %3691 = vmatprep.subr.mxu0 0.0
      %3692 = vmatpush1.msra.mxu0 %v3552
      %3693 = vmatprep.subr.mxu0 0.0
      %3694 = vmatpush1.msra.mxu0 %v3551
      %3695 = vmatprep.subr.mxu0 0.0
      %3696 = vmatpush1.msra.mxu0 %v3550
      %3697 = vmatprep.subr.mxu0 0.0
      %3698 = vmatpush2.msra.mxu0 %v3581
      %3699 = vmatprep.subr.mxu0 0.0
      %3700 = vmatpush2.msra.mxu0 %v3580
      %3701 = vmatprep.subr.mxu0 0.0
      %3702 = vmatpush2.msra.mxu0 %v3579
      %3703 = vmatprep.subr.mxu0 0.0
      %3704 = vmatpush2.msra.mxu0 %v3578
      %3705 = vmatprep.subr.mxu0 0.0
      %3706 = vmatpush2.msra.mxu0 %v3577
      %3707 = vmatprep.subr.mxu0 0.0
      %3708 = vmatpush2.msra.mxu0 %v3576
      %3709 = vmatprep.subr.mxu0 0.0
      %3710 = vmatpush2.msra.mxu0 %v3575
      %3711 = vmatprep.subr.mxu0 0.0
      %3712 = vmatpush2.msra.mxu0 %v3574
      %3713 = vmatprep.subr.mxu0 0.0
      %3714 = vmatpush2.msra.mxu0 %v3573
      %3715 = vmatprep.subr.mxu0 0.0
      %3716 = vmatpush2.msra.mxu0 %v3572
      %3717 = vmatprep.subr.mxu0 0.0
      %3718 = vmatpush2.msra.mxu0 %v3571
      %3719 = vmatprep.subr.mxu0 0.0
      %3720 = vmatpush2.msra.mxu0 %v3570
      %3721 = vmatprep.subr.mxu0 0.0
      %3722 = vmatpush2.msra.mxu0 %v3569
      %3723 = vmatprep.subr.mxu0 0.0
      %3724 = vmatpush2.msra.mxu0 %v3568
      %3725 = vmatprep.subr.mxu0 0.0
      %3726 = vmatpush2.msra.mxu0 %v3567
      %3727 = vmatprep.subr.mxu0 0.0
      %3728 = vmatpush2.msra.mxu0 %v3566
      %3729 = vmatprep.mubr.f32.mxu0 %v3487
      %3730 = vmatmul.mubr.f32.gmra.mxu0 %v3486
      %v3731 = vpop.f32.mrf.mxu0
      %v3732 = vadd.f32 %v3600, %v3731
      %v3733 = vpop.f32.mrf.mxu0
      %3734 = vmatprep.mubr.f32.mxu0 %v3491
      %3735 = vmatmul.mubr.f32.gmra.mxu0 %v3490
      %v3736 = vpop.f32.mrf.mxu0
      %v3737 = vadd.f32 %v3601, %v3736
      %v3738 = vpop.f32.mrf.mxu0
      %3739 = vmatprep.mubr.f32.mxu0 %v3495
      %3740 = vmatmul.mubr.f32.gmra.mxu0 %v3494
      %v3741 = vpop.f32.mrf.mxu0
      %v3742 = vadd.f32 %v3602, %v3741
      %v3743 = vpop.f32.mrf.mxu0
      %3744 = vmatprep.mubr.f32.mxu0 %v3499
      %3745 = vmatmul.mubr.f32.gmra.mxu0 %v3498
      %v3746 = vpop.f32.mrf.mxu0
      %v3747 = vadd.f32 %v3603, %v3746
      %v3748 = vpop.f32.mrf.mxu0
      %3749 = vmatprep.mubr.f32.mxu0 %v3503
      %3750 = vmatmul.mubr.f32.gmra.mxu0 %v3502
      %v3751 = vpop.f32.mrf.mxu0
      %v3752 = vadd.f32 %v3604, %v3751
      %v3753 = vpop.f32.mrf.mxu0
      %3754 = vmatprep.mubr.f32.mxu0 %v3507
      %3755 = vmatmul.mubr.f32.gmra.mxu0 %v3506
      %v3756 = vpop.f32.mrf.mxu0
      %v3757 = vadd.f32 %v3605, %v3756
      %v3758 = vpop.f32.mrf.mxu0
      %3759 = vmatprep.mubr.f32.mxu0 %v3511
      %3760 = vmatmul.mubr.f32.gmra.mxu0 %v3510
      %v3761 = vpop.f32.mrf.mxu0
      %v3762 = vadd.f32 %v3606, %v3761
      %v3763 = vpop.f32.mrf.mxu0
      %3764 = vmatprep.mubr.f32.mxu0 %v3515
      %3765 = vmatmul.mubr.f32.gmra.mxu0 %v3514
      %v3766 = vpop.f32.mrf.mxu0
      %v3767 = vadd.f32 %v3607, %v3766
      %v3768 = vpop.f32.mrf.mxu0
      %3769 = vmatprep.mubr.f32.mxu0 %v3519
      %3770 = vmatmul.mubr.f32.gmra.mxu0 %v3518
      %v3771 = vpop.f32.mrf.mxu0
      %v3772 = vadd.f32 %v3608, %v3771
      %v3773 = vpop.f32.mrf.mxu0
      %3774 = vmatprep.mubr.f32.mxu0 %v3523
      %3775 = vmatmul.mubr.f32.gmra.mxu0 %v3522
      %v3776 = vpop.f32.mrf.mxu0
      %v3777 = vadd.f32 %v3609, %v3776
      %v3778 = vpop.f32.mrf.mxu0
      %3779 = vmatprep.mubr.f32.mxu0 %v3527
      %3780 = vmatmul.mubr.f32.gmra.mxu0 %v3526
      %v3781 = vpop.f32.mrf.mxu0
      %v3782 = vadd.f32 %v3610, %v3781
      %v3783 = vpop.f32.mrf.mxu0
      %3784 = vmatprep.mubr.f32.mxu0 %v3531
      %3785 = vmatmul.mubr.f32.gmra.mxu0 %v3530
      %v3786 = vpop.f32.mrf.mxu0
      %v3787 = vadd.f32 %v3611, %v3786
      %v3788 = vpop.f32.mrf.mxu0
      %3789 = vmatprep.mubr.f32.mxu0 %v3535
      %3790 = vmatmul.mubr.f32.gmra.mxu0 %v3534
      %v3791 = vpop.f32.mrf.mxu0
      %v3792 = vadd.f32 %v3612, %v3791
      %v3793 = vpop.f32.mrf.mxu0
      %3794 = vmatprep.mubr.f32.mxu0 %v3539
      %3795 = vmatmul.mubr.f32.gmra.mxu0 %v3538
      %v3796 = vpop.f32.mrf.mxu0
      %v3797 = vadd.f32 %v3613, %v3796
      %v3798 = vpop.f32.mrf.mxu0
      %3799 = vmatprep.mubr.f32.mxu0 %v3543
      %3800 = vmatmul.mubr.f32.gmra.mxu0 %v3542
      %v3801 = vpop.f32.mrf.mxu0
      %v3802 = vadd.f32 %v3614, %v3801
      %v3803 = vpop.f32.mrf.mxu0
      %3804 = vmatprep.mubr.f32.mxu0 %v3547
      %3805 = vmatmul.mubr.f32.gmra.mxu0 %v3546
      %v3806 = vpop.f32.mrf.mxu0
      %v3807 = vadd.f32 %v3615, %v3806
      %v3808 = vpop.f32.mrf.mxu0
      %3809 = vdwg.mxu0
      %3810 = vmatprep.subr.mxu0 0.0
      %3811 = vmatpush1.msra.mxu0 %v3597
      %3812 = vmatprep.subr.mxu0 0.0
      %3813 = vmatpush1.msra.mxu0 %v3596
      %3814 = vmatprep.subr.mxu0 0.0
      %3815 = vmatpush1.msra.mxu0 %v3595
      %3816 = vmatprep.subr.mxu0 0.0
      %3817 = vmatpush1.msra.mxu0 %v3594
      %3818 = vmatprep.subr.mxu0 0.0
      %3819 = vmatpush1.msra.mxu0 %v3593
      %3820 = vmatprep.subr.mxu0 0.0
      %3821 = vmatpush1.msra.mxu0 %v3592
      %3822 = vmatprep.subr.mxu0 0.0
      %3823 = vmatpush1.msra.mxu0 %v3591
      %3824 = vmatprep.subr.mxu0 0.0
      %3825 = vmatpush1.msra.mxu0 %v3590
      %3826 = vmatprep.subr.mxu0 0.0
      %3827 = vmatpush1.msra.mxu0 %v3589
      %3828 = vmatprep.subr.mxu0 0.0
      %3829 = vmatpush1.msra.mxu0 %v3588
      %3830 = vmatprep.subr.mxu0 0.0
      %3831 = vmatpush1.msra.mxu0 %v3587
      %3832 = vmatprep.subr.mxu0 0.0
      %3833 = vmatpush1.msra.mxu0 %v3586
      %3834 = vmatprep.subr.mxu0 0.0
      %3835 = vmatpush1.msra.mxu0 %v3585
      %3836 = vmatprep.subr.mxu0 0.0
      %3837 = vmatpush1.msra.mxu0 %v3584
      %3838 = vmatprep.subr.mxu0 0.0
      %3839 = vmatpush1.msra.mxu0 %v3583
      %3840 = vmatprep.subr.mxu0 0.0
      %3841 = vmatpush1.msra.mxu0 %v3582
      %3842 = vmatprep.subr.mxu0 0.0
      %3843 = vmatpush2.msra.mxu0 0.0
      %3844 = vmatprep.subr.mxu0 0.0
      %3845 = vmatpush2.msra.mxu0 0.0
      %3846 = vmatprep.subr.mxu0 0.0
      %3847 = vmatpush2.msra.mxu0 0.0
      %3848 = vmatprep.subr.mxu0 0.0
      %3849 = vmatpush2.msra.mxu0 0.0
      %3850 = vmatprep.subr.mxu0 0.0
      %3851 = vmatpush2.msra.mxu0 0.0
      %3852 = vmatprep.subr.mxu0 0.0
      %3853 = vmatpush2.msra.mxu0 0.0
      %3854 = vmatprep.subr.mxu0 0.0
      %3855 = vmatpush2.msra.mxu0 0.0
      %3856 = vmatprep.subr.mxu0 0.0
      %3857 = vmatpush2.msra.mxu0 0.0
      %3858 = vmatprep.subr.mxu0 0.0
      %3859 = vmatpush2.msra.mxu0 0.0
      %3860 = vmatprep.subr.mxu0 0.0
      %3861 = vmatpush2.msra.mxu0 0.0
      %3862 = vmatprep.subr.mxu0 0.0
      %3863 = vmatpush2.msra.mxu0 0.0
      %3864 = vmatprep.subr.mxu0 0.0
      %3865 = vmatpush2.msra.mxu0 0.0
      %3866 = vmatprep.subr.mxu0 0.0
      %3867 = vmatpush2.msra.mxu0 0.0
      %3868 = vmatprep.subr.mxu0 0.0
      %3869 = vmatpush2.msra.mxu0 0.0
      %3870 = vmatprep.subr.mxu0 0.0
      %3871 = vmatpush2.msra.mxu0 %v3599
      %3872 = vmatprep.subr.mxu0 0.0
      %3873 = vmatpush2.msra.mxu0 %v3598
      %3874 = vmatprep.mubr.f32.mxu0 %v3618
      %3875 = vmatmul.mubr.f32.gmra.mxu0 %v3488
      %v3876 = vpop.f32.mrf.mxu0
      %v3877 = vadd.f32 %v3732, %v3876
      %v3878 = vpop.f32.mrf.mxu0
      %3879 = vmatprep.mubr.f32.mxu0 %v3621
      %3880 = vmatmul.mubr.f32.gmra.mxu0 %v3492
      %v3881 = vpop.f32.mrf.mxu0
      %v3882 = vadd.f32 %v3737, %v3881
      %v3883 = vpop.f32.mrf.mxu0
      %3884 = vmatprep.mubr.f32.mxu0 %v3624
      %3885 = vmatmul.mubr.f32.gmra.mxu0 %v3496
      %v3886 = vpop.f32.mrf.mxu0
      %v3887 = vadd.f32 %v3742, %v3886
      %v3888 = vpop.f32.mrf.mxu0
      %3889 = vmatprep.mubr.f32.mxu0 %v3627
      %3890 = vmatmul.mubr.f32.gmra.mxu0 %v3500
      %v3891 = vpop.f32.mrf.mxu0
      %v3892 = vadd.f32 %v3747, %v3891
      %v3893 = vpop.f32.mrf.mxu0
      %3894 = vmatprep.mubr.f32.mxu0 %v3630
      %3895 = vmatmul.mubr.f32.gmra.mxu0 %v3504
      %v3896 = vpop.f32.mrf.mxu0
      %v3897 = vadd.f32 %v3752, %v3896
      %v3898 = vpop.f32.mrf.mxu0
      %3899 = vmatprep.mubr.f32.mxu0 %v3633
      %3900 = vmatmul.mubr.f32.gmra.mxu0 %v3508
      %v3901 = vpop.f32.mrf.mxu0
      %v3902 = vadd.f32 %v3757, %v3901
      %v3903 = vpop.f32.mrf.mxu0
      %3904 = vmatprep.mubr.f32.mxu0 %v3636
      %3905 = vmatmul.mubr.f32.gmra.mxu0 %v3512
      %v3906 = vpop.f32.mrf.mxu0
      %v3907 = vadd.f32 %v3762, %v3906
      %v3908 = vpop.f32.mrf.mxu0
      %3909 = vmatprep.mubr.f32.mxu0 %v3639
      %3910 = vmatmul.mubr.f32.gmra.mxu0 %v3516
      %v3911 = vpop.f32.mrf.mxu0
      %v3912 = vadd.f32 %v3767, %v3911
      %v3913 = vpop.f32.mrf.mxu0
      %3914 = vmatprep.mubr.f32.mxu0 %v3642
      %3915 = vmatmul.mubr.f32.gmra.mxu0 %v3520
      %v3916 = vpop.f32.mrf.mxu0
      %v3917 = vadd.f32 %v3772, %v3916
      %v3918 = vpop.f32.mrf.mxu0
      %3919 = vmatprep.mubr.f32.mxu0 %v3645
      %3920 = vmatmul.mubr.f32.gmra.mxu0 %v3524
      %v3921 = vpop.f32.mrf.mxu0
      %v3922 = vadd.f32 %v3777, %v3921
      %v3923 = vpop.f32.mrf.mxu0
      %3924 = vmatprep.mubr.f32.mxu0 %v3648
      %3925 = vmatmul.mubr.f32.gmra.mxu0 %v3528
      %v3926 = vpop.f32.mrf.mxu0
      %v3927 = vadd.f32 %v3782, %v3926
      %v3928 = vpop.f32.mrf.mxu0
      %3929 = vmatprep.mubr.f32.mxu0 %v3651
      %3930 = vmatmul.mubr.f32.gmra.mxu0 %v3532
      %v3931 = vpop.f32.mrf.mxu0
      %v3932 = vadd.f32 %v3787, %v3931
      %v3933 = vpop.f32.mrf.mxu0
      %3934 = vmatprep.mubr.f32.mxu0 %v3654
      %3935 = vmatmul.mubr.f32.gmra.mxu0 %v3536
      %v3936 = vpop.f32.mrf.mxu0
      %v3937 = vadd.f32 %v3792, %v3936
      %v3938 = vpop.f32.mrf.mxu0
      %3939 = vmatprep.mubr.f32.mxu0 %v3657
      %3940 = vmatmul.mubr.f32.gmra.mxu0 %v3540
      %v3941 = vpop.f32.mrf.mxu0
      %v3942 = vadd.f32 %v3797, %v3941
      %v3943 = vpop.f32.mrf.mxu0
      %3944 = vmatprep.mubr.f32.mxu0 %v3660
      %3945 = vmatmul.mubr.f32.gmra.mxu0 %v3544
      %v3946 = vpop.f32.mrf.mxu0
      %v3947 = vadd.f32 %v3802, %v3946
      %v3948 = vpop.f32.mrf.mxu0
      %3949 = vmatprep.mubr.f32.mxu0 %v3663
      %3950 = vmatmul.mubr.f32.gmra.mxu0 %v3548
      %v3951 = vpop.f32.mrf.mxu0
      %v3952 = vadd.f32 %v3807, %v3951
      %v3953 = vpop.f32.mrf.mxu0
      %3954 = vdwg.mxu0
      %v3955 = vmax.f32 %v3877, 0.0
      %v3956 = vmax.f32 %v3882, 0.0
      %v3957 = vmax.f32 %v3887, 0.0
      %v3958 = vmax.f32 %v3892, 0.0
      %v3959 = vmax.f32 %v3897, 0.0
      %v3960 = vmax.f32 %v3902, 0.0
      %v3961 = vmax.f32 %v3907, 0.0
      %v3962 = vmax.f32 %v3912, 0.0
      %v3963 = vmax.f32 %v3917, 0.0
      %v3964 = vmax.f32 %v3922, 0.0
      %v3965 = vmax.f32 %v3927, 0.0
      %v3966 = vmax.f32 %v3932, 0.0
      %v3967 = vmax.f32 %v3937, 0.0
      %v3968 = vmax.f32 %v3942, 0.0
      %v3969 = vmax.f32 %v3947, 0.0
      %v3970 = vmax.f32 %v3952, 0.0
      %v3971 = vld [vmem:[%s7] sm:$0xff]
      %v3972 = vld [vmem:[%s7 + $0x8] sm:$0xff]
      %v3973 = vld [vmem:[%s7 + $0x10] sm:$0xff]
      %v3974 = vld [vmem:[%s7 + $0x18] sm:$0xff]
      %v3975 = vld [vmem:[%s7 + $0x20] sm:$0xff]
      %v3976 = vld [vmem:[%s7 + $0x28] sm:$0xff]
      %v3977 = vld [vmem:[%s7 + $0x30] sm:$0xff]
      %v3978 = vld [vmem:[%s7 + $0x38] sm:$0xff]
      %v3979 = vld [vmem:[%s7 + $0x40] sm:$0xff]
      %v3980 = vld [vmem:[%s7 + $0x48] sm:$0xff]
      %v3981 = vld [vmem:[%s7 + $0x50] sm:$0xff]
      %v3982 = vld [vmem:[%s7 + $0x58] sm:$0xff]
      %v3983 = vld [vmem:[%s8] sm:$0xff]
      %v3984 = vld [vmem:[%s8 + $0x8] sm:$0xff]
      %v3985 = vld [vmem:[%s8 + $0x10] sm:$0xff]
      %v3986 = vld [vmem:[%s8 + $0x18] sm:$0xff]
      %v3987 = vld [vmem:[%s8 + $0x20] sm:$0xff]
      %v3988 = vld [vmem:[%s8 + $0x28] sm:$0xff]
      %v3989 = vld [vmem:[%s8 + $0x30] sm:$0xff]
      %v3990 = vld [vmem:[%s8 + $0x38] sm:$0xff]
      %v3991 = vld [vmem:[%s8 + $0x40] sm:$0xff]
      %v3992 = vld [vmem:[%s8 + $0x48] sm:$0xff]
      %v3993 = vld [vmem:[%s8 + $0x50] sm:$0xff]
      %v3994 = vld [vmem:[%s8 + $0x58] sm:$0xff]
      %3995 = vmatprep.subr.mxu0 0.0
      %3996 = vmatpush1.msra.mxu0 %v3970
      %3997 = vmatprep.subr.mxu0 0.0
      %3998 = vmatpush1.msra.mxu0 %v3969
      %3999 = vmatprep.subr.mxu0 0.0
      %4000 = vmatpush1.msra.mxu0 %v3968
      %4001 = vmatprep.subr.mxu0 0.0
      %4002 = vmatpush1.msra.mxu0 %v3967
      %4003 = vmatprep.subr.mxu0 0.0
      %4004 = vmatpush1.msra.mxu0 %v3966
      %4005 = vmatprep.subr.mxu0 0.0
      %4006 = vmatpush1.msra.mxu0 %v3965
      %4007 = vmatprep.subr.mxu0 0.0
      %4008 = vmatpush1.msra.mxu0 %v3964
      %4009 = vmatprep.subr.mxu0 0.0
      %4010 = vmatpush1.msra.mxu0 %v3963
      %4011 = vmatprep.subr.mxu0 0.0
      %4012 = vmatpush1.msra.mxu0 %v3962
      %4013 = vmatprep.subr.mxu0 0.0
      %4014 = vmatpush1.msra.mxu0 %v3961
      %4015 = vmatprep.subr.mxu0 0.0
      %4016 = vmatpush1.msra.mxu0 %v3960
      %4017 = vmatprep.subr.mxu0 0.0
      %4018 = vmatpush1.msra.mxu0 %v3959
      %4019 = vmatprep.subr.mxu0 0.0
      %4020 = vmatpush1.msra.mxu0 %v3958
      %4021 = vmatprep.subr.mxu0 0.0
      %4022 = vmatpush1.msra.mxu0 %v3957
      %4023 = vmatprep.subr.mxu0 0.0
      %4024 = vmatpush1.msra.mxu0 %v3956
      %4025 = vmatprep.subr.mxu0 0.0
      %4026 = vmatpush1.msra.mxu0 %v3955
      %4027 = vmatprep.subr.mxu0 0.0
      %4028 = vmatpush2.msra.mxu0 0.0
      %4029 = vmatprep.subr.mxu0 0.0
      %4030 = vmatpush2.msra.mxu0 0.0
      %4031 = vmatprep.subr.mxu0 0.0
      %4032 = vmatpush2.msra.mxu0 0.0
      %4033 = vmatprep.subr.mxu0 0.0
      %4034 = vmatpush2.msra.mxu0 0.0
      %4035 = vmatprep.subr.mxu0 0.0
      %4036 = vmatpush2.msra.mxu0 0.0
      %4037 = vmatprep.subr.mxu0 0.0
      %4038 = vmatpush2.msra.mxu0 0.0
      %4039 = vmatprep.subr.mxu0 0.0
      %4040 = vmatpush2.msra.mxu0 0.0
      %4041 = vmatprep.subr.mxu0 0.0
      %4042 = vmatpush2.msra.mxu0 0.0
      %4043 = vmatprep.subr.mxu0 0.0
      %4044 = vmatpush2.msra.mxu0 0.0
      %4045 = vmatprep.subr.mxu0 0.0
      %4046 = vmatpush2.msra.mxu0 0.0
      %4047 = vmatprep.subr.mxu0 0.0
      %4048 = vmatpush2.msra.mxu0 0.0
      %4049 = vmatprep.subr.mxu0 0.0
      %4050 = vmatpush2.msra.mxu0 0.0
      %4051 = vmatprep.subr.mxu0 0.0
      %4052 = vmatpush2.msra.mxu0 0.0
      %4053 = vmatprep.subr.mxu0 0.0
      %4054 = vmatpush2.msra.mxu0 0.0
      %4055 = vmatprep.subr.mxu0 0.0
      %4056 = vmatpush2.msra.mxu0 0.0
      %4057 = vmatprep.subr.mxu0 0.0
      %4058 = vmatpush2.msra.mxu0 0.0
      %4059 = vmatprep.mubr.f32.mxu0 0.0
      %4060 = vmatmul.mubr.f32.gmra.mxu0 %v3971
      %v4061 = vpop.f32.mrf.mxu0
      %v4062 = vadd.f32 %v3983, %v4061
      %v4063 = vpop.f32.mrf.mxu0
      %4064 = vmatprep.mubr.f32.mxu0 0.0
      %4065 = vmatmul.mubr.f32.gmra.mxu0 %v3972
      %v4066 = vpop.f32.mrf.mxu0
      %v4067 = vadd.f32 %v3984, %v4066
      %v4068 = vpop.f32.mrf.mxu0
      %4069 = vmatprep.mubr.f32.mxu0 0.0
      %4070 = vmatmul.mubr.f32.gmra.mxu0 %v3973
      %v4071 = vpop.f32.mrf.mxu0
      %v4072 = vadd.f32 %v3985, %v4071
      %v4073 = vpop.f32.mrf.mxu0
      %4074 = vmatprep.mubr.f32.mxu0 0.0
      %4075 = vmatmul.mubr.f32.gmra.mxu0 %v3974
      %v4076 = vpop.f32.mrf.mxu0
      %v4077 = vadd.f32 %v3986, %v4076
      %v4078 = vpop.f32.mrf.mxu0
      %4079 = vmatprep.mubr.f32.mxu0 0.0
      %4080 = vmatmul.mubr.f32.gmra.mxu0 %v3975
      %v4081 = vpop.f32.mrf.mxu0
      %v4082 = vadd.f32 %v3987, %v4081
      %v4083 = vpop.f32.mrf.mxu0
      %4084 = vmatprep.mubr.f32.mxu0 0.0
      %4085 = vmatmul.mubr.f32.gmra.mxu0 %v3976
      %v4086 = vpop.f32.mrf.mxu0
      %v4087 = vadd.f32 %v3988, %v4086
      %v4088 = vpop.f32.mrf.mxu0
      %4089 = vmatprep.mubr.f32.mxu0 0.0
      %4090 = vmatmul.mubr.f32.gmra.mxu0 %v3977
      %v4091 = vpop.f32.mrf.mxu0
      %v4092 = vadd.f32 %v3989, %v4091
      %v4093 = vpop.f32.mrf.mxu0
      %4094 = vmatprep.mubr.f32.mxu0 0.0
      %4095 = vmatmul.mubr.f32.gmra.mxu0 %v3978
      %v4096 = vpop.f32.mrf.mxu0
      %v4097 = vadd.f32 %v3990, %v4096
      %v4098 = vpop.f32.mrf.mxu0
      %4099 = vmatprep.mubr.f32.mxu0 0.0
      %4100 = vmatmul.mubr.f32.gmra.mxu0 %v3979
      %v4101 = vpop.f32.mrf.mxu0
      %v4102 = vadd.f32 %v3991, %v4101
      %v4103 = vpop.f32.mrf.mxu0
      %4104 = vmatprep.mubr.f32.mxu0 0.0
      %4105 = vmatmul.mubr.f32.gmra.mxu0 %v3980
      %v4106 = vpop.f32.mrf.mxu0
      %v4107 = vadd.f32 %v3992, %v4106
      %v4108 = vpop.f32.mrf.mxu0
      %4109 = vmatprep.mubr.f32.mxu0 0.0
      %4110 = vmatmul.mubr.f32.gmra.mxu0 %v3981
      %v4111 = vpop.f32.mrf.mxu0
      %v4112 = vadd.f32 %v3993, %v4111
      %v4113 = vpop.f32.mrf.mxu0
      %4114 = vmatprep.mubr.f32.mxu0 0.0
      %4115 = vmatmul.mubr.f32.gmra.mxu0 %v3982
      %v4116 = vpop.f32.mrf.mxu0
      %v4117 = vadd.f32 %v3994, %v4116
      %v4118 = vpop.f32.mrf.mxu0
      %4119 = vdwg.mxu0
      %v4120 = vmax.f32 %v4062, 0.0
      %v4121 = vmax.f32 %v4067, 0.0
      %v4122 = vmax.f32 %v4072, 0.0
      %v4123 = vmax.f32 %v4077, 0.0
      %v4124 = vmax.f32 %v4082, 0.0
      %v4125 = vmax.f32 %v4087, 0.0
      %v4126 = vmax.f32 %v4092, 0.0
      %v4127 = vmax.f32 %v4097, 0.0
      %v4128 = vmax.f32 %v4102, 0.0
      %v4129 = vmax.f32 %v4107, 0.0
      %v4130 = vmax.f32 %v4112, 0.0
      %v4131 = vmax.f32 %v4117, 0.0
      %v4132 = vld [vmem:[%s9] sm:$0xff]
      %v4133 = vld [vmem:[%s9 + $0x8] sm:$0xff]
      %v4134 = vld [vmem:[%s10] sm:$0xff]
      %v4135 = vld [vmem:[%s10 + $0x8] sm:$0xff]
      %v4137 = vsel %vm683, %v4132, 0
      %v4140 = vsel %vm683, %v4133, 0
      %4142 = vmatprep.subr.mxu0 0.0
      %4143 = vmatpush1.msra.mxu0 0.0
      %4144 = vmatprep.subr.mxu0 0.0
      %4145 = vmatpush1.msra.mxu0 0.0
      %4146 = vmatprep.subr.mxu0 0.0
      %4147 = vmatpush1.msra.mxu0 0.0
      %4148 = vmatprep.subr.mxu0 0.0
      %4149 = vmatpush1.msra.mxu0 0.0
      %4150 = vmatprep.subr.mxu0 0.0
      %4151 = vmatpush1.msra.mxu0 %v4131
      %4152 = vmatprep.subr.mxu0 0.0
      %4153 = vmatpush1.msra.mxu0 %v4130
      %4154 = vmatprep.subr.mxu0 0.0
      %4155 = vmatpush1.msra.mxu0 %v4129
      %4156 = vmatprep.subr.mxu0 0.0
      %4157 = vmatpush1.msra.mxu0 %v4128
      %4158 = vmatprep.subr.mxu0 0.0
      %4159 = vmatpush1.msra.mxu0 %v4127
      %4160 = vmatprep.subr.mxu0 0.0
      %4161 = vmatpush1.msra.mxu0 %v4126
      %4162 = vmatprep.subr.mxu0 0.0
      %4163 = vmatpush1.msra.mxu0 %v4125
      %4164 = vmatprep.subr.mxu0 0.0
      %4165 = vmatpush1.msra.mxu0 %v4124
      %4166 = vmatprep.subr.mxu0 0.0
      %4167 = vmatpush1.msra.mxu0 %v4123
      %4168 = vmatprep.subr.mxu0 0.0
      %4169 = vmatpush1.msra.mxu0 %v4122
      %4170 = vmatprep.subr.mxu0 0.0
      %4171 = vmatpush1.msra.mxu0 %v4121
      %4172 = vmatprep.subr.mxu0 0.0
      %4173 = vmatpush1.msra.mxu0 %v4120
      %4174 = vmatprep.subr.mxu0 0.0
      %4175 = vmatpush2.msra.mxu0 0.0
      %4176 = vmatprep.subr.mxu0 0.0
      %4177 = vmatpush2.msra.mxu0 0.0
      %4178 = vmatprep.subr.mxu0 0.0
      %4179 = vmatpush2.msra.mxu0 0.0
      %4180 = vmatprep.subr.mxu0 0.0
      %4181 = vmatpush2.msra.mxu0 0.0
      %4182 = vmatprep.subr.mxu0 0.0
      %4183 = vmatpush2.msra.mxu0 0.0
      %4184 = vmatprep.subr.mxu0 0.0
      %4185 = vmatpush2.msra.mxu0 0.0
      %4186 = vmatprep.subr.mxu0 0.0
      %4187 = vmatpush2.msra.mxu0 0.0
      %4188 = vmatprep.subr.mxu0 0.0
      %4189 = vmatpush2.msra.mxu0 0.0
      %4190 = vmatprep.subr.mxu0 0.0
      %4191 = vmatpush2.msra.mxu0 0.0
      %4192 = vmatprep.subr.mxu0 0.0
      %4193 = vmatpush2.msra.mxu0 0.0
      %4194 = vmatprep.subr.mxu0 0.0
      %4195 = vmatpush2.msra.mxu0 0.0
      %4196 = vmatprep.subr.mxu0 0.0
      %4197 = vmatpush2.msra.mxu0 0.0
      %4198 = vmatprep.subr.mxu0 0.0
      %4199 = vmatpush2.msra.mxu0 0.0
      %4200 = vmatprep.subr.mxu0 0.0
      %4201 = vmatpush2.msra.mxu0 0.0
      %4202 = vmatprep.subr.mxu0 0.0
      %4203 = vmatpush2.msra.mxu0 0.0
      %4204 = vmatprep.subr.mxu0 0.0
      %4205 = vmatpush2.msra.mxu0 0.0
      %4206 = vmatprep.mubr.f32.mxu0 0.0
      %4207 = vmatmul.mubr.f32.gmra.mxu0 %v4137
      %v4208 = vpop.f32.mrf.mxu0
      %v4209 = vadd.f32 %v4134, %v4208
      %v4210 = vpop.f32.mrf.mxu0
      %4211 = vmatprep.mubr.f32.mxu0 0.0
      %4212 = vmatmul.mubr.f32.gmra.mxu0 %v4140
      %v4213 = vpop.f32.mrf.mxu0
      %v4214 = vadd.f32 %v4135, %v4213
      %v4215 = vpop.f32.mrf.mxu0
      %4216 = vdwg.mxu0
      %4218 = vset.pattern.permute.xlu0 0
      %4219 = vperm.xlu0 %4218, %v4209
      %v4220 = vpop.permute.xlu0 %4219
      %4223 = vset.pattern.permute.xlu0 0
      %4224 = vperm.xlu0 %4223, %v4214
      %v4225 = vpop.permute.xlu0 %4224
      %4227 = vst [vmem:[%s386] sm:$0xff] %v4220
      %4228 = vst [vmem:[%s386 + $0x8] sm:$0xff] %v4225
      %p4229 = scmp.lt.s32.totalorder %s22, 1
      %s4230 = scalar_select %p4229, %s22, 1
      %s4231 = smul.addr %s4230, 2
      %s4232 = smul.addr %s4231, 8
      %s4233 = scalar_lea.vmem %s11, %s4232
      // Predicated region
      $region65: #{lenet_forward.1} parent=63 // pred_check
        %p4234 = pneg %p276
      $region66: #{lenet_forward.1} parent=63 // pred_check_branch
        %4236 = sbr.rel (%p4234) target = $region68
      $region67: #{lenet_forward.1} parent=63 // pred_region
        _
      $region68: #{lenet_forward.1} parent=63 // pred_fallthru
        _
    $region64: #{lenet_forward.1} parent=5 // pred_fallthru
      _
    %p4237 = scmp.le.s32.totalorder 2, %s17
    // Predicated region
    $region69: #{lenet_forward.1} parent=5 // pred_check
      %p4238 = pneg %p4237
    $region70: #{lenet_forward.1} parent=5 // pred_check_branch
      %4240 = sbr.rel (%p4238) target = $region72
    $region71: #{lenet_forward.1} parent=5 // pred_region
      %s4241 = ssub.s32 %s17, 2
      // Predicated region
      $region73: #{lenet_forward.1} parent=71 // pred_check
        %p4242 = pneg %p282
      $region74: #{lenet_forward.1} parent=71 // pred_check_branch
        %4244 = sbr.rel (%p4242) target = $region76
      $region75: #{lenet_forward.1} parent=71 // pred_region
        %p4245 = scmp.lt.s32.totalorder %s23, 1
        %s4246 = scalar_select %p4245, %s23, 1
        %s4247 = smul.addr %s4246, 2
        %s4248 = smul.addr %s4247, 8
        %s4249 = scalar_lea.vmem %s11, %s4248
      $region76: #{lenet_forward.1} parent=71 // pred_fallthru
        _
    $region72: #{lenet_forward.1} parent=5 // pred_fallthru
      _
  $region6: #{lenet_forward.1} parent=0 // loop_footer
    %s21 = sadd.s32 1, %s17
  $region7: #{lenet_forward.1} parent=0 // loop_footer_branch
    %16 = sbr.rel target = $region3
  $region8: #{lenet_forward.1} parent=0 // loop_exit
    _

</llo_original>
